<compile_context>
chip_gen: v6e
topology: v6e:2x2x1
jax: 0.10.0
libtpu: 0.0.40
codegen_flags: <defaults>
</compile_context>

<pallas_src>
import math
from functools import partial

import jax
import jax.numpy as jnp
from jax.experimental import pallas as pl
from jax.experimental.pallas import tpu as pltpu


def _fused_kernel(lam_ref,                                   # (H,) SMEM: per-head lambda_value
                  x_ref, enc_ref,                            # (Tt,E) bf16, (S,E) bf16
                  wq_ref, bq_ref, wk_ref, bk_ref, wv_ref, bv_ref,   # packed (E,H*D) bf16 / (1,H*D) f32
                  rmsw_ref,                                  # (1,H*D) f32: rms_weight*(1-lambda_init)
                  wlin_ref, blin_ref,                        # (H*D,E_out) bf16, (1,E_out) f32
                  out_ref,                                   # (Tt,E_out) f32
                  k_sc, v_sc, cat_sc,                        # VMEM scratch
                  *, num_heads, head_dim, rms_eps):
    H, D = num_heads, head_dim
    half = D // 2

    # K/V depend only on the batch row: compute once per row (first T-tile) into persistent
    # VMEM scratch; subsequent T-tiles reuse it (t axis is "arbitrary", so iteration order
    # within a row is sequential and t == 0 comes first).
    @pl.when(pl.program_id(1) == 0)
    def _():
        eb = enc_ref[...]                                                      # (S,E) bf16
        k = jnp.dot(eb, wk_ref[...], preferred_element_type=jnp.float32) + bk_ref[...]
        v = jnp.dot(eb, wv_ref[...], preferred_element_type=jnp.float32) + bv_ref[...]
        k_sc[...] = k.astype(jnp.bfloat16)
        v_sc[...] = v.astype(jnp.bfloat16)

    # Fused lane-dense Q projection; 1/sqrt(half) already folded into wq/bq.
    q = jnp.dot(x_ref[...], wq_ref[...], preferred_element_type=jnp.float32) + bq_ref[...]
    qb = q.astype(jnp.bfloat16)                                                # (Tt,H*D)
    kb = k_sc[...]                                                             # (S,H*D) bf16
    vb = v_sc[...]                                                             # (S,H*D) bf16

    # q @ k^T as a dot_general contracting dim 1 of both operands (no explicit transpose).
    dn = (((1,), (1,)), ((), ()))

    for h in range(H):                                       # static unroll over heads
        qh = qb[:, h * D:(h + 1) * D]
        kh = kb[:, h * D:(h + 1) * D]
        vh = vb[:, h * D:(h + 1) * D]

        s1 = jax.lax.dot_general(qh[:, :half], kh[:, :half], dn,
                                 preferred_element_type=jnp.float32)           # (Tt,S)
        s2 = jax.lax.dot_general(qh[:, half:], kh[:, half:], dn,
                                 preferred_element_type=jnp.float32)           # (Tt,S)

        # Two independent softmaxes in f32 (no sublane concat/slice copies), exact normalization.
        e1 = jnp.exp(s1 - jnp.max(s1, axis=-1, keepdims=True))
        p1 = e1 / jnp.sum(e1, axis=-1, keepdims=True)
        e2 = jnp.exp(s2 - jnp.max(s2, axis=-1, keepdims=True))
        p2 = e2 / jnp.sum(e2, axis=-1, keepdims=True)

        w = p1 - lam_ref[h] * p2                                               # (Tt,S) f32

        ho = jnp.dot(w.astype(jnp.bfloat16), vh,
                     preferred_element_type=jnp.float32)                       # (Tt,D) f32

        # RMSNorm over head_dim in f32; (1 - lambda_init) pre-folded into gamma.
        ms = jnp.mean(ho * ho, axis=-1, keepdims=True)
        gamma = rmsw_ref[:, h * D:(h + 1) * D]                                 # (1,D) f32
        cat_sc[:, h * D:(h + 1) * D] = (
            ho * jax.lax.rsqrt(ms + rms_eps) * gamma).astype(jnp.bfloat16)

    # Fused output projection straight from the streamed-in head-concat scratch.
    out = jnp.dot(cat_sc[...], wlin_ref[...],
                  preferred_element_type=jnp.float32) + blin_ref[...]          # (Tt,E_out)
    out_ref[...] = out.astype(out_ref.dtype)


def make_params(key, num_heads, embed_dim, d_model, lambda_init=0.8, layer_index=0):
    head_dim = d_model // num_heads
    ks = jax.random.split(key, 12)

    def nrm(k, shape, scale=0.1):
        return (scale * jax.random.normal(k, shape)).astype(jnp.float32)

    return dict(
        wq=nrm(ks[0], (num_heads, embed_dim, head_dim)),
        bq=nrm(ks[1], (num_heads, 1, head_dim)),
        wk=nrm(ks[2], (num_heads, embed_dim, head_dim)),
        bk=nrm(ks[3], (num_heads, 1, head_dim)),
        wv=nrm(ks[4], (num_heads, embed_dim, head_dim)),
        bv=nrm(ks[5], (num_heads, 1, head_dim)),
        lambda_q1=nrm(ks[6], (num_heads, head_dim), 0.3),
        lambda_k1=nrm(ks[7], (num_heads, head_dim), 0.3),
        lambda_q2=nrm(ks[8], (num_heads, head_dim), 0.3),
        lambda_k2=nrm(ks[9], (num_heads, head_dim), 0.3),
        rms_weight=jnp.ones((num_heads, 1, head_dim), jnp.float32),
        w_lin=nrm(ks[10], (d_model, embed_dim)),   # pre-transposed (in, out)
        b_lin=nrm(ks[11], (1, embed_dim)),
        lambda_init=float(lambda_init),
        lambda_init_param=float(lambda_init - 0.6 * math.exp(-0.3 * layer_index)),
    )


def _default_block_t(T):
    try:
        kind = jax.devices()[0].device_kind.lower()
    except Exception:
        kind = ""
    # v6e: 2x256^2 MXU and 128 MiB VMEM -> 256-row tiles; v5e (128^2 MXU) and v7x (64 MiB
    # VMEM, pending S-tiling) stay at 128.
    cap = 256 if "v6" in kind else 128
    return T if T <= cap else cap


def _vmem_limit_bytes(block_t, E, d_model, E_out, S):
    bf16, f32 = 2, 4
    blocks = block_t * E * bf16 + S * E * bf16 + block_t * E_out * f32
    weights = (3 * E * d_model + d_model * E_out) * bf16 + (4 * d_model + E_out) * f32
    scratch = (2 * S + block_t) * d_model * bf16
    interm = (block_t + 2 * S) * d_model * f32 + 6 * block_t * S * f32
    est = 2 * blocks + 2 * weights + scratch + interm + (8 << 20)   # 2x double-buffer + headroom
    return int(min(max(est, 32 << 20), 64 << 20))


def differential_mhca(x, enc, params, *, block_t=None):
    B, T, E = x.shape
    S = enc.shape[1]
    H, _, D = params["wq"].shape
    d_model = H * D
    E_out = params["w_lin"].shape[1]

    assert D % 2 == 0, "head_dim must be even for the differential q/k split"

    if block_t is None:
        block_t = _default_block_t(T)
    assert T % block_t == 0, "T must be divisible by block_t"
    nt = T // block_t

    scale = 1.0 / math.sqrt(D // 2)

    # Per-head scalar lambda_value (parameter glue, outside the kernel).
    lam_vals = (jnp.exp(jnp.sum(params["lambda_q1"] * params["lambda_k1"], axis=-1))
                - jnp.exp(jnp.sum(params["lambda_q2"] * params["lambda_k2"], axis=-1))
                + params["lambda_init_param"]).astype(jnp.float32)            # (H,)

    # Pack per-head weights lane-dense: (H,E,D)->(E,H*D), (H,1,D)->(1,H*D); cast big MXU
    # operands (and activations) to bf16 in the wrapper; fold the score scale into Wq/bq
    # and (1 - lambda_init) into the RMSNorm gamma.
    wq_all = (jnp.transpose(params["wq"], (1, 0, 2)).reshape(E, d_model) * scale).astype(jnp.bfloat16)
    wk_all = jnp.transpose(params["wk"], (1, 0, 2)).reshape(E, d_model).astype(jnp.bfloat16)
    wv_all = jnp.transpose(params["wv"], (1, 0, 2)).reshape(E, d_model).astype(jnp.bfloat16)
    bq_all = (params["bq"].reshape(1, d_model) * scale).astype(jnp.float32)
    bk_all = params["bk"].reshape(1, d_model).astype(jnp.float32)
    bv_all = params["bv"].reshape(1, d_model).astype(jnp.float32)
    rms_all = (params["rms_weight"].reshape(1, d_model)
               * (1.0 - params["lambda_init"])).astype(jnp.float32)
    wlin = params["w_lin"].astype(jnp.bfloat16)
    blin = params["b_lin"].astype(jnp.float32)
    xb = x.astype(jnp.bfloat16)
    encb = enc.astype(jnp.bfloat16)

    kernel = partial(_fused_kernel, num_heads=H, head_dim=D,
                     rms_eps=float(jnp.finfo(jnp.float32).eps))

    def build(single_buffer_weights):
        wkw = dict(pipeline_mode=pl.Buffered(1)) if single_buffer_weights else {}

        def wspec(shape):
            # Constant index map -> resident weights; single-buffer when supported.
            return pl.BlockSpec(shape, lambda b, t, lam: (0, 0), **wkw)

        return pl.pallas_call(
            kernel,
            out_shape=jax.ShapeDtypeStruct((B, T, E_out), jnp.float32),
            grid_spec=pltpu.PrefetchScalarGridSpec(
                num_scalar_prefetch=1,                                # lam_vals -> SMEM
                grid=(B, nt),
                in_specs=[
                    pl.BlockSpec((None, block_t, E), lambda b, t, lam: (b, t, 0)),   # x
                    pl.BlockSpec((None, S, E),       lambda b, t, lam: (b, 0, 0)),   # encoder_out
                    wspec((E, d_model)), wspec((1, d_model)),                        # Wq, bq
                    wspec((E, d_model)), wspec((1, d_model)),                        # Wk, bk
                    wspec((E, d_model)), wspec((1, d_model)),                        # Wv, bv
                    wspec((1, d_model)),                                             # RMS gamma
                    wspec((d_model, E_out)), wspec((1, E_out)),                      # W_lin, b_lin
                ],
                out_specs=pl.BlockSpec((None, block_t, E_out), lambda b, t, lam: (b, t, 0)),
                scratch_shapes=[
                    pltpu.VMEM((S, d_model), jnp.bfloat16),            # K cache (per batch row)
                    pltpu.VMEM((S, d_model), jnp.bfloat16),            # V cache (per batch row)
                    pltpu.VMEM((block_t, d_model), jnp.bfloat16),      # head-concat staging
                ],
            ),
            compiler_params=pltpu.CompilerParams(
                dimension_semantics=("parallel", "arbitrary"),
                vmem_limit_bytes=_vmem_limit_bytes(block_t, E, d_model, E_out, S),
            ),
        )

    args = (lam_vals, xb, encb, wq_all, bq_all, wk_all, bk_all, wv_all, bv_all,
            rms_all, wlin, blin)
    try:
        out = build(True)(*args)
        return jax.block_until_ready(out)
    except Exception:
        # Fallback for jax versions without pipeline_mode=pl.Buffered support on
        # top-level pallas_call BlockSpecs (identical semantics, double-buffered weights).
        return build(False)(*args)


def reference(x, enc, params):
    """Pure-JAX f32 reference mirroring the PyTorch forward."""
    H, E, D = params["wq"].shape
    half = D // 2
    outs = []
    for h in range(H):
        q = x @ params["wq"][h] + params["bq"][h, 0]
        k = enc @ params["wk"][h] + params["bk"][h, 0]
        v = enc @ params["wv"][h] + params["bv"][h, 0]
        q1, q2 = q[..., :half], q[..., half:]
        k1, k2 = k[..., :half], k[..., half:]
        s1 = q1 @ jnp.swapaxes(k1, -1, -2) / math.sqrt(half)
        s2 = q2 @ jnp.swapaxes(k2, -1, -2) / math.sqrt(half)
        w1 = jax.nn.softmax(s1, axis=-1)
        w2 = jax.nn.softmax(s2, axis=-1)
        lam = (jnp.exp(jnp.dot(params["lambda_q1"][h], params["lambda_k1"][h]))
               - jnp.exp(jnp.dot(params["lambda_q2"][h], params["lambda_k2"][h]))
               + params["lambda_init_param"])
        o = (w1 - lam * w2) @ v
        ms = jnp.mean(o * o, axis=-1, keepdims=True)
        o = o * jax.lax.rsqrt(ms + jnp.finfo(jnp.float32).eps) * params["rms_weight"][h, 0]
        outs.append((1.0 - params["lambda_init"]) * o)
    cat = jnp.concatenate(outs, axis=-1)
    return cat @ params["w_lin"] + params["b_lin"][0]


if __name__ == "__main__":
    B, T, S = 2, 16, 8
    num_heads, embed_dim, d_model = 2, 32, 32   # head_dim = 16

    key = jax.random.PRNGKey(0)
    kx, ke, kp = jax.random.split(key, 3)
    x = jax.random.normal(kx, (B, T, embed_dim), dtype=jnp.float32)
    enc = jax.random.normal(ke, (B, S, embed_dim), dtype=jnp.float32)
    params = make_params(kp, num_heads, embed_dim, d_model, lambda_init=0.8, layer_index=0)

    # block_t=8 -> two T-tiles per batch row, exercising the cached-K/V (t > 0) path.
    out = jax.block_until_ready(differential_mhca(x, enc, params, block_t=8))
    ref = jax.block_until_ready(reference(x, enc, params))

    assert out.shape == (B, T, embed_dim), out.shape
    # bf16 MXU operands (f32 accumulation) -> loosened tolerance vs. the f32 reference.
    assert jnp.allclose(out, ref, rtol=3e-2, atol=3e-2), \
        f"max abs err {jnp.max(jnp.abs(out - ref))}"

    print("KERNEL_OK")
</pallas_src>

<mosaic_0001>
module attributes {stable_mosaic.version = 11 : i64} {
  func.func @_fused_kernel(%arg0: i32, %arg1: i32, %arg2: memref<2xf32, #tpu.memory_space<smem>>, %arg3: memref<1x8x32xbf16, #tpu.memory_space<vmem>>, %arg4: memref<1x8x32xbf16, #tpu.memory_space<vmem>>, %arg5: memref<32x32xbf16, #tpu.memory_space<vmem>>, %arg6: memref<1x32xf32, #tpu.memory_space<vmem>>, %arg7: memref<32x32xbf16, #tpu.memory_space<vmem>>, %arg8: memref<1x32xf32, #tpu.memory_space<vmem>>, %arg9: memref<32x32xbf16, #tpu.memory_space<vmem>>, %arg10: memref<1x32xf32, #tpu.memory_space<vmem>>, %arg11: memref<1x32xf32, #tpu.memory_space<vmem>>, %arg12: memref<32x32xbf16, #tpu.memory_space<vmem>>, %arg13: memref<1x32xf32, #tpu.memory_space<vmem>>, %arg14: memref<1x8x32xf32, #tpu.memory_space<vmem>>, %arg15: memref<8x32xbf16, #tpu.memory_space<vmem>>, %arg16: memref<8x32xbf16, #tpu.memory_space<vmem>>, %arg17: memref<8x32xbf16, #tpu.memory_space<vmem>>) attributes {dimension_semantics = [#tpu.dimension_semantics<parallel>, #tpu.dimension_semantics<arbitrary>], iteration_bounds = array<i64: 2, 2>, scalar_prefetch = 1 : i64, scratch_operands = 3 : i64, tpu.core_type = #tpu.core_type<tc>, window_params = [{transform_indices = @transform_0, window_bounds = array<i64: 1, 8, 32>}, {transform_indices = @transform_1, window_bounds = array<i64: 1, 8, 32>}, {pipeline_mode = #tpu.pipeline_mode<synchronous>, transform_indices = @transform_2, window_bounds = array<i64: 32, 32>}, {pipeline_mode = #tpu.pipeline_mode<synchronous>, transform_indices = @transform_3, window_bounds = array<i64: 1, 32>}, {pipeline_mode = #tpu.pipeline_mode<synchronous>, transform_indices = @transform_4, window_bounds = array<i64: 32, 32>}, {pipeline_mode = #tpu.pipeline_mode<synchronous>, transform_indices = @transform_5, window_bounds = array<i64: 1, 32>}, {pipeline_mode = #tpu.pipeline_mode<synchronous>, transform_indices = @transform_6, window_bounds = array<i64: 32, 32>}, {pipeline_mode = #tpu.pipeline_mode<synchronous>, transform_indices = @transform_7, window_bounds = array<i64: 1, 32>}, {pipeline_mode = #tpu.pipeline_mode<synchronous>, transform_indices = @transform_8, window_bounds = array<i64: 1, 32>}, {pipeline_mode = #tpu.pipeline_mode<synchronous>, transform_indices = @transform_9, window_bounds = array<i64: 32, 32>}, {pipeline_mode = #tpu.pipeline_mode<synchronous>, transform_indices = @transform_10, window_bounds = array<i64: 1, 32>}, {transform_indices = @transform_11, window_bounds = array<i64: 1, 8, 32>}]} {
    %c0_i32 = arith.constant 0 : i32
    %0 = arith.cmpi eq, %arg1, %c0_i32 : i32
    %1 = arith.extui %0 : i1 to i32
    %c0_i32_0 = arith.constant 0 : i32
    %2 = arith.cmpi ne, %1, %c0_i32_0 : i32
    scf.if %2 {
      %c0_49 = arith.constant 0 : index
      %c0_50 = arith.constant 0 : index
      %c0_51 = arith.constant 0 : index
      %118 = vector.load %arg4[%c0_49, %c0_50, %c0_51] : memref<1x8x32xbf16, #tpu.memory_space<vmem>>, vector<1x8x32xbf16>
      %119 = vector.shape_cast %118 : vector<1x8x32xbf16> to vector<8x32xbf16>
      %c0_52 = arith.constant 0 : index
      %c0_53 = arith.constant 0 : index
      %120 = vector.load %arg7[%c0_52, %c0_53] : memref<32x32xbf16, #tpu.memory_space<vmem>>, vector<32x32xbf16>
      %cst_54 = arith.constant dense<0.000000e+00> : vector<8x32xf32>
      %121 = tpu.matmul %119, %120, %cst_54 {dimension_numbers = #tpu.dot_dimension_numbers<[1], [0], [0], [1], [0, 0, 1, 1], [], []>} : vector<8x32xbf16>, vector<32x32xbf16>, vector<8x32xf32> -> vector<8x32xf32>
      %c0_55 = arith.constant 0 : index
      %c0_56 = arith.constant 0 : index
      %122 = vector.load %arg8[%c0_55, %c0_56] : memref<1x32xf32, #tpu.memory_space<vmem>>, vector<1x32xf32>
      %123 = vector.broadcast %122 : vector<1x32xf32> to vector<8x32xf32>
      %124 = arith.addf %121, %123 : vector<8x32xf32>
      %c0_57 = arith.constant 0 : index
      %c0_58 = arith.constant 0 : index
      %125 = vector.load %arg9[%c0_57, %c0_58] : memref<32x32xbf16, #tpu.memory_space<vmem>>, vector<32x32xbf16>
      %cst_59 = arith.constant dense<0.000000e+00> : vector<8x32xf32>
      %126 = tpu.matmul %119, %125, %cst_59 {dimension_numbers = #tpu.dot_dimension_numbers<[1], [0], [0], [1], [0, 0, 1, 1], [], []>} : vector<8x32xbf16>, vector<32x32xbf16>, vector<8x32xf32> -> vector<8x32xf32>
      %c0_60 = arith.constant 0 : index
      %c0_61 = arith.constant 0 : index
      %127 = vector.load %arg10[%c0_60, %c0_61] : memref<1x32xf32, #tpu.memory_space<vmem>>, vector<1x32xf32>
      %128 = vector.broadcast %127 : vector<1x32xf32> to vector<8x32xf32>
      %129 = arith.addf %126, %128 : vector<8x32xf32>
      %130 = arith.truncf %124 : vector<8x32xf32> to vector<8x32xbf16>
      %c0_62 = arith.constant 0 : index
      %c0_63 = arith.constant 0 : index
      %131 = vector.load %arg15[%c0_62, %c0_63] : memref<8x32xbf16, #tpu.memory_space<vmem>>, vector<8x32xbf16>
      tpu.vector_store %arg15[%c0_62, %c0_63], %130 {strides = array<i32>} : memref<8x32xbf16, #tpu.memory_space<vmem>>, vector<8x32xbf16>,
      %132 = arith.truncf %129 : vector<8x32xf32> to vector<8x32xbf16>
      %c0_64 = arith.constant 0 : index
      %c0_65 = arith.constant 0 : index
      %133 = vector.load %arg16[%c0_64, %c0_65] : memref<8x32xbf16, #tpu.memory_space<vmem>>, vector<8x32xbf16>
      tpu.vector_store %arg16[%c0_64, %c0_65], %132 {strides = array<i32>} : memref<8x32xbf16, #tpu.memory_space<vmem>>, vector<8x32xbf16>,
    } else {
    }
    %c0 = arith.constant 0 : index
    %c0_1 = arith.constant 0 : index
    %c0_2 = arith.constant 0 : index
    %3 = vector.load %arg3[%c0, %c0_1, %c0_2] : memref<1x8x32xbf16, #tpu.memory_space<vmem>>, vector<1x8x32xbf16>
    %4 = vector.shape_cast %3 : vector<1x8x32xbf16> to vector<8x32xbf16>
    %c0_3 = arith.constant 0 : index
    %c0_4 = arith.constant 0 : index
    %5 = vector.load %arg5[%c0_3, %c0_4] : memref<32x32xbf16, #tpu.memory_space<vmem>>, vector<32x32xbf16>
    %cst = arith.constant dense<0.000000e+00> : vector<8x32xf32>
    %6 = tpu.matmul %4, %5, %cst {dimension_numbers = #tpu.dot_dimension_numbers<[1], [0], [0], [1], [0, 0, 1, 1], [], []>} : vector<8x32xbf16>, vector<32x32xbf16>, vector<8x32xf32> -> vector<8x32xf32>
    %c0_5 = arith.constant 0 : index
    %c0_6 = arith.constant 0 : index
    %7 = vector.load %arg6[%c0_5, %c0_6] : memref<1x32xf32, #tpu.memory_space<vmem>>, vector<1x32xf32>
    %8 = vector.broadcast %7 : vector<1x32xf32> to vector<8x32xf32>
    %9 = arith.addf %6, %8 : vector<8x32xf32>
    %10 = arith.truncf %9 : vector<8x32xf32> to vector<8x32xbf16>
    %c0_7 = arith.constant 0 : index
    %c0_8 = arith.constant 0 : index
    %11 = vector.load %arg15[%c0_7, %c0_8] : memref<8x32xbf16, #tpu.memory_space<vmem>>, vector<8x32xbf16>
    %c0_9 = arith.constant 0 : index
    %c0_10 = arith.constant 0 : index
    %12 = vector.load %arg16[%c0_9, %c0_10] : memref<8x32xbf16, #tpu.memory_space<vmem>>, vector<8x32xbf16>
    %13 = vector.extract_strided_slice %10 {offsets = [0, 0], sizes = [8, 16], strides = [1, 1]} : vector<8x32xbf16> to vector<8x16xbf16>
    %14 = vector.extract_strided_slice %11 {offsets = [0, 0], sizes = [8, 16], strides = [1, 1]} : vector<8x32xbf16> to vector<8x16xbf16>
    %15 = vector.extract_strided_slice %12 {offsets = [0, 0], sizes = [8, 16], strides = [1, 1]} : vector<8x32xbf16> to vector<8x16xbf16>
    %16 = vector.extract_strided_slice %13 {offsets = [0, 0], sizes = [8, 8], strides = [1, 1]} : vector<8x16xbf16> to vector<8x8xbf16>
    %17 = vector.extract_strided_slice %14 {offsets = [0, 0], sizes = [8, 8], strides = [1, 1]} : vector<8x16xbf16> to vector<8x8xbf16>
    %cst_11 = arith.constant dense<0.000000e+00> : vector<8x8xf32>
    %18 = tpu.matmul %16, %17, %cst_11 {dimension_numbers = #tpu.dot_dimension_numbers<[1], [1], [0], [0], [0, 0, 1, 0], [], []>} : vector<8x8xbf16>, vector<8x8xbf16>, vector<8x8xf32> -> vector<8x8xf32>
    %19 = vector.extract_strided_slice %13 {offsets = [0, 8], sizes = [8, 8], strides = [1, 1]} : vector<8x16xbf16> to vector<8x8xbf16>
    %20 = vector.extract_strided_slice %14 {offsets = [0, 8], sizes = [8, 8], strides = [1, 1]} : vector<8x16xbf16> to vector<8x8xbf16>
    %cst_12 = arith.constant dense<0.000000e+00> : vector<8x8xf32>
    %21 = tpu.matmul %19, %20, %cst_12 {dimension_numbers = #tpu.dot_dimension_numbers<[1], [1], [0], [0], [0, 0, 1, 0], [], []>} : vector<8x8xbf16>, vector<8x8xbf16>, vector<8x8xf32> -> vector<8x8xf32>
    %cst_13 = arith.constant dense<0xFF800000> : vector<8xf32>
    %22 = vector.multi_reduction <maximumf>, %18, %cst_13 [1] : vector<8x8xf32> to vector<8xf32>
    %23 = vector.shape_cast %22 : vector<8xf32> to vector<8x1xf32>
    %24 = vector.broadcast %23 : vector<8x1xf32> to vector<8x8xf32>
    %25 = arith.subf %18, %24 : vector<8x8xf32>
    %26 = math.exp %25 : vector<8x8xf32>
    %cst_14 = arith.constant dense<0.000000e+00> : vector<8xf32>
    %27 = vector.multi_reduction <add>, %26, %cst_14 [1] : vector<8x8xf32> to vector<8xf32>
    %28 = vector.shape_cast %27 : vector<8xf32> to vector<8x1xf32>
    %29 = vector.broadcast %28 : vector<8x1xf32> to vector<8x8xf32>
    %30 = arith.divf %26, %29 : vector<8x8xf32>
    %cst_15 = arith.constant dense<0xFF800000> : vector<8xf32>
    %31 = vector.multi_reduction <maximumf>, %21, %cst_15 [1] : vector<8x8xf32> to vector<8xf32>
    %32 = vector.shape_cast %31 : vector<8xf32> to vector<8x1xf32>
    %33 = vector.broadcast %32 : vector<8x1xf32> to vector<8x8xf32>
    %34 = arith.subf %21, %33 : vector<8x8xf32>
    %35 = math.exp %34 : vector<8x8xf32>
    %cst_16 = arith.constant dense<0.000000e+00> : vector<8xf32>
    %36 = vector.multi_reduction <add>, %35, %cst_16 [1] : vector<8x8xf32> to vector<8xf32>
    %37 = vector.shape_cast %36 : vector<8xf32> to vector<8x1xf32>
    %38 = vector.broadcast %37 : vector<8x1xf32> to vector<8x8xf32>
    %39 = arith.divf %35, %38 : vector<8x8xf32>
    %c0_17 = arith.constant 0 : index
    %40 = memref.load %arg2[%c0_17] : memref<2xf32, #tpu.memory_space<smem>>
    %41 = vector.broadcast %40 : f32 to vector<8x8xf32>
    %42 = arith.mulf %41, %39 : vector<8x8xf32>
    %43 = arith.subf %30, %42 : vector<8x8xf32>
    %44 = arith.truncf %43 : vector<8x8xf32> to vector<8x8xbf16>
    %cst_18 = arith.constant dense<0.000000e+00> : vector<8x16xf32>
    %45 = tpu.matmul %44, %15, %cst_18 {dimension_numbers = #tpu.dot_dimension_numbers<[1], [0], [0], [1], [0, 0, 1, 1], [], []>} : vector<8x8xbf16>, vector<8x16xbf16>, vector<8x16xf32> -> vector<8x16xf32>
    %46 = arith.mulf %45, %45 : vector<8x16xf32>
    %cst_19 = arith.constant dense<0.000000e+00> : vector<8xf32>
    %47 = vector.multi_reduction <add>, %46, %cst_19 [1] : vector<8x16xf32> to vector<8xf32>
    %48 = vector.shape_cast %47 : vector<8xf32> to vector<8x1xf32>
    %cst_20 = arith.constant 1.600000e+01 : f32
    %49 = vector.broadcast %cst_20 : f32 to vector<8x1xf32>
    %50 = arith.divf %48, %49 : vector<8x1xf32>
    %c0_21 = arith.constant 0 : index
    %c0_22 = arith.constant 0 : index
    %51 = vector.load %arg11[%c0_21, %c0_22] : memref<1x32xf32, #tpu.memory_space<vmem>>, vector<1x16xf32>
    %cst_23 = arith.constant 1.1920929E-7 : f32
    %52 = vector.broadcast %cst_23 : f32 to vector<8x1xf32>
    %53 = arith.addf %50, %52 : vector<8x1xf32>
    %54 = math.rsqrt %53 : vector<8x1xf32>
    %55 = vector.broadcast %54 : vector<8x1xf32> to vector<8x16xf32>
    %56 = arith.mulf %45, %55 : vector<8x16xf32>
    %57 = vector.broadcast %51 : vector<1x16xf32> to vector<8x16xf32>
    %58 = arith.mulf %56, %57 : vector<8x16xf32>
    %59 = arith.truncf %58 : vector<8x16xf32> to vector<8x16xbf16>
    %c0_24 = arith.constant 0 : index
    %c0_25 = arith.constant 0 : index
    %60 = vector.load %arg17[%c0_24, %c0_25] : memref<8x32xbf16, #tpu.memory_space<vmem>>, vector<8x16xbf16>
    tpu.vector_store %arg17[%c0_24, %c0_25], %59 {strides = array<i32>} : memref<8x32xbf16, #tpu.memory_space<vmem>>, vector<8x16xbf16>,
    %61 = vector.extract_strided_slice %10 {offsets = [0, 16], sizes = [8, 16], strides = [1, 1]} : vector<8x32xbf16> to vector<8x16xbf16>
    %62 = vector.extract_strided_slice %11 {offsets = [0, 16], sizes = [8, 16], strides = [1, 1]} : vector<8x32xbf16> to vector<8x16xbf16>
    %63 = vector.extract_strided_slice %12 {offsets = [0, 16], sizes = [8, 16], strides = [1, 1]} : vector<8x32xbf16> to vector<8x16xbf16>
    %64 = vector.extract_strided_slice %61 {offsets = [0, 0], sizes = [8, 8], strides = [1, 1]} : vector<8x16xbf16> to vector<8x8xbf16>
    %65 = vector.extract_strided_slice %62 {offsets = [0, 0], sizes = [8, 8], strides = [1, 1]} : vector<8x16xbf16> to vector<8x8xbf16>
    %cst_26 = arith.constant dense<0.000000e+00> : vector<8x8xf32>
    %66 = tpu.matmul %64, %65, %cst_26 {dimension_numbers = #tpu.dot_dimension_numbers<[1], [1], [0], [0], [0, 0, 1, 0], [], []>} : vector<8x8xbf16>, vector<8x8xbf16>, vector<8x8xf32> -> vector<8x8xf32>
    %67 = vector.extract_strided_slice %61 {offsets = [0, 8], sizes = [8, 8], strides = [1, 1]} : vector<8x16xbf16> to vector<8x8xbf16>
    %68 = vector.extract_strided_slice %62 {offsets = [0, 8], sizes = [8, 8], strides = [1, 1]} : vector<8x16xbf16> to vector<8x8xbf16>
    %cst_27 = arith.constant dense<0.000000e+00> : vector<8x8xf32>
    %69 = tpu.matmul %67, %68, %cst_27 {dimension_numbers = #tpu.dot_dimension_numbers<[1], [1], [0], [0], [0, 0, 1, 0], [], []>} : vector<8x8xbf16>, vector<8x8xbf16>, vector<8x8xf32> -> vector<8x8xf32>
    %cst_28 = arith.constant dense<0xFF800000> : vector<8xf32>
    %70 = vector.multi_reduction <maximumf>, %66, %cst_28 [1] : vector<8x8xf32> to vector<8xf32>
    %71 = vector.shape_cast %70 : vector<8xf32> to vector<8x1xf32>
    %72 = vector.broadcast %71 : vector<8x1xf32> to vector<8x8xf32>
    %73 = arith.subf %66, %72 : vector<8x8xf32>
    %74 = math.exp %73 : vector<8x8xf32>
    %cst_29 = arith.constant dense<0.000000e+00> : vector<8xf32>
    %75 = vector.multi_reduction <add>, %74, %cst_29 [1] : vector<8x8xf32> to vector<8xf32>
    %76 = vector.shape_cast %75 : vector<8xf32> to vector<8x1xf32>
    %77 = vector.broadcast %76 : vector<8x1xf32> to vector<8x8xf32>
    %78 = arith.divf %74, %77 : vector<8x8xf32>
    %cst_30 = arith.constant dense<0xFF800000> : vector<8xf32>
    %79 = vector.multi_reduction <maximumf>, %69, %cst_30 [1] : vector<8x8xf32> to vector<8xf32>
    %80 = vector.shape_cast %79 : vector<8xf32> to vector<8x1xf32>
    %81 = vector.broadcast %80 : vector<8x1xf32> to vector<8x8xf32>
    %82 = arith.subf %69, %81 : vector<8x8xf32>
    %83 = math.exp %82 : vector<8x8xf32>
    %cst_31 = arith.constant dense<0.000000e+00> : vector<8xf32>
    %84 = vector.multi_reduction <add>, %83, %cst_31 [1] : vector<8x8xf32> to vector<8xf32>
    %85 = vector.shape_cast %84 : vector<8xf32> to vector<8x1xf32>
    %86 = vector.broadcast %85 : vector<8x1xf32> to vector<8x8xf32>
    %87 = arith.divf %83, %86 : vector<8x8xf32>
    %c1 = arith.constant 1 : index
    %88 = memref.load %arg2[%c1] : memref<2xf32, #tpu.memory_space<smem>>
    %89 = vector.broadcast %88 : f32 to vector<8x8xf32>
    %90 = arith.mulf %89, %87 : vector<8x8xf32>
    %91 = arith.subf %78, %90 : vector<8x8xf32>
    %92 = arith.truncf %91 : vector<8x8xf32> to vector<8x8xbf16>
    %cst_32 = arith.constant dense<0.000000e+00> : vector<8x16xf32>
    %93 = tpu.matmul %92, %63, %cst_32 {dimension_numbers = #tpu.dot_dimension_numbers<[1], [0], [0], [1], [0, 0, 1, 1], [], []>} : vector<8x8xbf16>, vector<8x16xbf16>, vector<8x16xf32> -> vector<8x16xf32>
    %94 = arith.mulf %93, %93 : vector<8x16xf32>
    %cst_33 = arith.constant dense<0.000000e+00> : vector<8xf32>
    %95 = vector.multi_reduction <add>, %94, %cst_33 [1] : vector<8x16xf32> to vector<8xf32>
    %96 = vector.shape_cast %95 : vector<8xf32> to vector<8x1xf32>
    %cst_34 = arith.constant 1.600000e+01 : f32
    %97 = vector.broadcast %cst_34 : f32 to vector<8x1xf32>
    %98 = arith.divf %96, %97 : vector<8x1xf32>
    %c0_35 = arith.constant 0 : index
    %c16 = arith.constant 16 : index
    %99 = vector.load %arg11[%c0_35, %c16] : memref<1x32xf32, #tpu.memory_space<vmem>>, vector<1x16xf32>
    %cst_36 = arith.constant 1.1920929E-7 : f32
    %100 = vector.broadcast %cst_36 : f32 to vector<8x1xf32>
    %101 = arith.addf %98, %100 : vector<8x1xf32>
    %102 = math.rsqrt %101 : vector<8x1xf32>
    %103 = vector.broadcast %102 : vector<8x1xf32> to vector<8x16xf32>
    %104 = arith.mulf %93, %103 : vector<8x16xf32>
    %105 = vector.broadcast %99 : vector<1x16xf32> to vector<8x16xf32>
    %106 = arith.mulf %104, %105 : vector<8x16xf32>
    %107 = arith.truncf %106 : vector<8x16xf32> to vector<8x16xbf16>
    %c0_37 = arith.constant 0 : index
    %c16_38 = arith.constant 16 : index
    %108 = vector.load %arg17[%c0_37, %c16_38] : memref<8x32xbf16, #tpu.memory_space<vmem>>, vector<8x16xbf16>
    tpu.vector_store %arg17[%c0_37, %c16_38], %107 {strides = array<i32>} : memref<8x32xbf16, #tpu.memory_space<vmem>>, vector<8x16xbf16>,
    %c0_39 = arith.constant 0 : index
    %c0_40 = arith.constant 0 : index
    %109 = vector.load %arg17[%c0_39, %c0_40] : memref<8x32xbf16, #tpu.memory_space<vmem>>, vector<8x32xbf16>
    %c0_41 = arith.constant 0 : index
    %c0_42 = arith.constant 0 : index
    %110 = vector.load %arg12[%c0_41, %c0_42] : memref<32x32xbf16, #tpu.memory_space<vmem>>, vector<32x32xbf16>
    %cst_43 = arith.constant dense<0.000000e+00> : vector<8x32xf32>
    %111 = tpu.matmul %109, %110, %cst_43 {dimension_numbers = #tpu.dot_dimension_numbers<[1], [0], [0], [1], [0, 0, 1, 1], [], []>} : vector<8x32xbf16>, vector<32x32xbf16>, vector<8x32xf32> -> vector<8x32xf32>
    %c0_44 = arith.constant 0 : index
    %c0_45 = arith.constant 0 : index
    %112 = vector.load %arg13[%c0_44, %c0_45] : memref<1x32xf32, #tpu.memory_space<vmem>>, vector<1x32xf32>
    %113 = vector.broadcast %112 : vector<1x32xf32> to vector<8x32xf32>
    %114 = arith.addf %111, %113 : vector<8x32xf32>
    %c0_46 = arith.constant 0 : index
    %c0_47 = arith.constant 0 : index
    %c0_48 = arith.constant 0 : index
    %115 = vector.load %arg14[%c0_46, %c0_47, %c0_48] : memref<1x8x32xf32, #tpu.memory_space<vmem>>, vector<1x8x32xf32>
    %116 = vector.shape_cast %115 : vector<1x8x32xf32> to vector<8x32xf32>
    %117 = vector.shape_cast %114 : vector<8x32xf32> to vector<1x8x32xf32>
    tpu.vector_store %arg14[%c0_46, %c0_47, %c0_48], %117 {strides = array<i32>} : memref<1x8x32xf32, #tpu.memory_space<vmem>>, vector<1x8x32xf32>,
    return
  }
  func.func @transform_0(%arg0: i32, %arg1: i32, %arg2: memref<2xf32, #tpu.memory_space<smem>>) -> (i32, i32, i32) {
    %c0_i32 = arith.constant 0 : i32
    %c0_i32_0 = arith.constant 0 : i32
    return %arg0, %arg1, %c0_i32 : i32, i32, i32
  }
  func.func @transform_1(%arg0: i32, %arg1: i32, %arg2: memref<2xf32, #tpu.memory_space<smem>>) -> (i32, i32, i32) {
    %c0_i32 = arith.constant 0 : i32
    %c0_i32_0 = arith.constant 0 : i32
    %c0_i32_1 = arith.constant 0 : i32
    return %arg0, %c0_i32, %c0_i32_0 : i32, i32, i32
  }
  func.func @transform_2(%arg0: i32, %arg1: i32, %arg2: memref<2xf32, #tpu.memory_space<smem>>) -> (i32, i32) {
    %c0_i32 = arith.constant 0 : i32
    %c0_i32_0 = arith.constant 0 : i32
    %c0_i32_1 = arith.constant 0 : i32
    return %c0_i32, %c0_i32_0 : i32, i32
  }
  func.func @transform_3(%arg0: i32, %arg1: i32, %arg2: memref<2xf32, #tpu.memory_space<smem>>) -> (i32, i32) {
    %c0_i32 = arith.constant 0 : i32
    %c0_i32_0 = arith.constant 0 : i32
    %c0_i32_1 = arith.constant 0 : i32
    return %c0_i32, %c0_i32_0 : i32, i32
  }
  func.func @transform_4(%arg0: i32, %arg1: i32, %arg2: memref<2xf32, #tpu.memory_space<smem>>) -> (i32, i32) {
    %c0_i32 = arith.constant 0 : i32
    %c0_i32_0 = arith.constant 0 : i32
    %c0_i32_1 = arith.constant 0 : i32
    return %c0_i32, %c0_i32_0 : i32, i32
  }
  func.func @transform_5(%arg0: i32, %arg1: i32, %arg2: memref<2xf32, #tpu.memory_space<smem>>) -> (i32, i32) {
    %c0_i32 = arith.constant 0 : i32
    %c0_i32_0 = arith.constant 0 : i32
    %c0_i32_1 = arith.constant 0 : i32
    return %c0_i32, %c0_i32_0 : i32, i32
  }
  func.func @transform_6(%arg0: i32, %arg1: i32, %arg2: memref<2xf32, #tpu.memory_space<smem>>) -> (i32, i32) {
    %c0_i32 = arith.constant 0 : i32
    %c0_i32_0 = arith.constant 0 : i32
    %c0_i32_1 = arith.constant 0 : i32
    return %c0_i32, %c0_i32_0 : i32, i32
  }
  func.func @transform_7(%arg0: i32, %arg1: i32, %arg2: memref<2xf32, #tpu.memory_space<smem>>) -> (i32, i32) {
    %c0_i32 = arith.constant 0 : i32
    %c0_i32_0 = arith.constant 0 : i32
    %c0_i32_1 = arith.constant 0 : i32
    return %c0_i32, %c0_i32_0 : i32, i32
  }
  func.func @transform_8(%arg0: i32, %arg1: i32, %arg2: memref<2xf32, #tpu.memory_space<smem>>) -> (i32, i32) {
    %c0_i32 = arith.constant 0 : i32
    %c0_i32_0 = arith.constant 0 : i32
    %c0_i32_1 = arith.constant 0 : i32
    return %c0_i32, %c0_i32_0 : i32, i32
  }
  func.func @transform_9(%arg0: i32, %arg1: i32, %arg2: memref<2xf32, #tpu.memory_space<smem>>) -> (i32, i32) {
    %c0_i32 = arith.constant 0 : i32
    %c0_i32_0 = arith.constant 0 : i32
    %c0_i32_1 = arith.constant 0 : i32
    return %c0_i32, %c0_i32_0 : i32, i32
  }
  func.func @transform_10(%arg0: i32, %arg1: i32, %arg2: memref<2xf32, #tpu.memory_space<smem>>) -> (i32, i32) {
    %c0_i32 = arith.constant 0 : i32
    %c0_i32_0 = arith.constant 0 : i32
    %c0_i32_1 = arith.constant 0 : i32
    return %c0_i32, %c0_i32_0 : i32, i32
  }
  func.func @transform_11(%arg0: i32, %arg1: i32, %arg2: memref<2xf32, #tpu.memory_space<smem>>) -> (i32, i32, i32) {
    %c0_i32 = arith.constant 0 : i32
    %c0_i32_0 = arith.constant 0 : i32
    return %arg0, %arg1, %c0_i32 : i32, i32, i32
  }
}

module attributes {stable_mosaic.version = 11 : i64} {
  func.func @_fused_kernel(%arg0: i32, %arg1: i32, %arg2: memref<2xf32, #tpu.memory_space<smem>>, %arg3: memref<1x8x32xbf16, #tpu.memory_space<vmem>>, %arg4: memref<1x8x32xbf16, #tpu.memory_space<vmem>>, %arg5: memref<32x32xbf16, #tpu.memory_space<vmem>>, %arg6: memref<1x32xf32, #tpu.memory_space<vmem>>, %arg7: memref<32x32xbf16, #tpu.memory_space<vmem>>, %arg8: memref<1x32xf32, #tpu.memory_space<vmem>>, %arg9: memref<32x32xbf16, #tpu.memory_space<vmem>>, %arg10: memref<1x32xf32, #tpu.memory_space<vmem>>, %arg11: memref<1x32xf32, #tpu.memory_space<vmem>>, %arg12: memref<32x32xbf16, #tpu.memory_space<vmem>>, %arg13: memref<1x32xf32, #tpu.memory_space<vmem>>, %arg14: memref<1x8x32xf32, #tpu.memory_space<vmem>>, %arg15: memref<8x32xbf16, #tpu.memory_space<vmem>>, %arg16: memref<8x32xbf16, #tpu.memory_space<vmem>>, %arg17: memref<8x32xbf16, #tpu.memory_space<vmem>>) attributes {dimension_semantics = [#tpu.dimension_semantics<parallel>, #tpu.dimension_semantics<arbitrary>], iteration_bounds = array<i64: 2, 2>, scalar_prefetch = 1 : i64, scratch_operands = 3 : i64, tpu.core_type = #tpu.core_type<tc>, window_params = [{transform_indices = @transform_0, window_bounds = array<i64: 1, 8, 32>}, {transform_indices = @transform_1, window_bounds = array<i64: 1, 8, 32>}, {pipeline_mode = #tpu.pipeline_mode<synchronous>, transform_indices = @transform_2, window_bounds = array<i64: 32, 32>}, {pipeline_mode = #tpu.pipeline_mode<synchronous>, transform_indices = @transform_3, window_bounds = array<i64: 1, 32>}, {pipeline_mode = #tpu.pipeline_mode<synchronous>, transform_indices = @transform_4, window_bounds = array<i64: 32, 32>}, {pipeline_mode = #tpu.pipeline_mode<synchronous>, transform_indices = @transform_5, window_bounds = array<i64: 1, 32>}, {pipeline_mode = #tpu.pipeline_mode<synchronous>, transform_indices = @transform_6, window_bounds = array<i64: 32, 32>}, {pipeline_mode = #tpu.pipeline_mode<synchronous>, transform_indices = @transform_7, window_bounds = array<i64: 1, 32>}, {pipeline_mode = #tpu.pipeline_mode<synchronous>, transform_indices = @transform_8, window_bounds = array<i64: 1, 32>}, {pipeline_mode = #tpu.pipeline_mode<synchronous>, transform_indices = @transform_9, window_bounds = array<i64: 32, 32>}, {pipeline_mode = #tpu.pipeline_mode<synchronous>, transform_indices = @transform_10, window_bounds = array<i64: 1, 32>}, {transform_indices = @transform_11, window_bounds = array<i64: 1, 8, 32>}]} {
    %c0_i32 = arith.constant 0 : i32
    %0 = arith.cmpi eq, %arg1, %c0_i32 : i32
    %1 = arith.extui %0 : i1 to i32
    %c0_i32_0 = arith.constant 0 : i32
    %2 = arith.cmpi ne, %1, %c0_i32_0 : i32
    scf.if %2 {
      %c0_49 = arith.constant 0 : index
      %c0_50 = arith.constant 0 : index
      %c0_51 = arith.constant 0 : index
      %118 = vector.load %arg4[%c0_49, %c0_50, %c0_51] : memref<1x8x32xbf16, #tpu.memory_space<vmem>>, vector<1x8x32xbf16>
      %119 = vector.shape_cast %118 : vector<1x8x32xbf16> to vector<8x32xbf16>
      %c0_52 = arith.constant 0 : index
      %c0_53 = arith.constant 0 : index
      %120 = vector.load %arg7[%c0_52, %c0_53] : memref<32x32xbf16, #tpu.memory_space<vmem>>, vector<32x32xbf16>
      %cst_54 = arith.constant dense<0.000000e+00> : vector<8x32xf32>
      %121 = tpu.matmul %119, %120, %cst_54 {dimension_numbers = #tpu.dot_dimension_numbers<[1], [0], [0], [1], [0, 0, 1, 1], [], []>} : vector<8x32xbf16>, vector<32x32xbf16>, vector<8x32xf32> -> vector<8x32xf32>
      %c0_55 = arith.constant 0 : index
      %c0_56 = arith.constant 0 : index
      %122 = vector.load %arg8[%c0_55, %c0_56] : memref<1x32xf32, #tpu.memory_space<vmem>>, vector<1x32xf32>
      %123 = vector.broadcast %122 : vector<1x32xf32> to vector<8x32xf32>
      %124 = arith.addf %121, %123 : vector<8x32xf32>
      %c0_57 = arith.constant 0 : index
      %c0_58 = arith.constant 0 : index
      %125 = vector.load %arg9[%c0_57, %c0_58] : memref<32x32xbf16, #tpu.memory_space<vmem>>, vector<32x32xbf16>
      %cst_59 = arith.constant dense<0.000000e+00> : vector<8x32xf32>
      %126 = tpu.matmul %119, %125, %cst_59 {dimension_numbers = #tpu.dot_dimension_numbers<[1], [0], [0], [1], [0, 0, 1, 1], [], []>} : vector<8x32xbf16>, vector<32x32xbf16>, vector<8x32xf32> -> vector<8x32xf32>
      %c0_60 = arith.constant 0 : index
      %c0_61 = arith.constant 0 : index
      %127 = vector.load %arg10[%c0_60, %c0_61] : memref<1x32xf32, #tpu.memory_space<vmem>>, vector<1x32xf32>
      %128 = vector.broadcast %127 : vector<1x32xf32> to vector<8x32xf32>
      %129 = arith.addf %126, %128 : vector<8x32xf32>
      %130 = arith.truncf %124 : vector<8x32xf32> to vector<8x32xbf16>
      %c0_62 = arith.constant 0 : index
      %c0_63 = arith.constant 0 : index
      %131 = vector.load %arg15[%c0_62, %c0_63] : memref<8x32xbf16, #tpu.memory_space<vmem>>, vector<8x32xbf16>
      tpu.vector_store %arg15[%c0_62, %c0_63], %130 {strides = array<i32>} : memref<8x32xbf16, #tpu.memory_space<vmem>>, vector<8x32xbf16>,
      %132 = arith.truncf %129 : vector<8x32xf32> to vector<8x32xbf16>
      %c0_64 = arith.constant 0 : index
      %c0_65 = arith.constant 0 : index
      %133 = vector.load %arg16[%c0_64, %c0_65] : memref<8x32xbf16, #tpu.memory_space<vmem>>, vector<8x32xbf16>
      tpu.vector_store %arg16[%c0_64, %c0_65], %132 {strides = array<i32>} : memref<8x32xbf16, #tpu.memory_space<vmem>>, vector<8x32xbf16>,
    } else {
    }
    %c0 = arith.constant 0 : index
    %c0_1 = arith.constant 0 : index
    %c0_2 = arith.constant 0 : index
    %3 = vector.load %arg3[%c0, %c0_1, %c0_2] : memref<1x8x32xbf16, #tpu.memory_space<vmem>>, vector<1x8x32xbf16>
    %4 = vector.shape_cast %3 : vector<1x8x32xbf16> to vector<8x32xbf16>
    %c0_3 = arith.constant 0 : index
    %c0_4 = arith.constant 0 : index
    %5 = vector.load %arg5[%c0_3, %c0_4] : memref<32x32xbf16, #tpu.memory_space<vmem>>, vector<32x32xbf16>
    %cst = arith.constant dense<0.000000e+00> : vector<8x32xf32>
    %6 = tpu.matmul %4, %5, %cst {dimension_numbers = #tpu.dot_dimension_numbers<[1], [0], [0], [1], [0, 0, 1, 1], [], []>} : vector<8x32xbf16>, vector<32x32xbf16>, vector<8x32xf32> -> vector<8x32xf32>
    %c0_5 = arith.constant 0 : index
    %c0_6 = arith.constant 0 : index
    %7 = vector.load %arg6[%c0_5, %c0_6] : memref<1x32xf32, #tpu.memory_space<vmem>>, vector<1x32xf32>
    %8 = vector.broadcast %7 : vector<1x32xf32> to vector<8x32xf32>
    %9 = arith.addf %6, %8 : vector<8x32xf32>
    %10 = arith.truncf %9 : vector<8x32xf32> to vector<8x32xbf16>
    %c0_7 = arith.constant 0 : index
    %c0_8 = arith.constant 0 : index
    %11 = vector.load %arg15[%c0_7, %c0_8] : memref<8x32xbf16, #tpu.memory_space<vmem>>, vector<8x32xbf16>
    %c0_9 = arith.constant 0 : index
    %c0_10 = arith.constant 0 : index
    %12 = vector.load %arg16[%c0_9, %c0_10] : memref<8x32xbf16, #tpu.memory_space<vmem>>, vector<8x32xbf16>
    %13 = vector.extract_strided_slice %10 {offsets = [0, 0], sizes = [8, 16], strides = [1, 1]} : vector<8x32xbf16> to vector<8x16xbf16>
    %14 = vector.extract_strided_slice %11 {offsets = [0, 0], sizes = [8, 16], strides = [1, 1]} : vector<8x32xbf16> to vector<8x16xbf16>
    %15 = vector.extract_strided_slice %12 {offsets = [0, 0], sizes = [8, 16], strides = [1, 1]} : vector<8x32xbf16> to vector<8x16xbf16>
    %16 = vector.extract_strided_slice %13 {offsets = [0, 0], sizes = [8, 8], strides = [1, 1]} : vector<8x16xbf16> to vector<8x8xbf16>
    %17 = vector.extract_strided_slice %14 {offsets = [0, 0], sizes = [8, 8], strides = [1, 1]} : vector<8x16xbf16> to vector<8x8xbf16>
    %cst_11 = arith.constant dense<0.000000e+00> : vector<8x8xf32>
    %18 = tpu.matmul %16, %17, %cst_11 {dimension_numbers = #tpu.dot_dimension_numbers<[1], [1], [0], [0], [0, 0, 1, 0], [], []>} : vector<8x8xbf16>, vector<8x8xbf16>, vector<8x8xf32> -> vector<8x8xf32>
    %19 = vector.extract_strided_slice %13 {offsets = [0, 8], sizes = [8, 8], strides = [1, 1]} : vector<8x16xbf16> to vector<8x8xbf16>
    %20 = vector.extract_strided_slice %14 {offsets = [0, 8], sizes = [8, 8], strides = [1, 1]} : vector<8x16xbf16> to vector<8x8xbf16>
    %cst_12 = arith.constant dense<0.000000e+00> : vector<8x8xf32>
    %21 = tpu.matmul %19, %20, %cst_12 {dimension_numbers = #tpu.dot_dimension_numbers<[1], [1], [0], [0], [0, 0, 1, 0], [], []>} : vector<8x8xbf16>, vector<8x8xbf16>, vector<8x8xf32> -> vector<8x8xf32>
    %cst_13 = arith.constant dense<0xFF800000> : vector<8xf32>
    %22 = vector.multi_reduction <maximumf>, %18, %cst_13 [1] : vector<8x8xf32> to vector<8xf32>
    %23 = vector.shape_cast %22 : vector<8xf32> to vector<8x1xf32>
    %24 = vector.broadcast %23 : vector<8x1xf32> to vector<8x8xf32>
    %25 = arith.subf %18, %24 : vector<8x8xf32>
    %26 = math.exp %25 : vector<8x8xf32>
    %cst_14 = arith.constant dense<0.000000e+00> : vector<8xf32>
    %27 = vector.multi_reduction <add>, %26, %cst_14 [1] : vector<8x8xf32> to vector<8xf32>
    %28 = vector.shape_cast %27 : vector<8xf32> to vector<8x1xf32>
    %29 = vector.broadcast %28 : vector<8x1xf32> to vector<8x8xf32>
    %30 = arith.divf %26, %29 : vector<8x8xf32>
    %cst_15 = arith.constant dense<0xFF800000> : vector<8xf32>
    %31 = vector.multi_reduction <maximumf>, %21, %cst_15 [1] : vector<8x8xf32> to vector<8xf32>
    %32 = vector.shape_cast %31 : vector<8xf32> to vector<8x1xf32>
    %33 = vector.broadcast %32 : vector<8x1xf32> to vector<8x8xf32>
    %34 = arith.subf %21, %33 : vector<8x8xf32>
    %35 = math.exp %34 : vector<8x8xf32>
    %cst_16 = arith.constant dense<0.000000e+00> : vector<8xf32>
    %36 = vector.multi_reduction <add>, %35, %cst_16 [1] : vector<8x8xf32> to vector<8xf32>
    %37 = vector.shape_cast %36 : vector<8xf32> to vector<8x1xf32>
    %38 = vector.broadcast %37 : vector<8x1xf32> to vector<8x8xf32>
    %39 = arith.divf %35, %38 : vector<8x8xf32>
    %c0_17 = arith.constant 0 : index
    %40 = memref.load %arg2[%c0_17] : memref<2xf32, #tpu.memory_space<smem>>
    %41 = vector.broadcast %40 : f32 to vector<8x8xf32>
    %42 = arith.mulf %41, %39 : vector<8x8xf32>
    %43 = arith.subf %30, %42 : vector<8x8xf32>
    %44 = arith.truncf %43 : vector<8x8xf32> to vector<8x8xbf16>
    %cst_18 = arith.constant dense<0.000000e+00> : vector<8x16xf32>
    %45 = tpu.matmul %44, %15, %cst_18 {dimension_numbers = #tpu.dot_dimension_numbers<[1], [0], [0], [1], [0, 0, 1, 1], [], []>} : vector<8x8xbf16>, vector<8x16xbf16>, vector<8x16xf32> -> vector<8x16xf32>
    %46 = arith.mulf %45, %45 : vector<8x16xf32>
    %cst_19 = arith.constant dense<0.000000e+00> : vector<8xf32>
    %47 = vector.multi_reduction <add>, %46, %cst_19 [1] : vector<8x16xf32> to vector<8xf32>
    %48 = vector.shape_cast %47 : vector<8xf32> to vector<8x1xf32>
    %cst_20 = arith.constant 1.600000e+01 : f32
    %49 = vector.broadcast %cst_20 : f32 to vector<8x1xf32>
    %50 = arith.divf %48, %49 : vector<8x1xf32>
    %c0_21 = arith.constant 0 : index
    %c0_22 = arith.constant 0 : index
    %51 = vector.load %arg11[%c0_21, %c0_22] : memref<1x32xf32, #tpu.memory_space<vmem>>, vector<1x16xf32>
    %cst_23 = arith.constant 1.1920929E-7 : f32
    %52 = vector.broadcast %cst_23 : f32 to vector<8x1xf32>
    %53 = arith.addf %50, %52 : vector<8x1xf32>
    %54 = math.rsqrt %53 : vector<8x1xf32>
    %55 = vector.broadcast %54 : vector<8x1xf32> to vector<8x16xf32>
    %56 = arith.mulf %45, %55 : vector<8x16xf32>
    %57 = vector.broadcast %51 : vector<1x16xf32> to vector<8x16xf32>
    %58 = arith.mulf %56, %57 : vector<8x16xf32>
    %59 = arith.truncf %58 : vector<8x16xf32> to vector<8x16xbf16>
    %c0_24 = arith.constant 0 : index
    %c0_25 = arith.constant 0 : index
    %60 = vector.load %arg17[%c0_24, %c0_25] : memref<8x32xbf16, #tpu.memory_space<vmem>>, vector<8x16xbf16>
    tpu.vector_store %arg17[%c0_24, %c0_25], %59 {strides = array<i32>} : memref<8x32xbf16, #tpu.memory_space<vmem>>, vector<8x16xbf16>,
    %61 = vector.extract_strided_slice %10 {offsets = [0, 16], sizes = [8, 16], strides = [1, 1]} : vector<8x32xbf16> to vector<8x16xbf16>
    %62 = vector.extract_strided_slice %11 {offsets = [0, 16], sizes = [8, 16], strides = [1, 1]} : vector<8x32xbf16> to vector<8x16xbf16>
    %63 = vector.extract_strided_slice %12 {offsets = [0, 16], sizes = [8, 16], strides = [1, 1]} : vector<8x32xbf16> to vector<8x16xbf16>
    %64 = vector.extract_strided_slice %61 {offsets = [0, 0], sizes = [8, 8], strides = [1, 1]} : vector<8x16xbf16> to vector<8x8xbf16>
    %65 = vector.extract_strided_slice %62 {offsets = [0, 0], sizes = [8, 8], strides = [1, 1]} : vector<8x16xbf16> to vector<8x8xbf16>
    %cst_26 = arith.constant dense<0.000000e+00> : vector<8x8xf32>
    %66 = tpu.matmul %64, %65, %cst_26 {dimension_numbers = #tpu.dot_dimension_numbers<[1], [1], [0], [0], [0, 0, 1, 0], [], []>} : vector<8x8xbf16>, vector<8x8xbf16>, vector<8x8xf32> -> vector<8x8xf32>
    %67 = vector.extract_strided_slice %61 {offsets = [0, 8], sizes = [8, 8], strides = [1, 1]} : vector<8x16xbf16> to vector<8x8xbf16>
    %68 = vector.extract_strided_slice %62 {offsets = [0, 8], sizes = [8, 8], strides = [1, 1]} : vector<8x16xbf16> to vector<8x8xbf16>
    %cst_27 = arith.constant dense<0.000000e+00> : vector<8x8xf32>
    %69 = tpu.matmul %67, %68, %cst_27 {dimension_numbers = #tpu.dot_dimension_numbers<[1], [1], [0], [0], [0, 0, 1, 0], [], []>} : vector<8x8xbf16>, vector<8x8xbf16>, vector<8x8xf32> -> vector<8x8xf32>
    %cst_28 = arith.constant dense<0xFF800000> : vector<8xf32>
    %70 = vector.multi_reduction <maximumf>, %66, %cst_28 [1] : vector<8x8xf32> to vector<8xf32>
    %71 = vector.shape_cast %70 : vector<8xf32> to vector<8x1xf32>
    %72 = vector.broadcast %71 : vector<8x1xf32> to vector<8x8xf32>
    %73 = arith.subf %66, %72 : vector<8x8xf32>
    %74 = math.exp %73 : vector<8x8xf32>
    %cst_29 = arith.constant dense<0.000000e+00> : vector<8xf32>
    %75 = vector.multi_reduction <add>, %74, %cst_29 [1] : vector<8x8xf32> to vector<8xf32>
    %76 = vector.shape_cast %75 : vector<8xf32> to vector<8x1xf32>
    %77 = vector.broadcast %76 : vector<8x1xf32> to vector<8x8xf32>
    %78 = arith.divf %74, %77 : vector<8x8xf32>
    %cst_30 = arith.constant dense<0xFF800000> : vector<8xf32>
    %79 = vector.multi_reduction <maximumf>, %69, %cst_30 [1] : vector<8x8xf32> to vector<8xf32>
    %80 = vector.shape_cast %79 : vector<8xf32> to vector<8x1xf32>
    %81 = vector.broadcast %80 : vector<8x1xf32> to vector<8x8xf32>
    %82 = arith.subf %69, %81 : vector<8x8xf32>
    %83 = math.exp %82 : vector<8x8xf32>
    %cst_31 = arith.constant dense<0.000000e+00> : vector<8xf32>
    %84 = vector.multi_reduction <add>, %83, %cst_31 [1] : vector<8x8xf32> to vector<8xf32>
    %85 = vector.shape_cast %84 : vector<8xf32> to vector<8x1xf32>
    %86 = vector.broadcast %85 : vector<8x1xf32> to vector<8x8xf32>
    %87 = arith.divf %83, %86 : vector<8x8xf32>
    %c1 = arith.constant 1 : index
    %88 = memref.load %arg2[%c1] : memref<2xf32, #tpu.memory_space<smem>>
    %89 = vector.broadcast %88 : f32 to vector<8x8xf32>
    %90 = arith.mulf %89, %87 : vector<8x8xf32>
    %91 = arith.subf %78, %90 : vector<8x8xf32>
    %92 = arith.truncf %91 : vector<8x8xf32> to vector<8x8xbf16>
    %cst_32 = arith.constant dense<0.000000e+00> : vector<8x16xf32>
    %93 = tpu.matmul %92, %63, %cst_32 {dimension_numbers = #tpu.dot_dimension_numbers<[1], [0], [0], [1], [0, 0, 1, 1], [], []>} : vector<8x8xbf16>, vector<8x16xbf16>, vector<8x16xf32> -> vector<8x16xf32>
    %94 = arith.mulf %93, %93 : vector<8x16xf32>
    %cst_33 = arith.constant dense<0.000000e+00> : vector<8xf32>
    %95 = vector.multi_reduction <add>, %94, %cst_33 [1] : vector<8x16xf32> to vector<8xf32>
    %96 = vector.shape_cast %95 : vector<8xf32> to vector<8x1xf32>
    %cst_34 = arith.constant 1.600000e+01 : f32
    %97 = vector.broadcast %cst_34 : f32 to vector<8x1xf32>
    %98 = arith.divf %96, %97 : vector<8x1xf32>
    %c0_35 = arith.constant 0 : index
    %c16 = arith.constant 16 : index
    %99 = vector.load %arg11[%c0_35, %c16] : memref<1x32xf32, #tpu.memory_space<vmem>>, vector<1x16xf32>
    %cst_36 = arith.constant 1.1920929E-7 : f32
    %100 = vector.broadcast %cst_36 : f32 to vector<8x1xf32>
    %101 = arith.addf %98, %100 : vector<8x1xf32>
    %102 = math.rsqrt %101 : vector<8x1xf32>
    %103 = vector.broadcast %102 : vector<8x1xf32> to vector<8x16xf32>
    %104 = arith.mulf %93, %103 : vector<8x16xf32>
    %105 = vector.broadcast %99 : vector<1x16xf32> to vector<8x16xf32>
    %106 = arith.mulf %104, %105 : vector<8x16xf32>
    %107 = arith.truncf %106 : vector<8x16xf32> to vector<8x16xbf16>
    %c0_37 = arith.constant 0 : index
    %c16_38 = arith.constant 16 : index
    %108 = vector.load %arg17[%c0_37, %c16_38] : memref<8x32xbf16, #tpu.memory_space<vmem>>, vector<8x16xbf16>
    tpu.vector_store %arg17[%c0_37, %c16_38], %107 {strides = array<i32>} : memref<8x32xbf16, #tpu.memory_space<vmem>>, vector<8x16xbf16>,
    %c0_39 = arith.constant 0 : index
    %c0_40 = arith.constant 0 : index
    %109 = vector.load %arg17[%c0_39, %c0_40] : memref<8x32xbf16, #tpu.memory_space<vmem>>, vector<8x32xbf16>
    %c0_41 = arith.constant 0 : index
    %c0_42 = arith.constant 0 : index
    %110 = vector.load %arg12[%c0_41, %c0_42] : memref<32x32xbf16, #tpu.memory_space<vmem>>, vector<32x32xbf16>
    %cst_43 = arith.constant dense<0.000000e+00> : vector<8x32xf32>
    %111 = tpu.matmul %109, %110, %cst_43 {dimension_numbers = #tpu.dot_dimension_numbers<[1], [0], [0], [1], [0, 0, 1, 1], [], []>} : vector<8x32xbf16>, vector<32x32xbf16>, vector<8x32xf32> -> vector<8x32xf32>
    %c0_44 = arith.constant 0 : index
    %c0_45 = arith.constant 0 : index
    %112 = vector.load %arg13[%c0_44, %c0_45] : memref<1x32xf32, #tpu.memory_space<vmem>>, vector<1x32xf32>
    %113 = vector.broadcast %112 : vector<1x32xf32> to vector<8x32xf32>
    %114 = arith.addf %111, %113 : vector<8x32xf32>
    %c0_46 = arith.constant 0 : index
    %c0_47 = arith.constant 0 : index
    %c0_48 = arith.constant 0 : index
    %115 = vector.load %arg14[%c0_46, %c0_47, %c0_48] : memref<1x8x32xf32, #tpu.memory_space<vmem>>, vector<1x8x32xf32>
    %116 = vector.shape_cast %115 : vector<1x8x32xf32> to vector<8x32xf32>
    %117 = vector.shape_cast %114 : vector<8x32xf32> to vector<1x8x32xf32>
    tpu.vector_store %arg14[%c0_46, %c0_47, %c0_48], %117 {strides = array<i32>} : memref<1x8x32xf32, #tpu.memory_space<vmem>>, vector<1x8x32xf32>,
    return
  }
  func.func @transform_0(%arg0: i32, %arg1: i32, %arg2: memref<2xf32, #tpu.memory_space<smem>>) -> (i32, i32, i32) {
    %c0_i32 = arith.constant 0 : i32
    %c0_i32_0 = arith.constant 0 : i32
    return %arg0, %arg1, %c0_i32 : i32, i32, i32
  }
  func.func @transform_1(%arg0: i32, %arg1: i32, %arg2: memref<2xf32, #tpu.memory_space<smem>>) -> (i32, i32, i32) {
    %c0_i32 = arith.constant 0 : i32
    %c0_i32_0 = arith.constant 0 : i32
    %c0_i32_1 = arith.constant 0 : i32
    return %arg0, %c0_i32, %c0_i32_0 : i32, i32, i32
  }
  func.func @transform_2(%arg0: i32, %arg1: i32, %arg2: memref<2xf32, #tpu.memory_space<smem>>) -> (i32, i32) {
    %c0_i32 = arith.constant 0 : i32
    %c0_i32_0 = arith.constant 0 : i32
    %c0_i32_1 = arith.constant 0 : i32
    return %c0_i32, %c0_i32_0 : i32, i32
  }
  func.func @transform_3(%arg0: i32, %arg1: i32, %arg2: memref<2xf32, #tpu.memory_space<smem>>) -> (i32, i32) {
    %c0_i32 = arith.constant 0 : i32
    %c0_i32_0 = arith.constant 0 : i32
    %c0_i32_1 = arith.constant 0 : i32
    return %c0_i32, %c0_i32_0 : i32, i32
  }
  func.func @transform_4(%arg0: i32, %arg1: i32, %arg2: memref<2xf32, #tpu.memory_space<smem>>) -> (i32, i32) {
    %c0_i32 = arith.constant 0 : i32
    %c0_i32_0 = arith.constant 0 : i32
    %c0_i32_1 = arith.constant 0 : i32
    return %c0_i32, %c0_i32_0 : i32, i32
  }
  func.func @transform_5(%arg0: i32, %arg1: i32, %arg2: memref<2xf32, #tpu.memory_space<smem>>) -> (i32, i32) {
    %c0_i32 = arith.constant 0 : i32
    %c0_i32_0 = arith.constant 0 : i32
    %c0_i32_1 = arith.constant 0 : i32
    return %c0_i32, %c0_i32_0 : i32, i32
  }
  func.func @transform_6(%arg0: i32, %arg1: i32, %arg2: memref<2xf32, #tpu.memory_space<smem>>) -> (i32, i32) {
    %c0_i32 = arith.constant 0 : i32
    %c0_i32_0 = arith.constant 0 : i32
    %c0_i32_1 = arith.constant 0 : i32
    return %c0_i32, %c0_i32_0 : i32, i32
  }
  func.func @transform_7(%arg0: i32, %arg1: i32, %arg2: memref<2xf32, #tpu.memory_space<smem>>) -> (i32, i32) {
    %c0_i32 = arith.constant 0 : i32
    %c0_i32_0 = arith.constant 0 : i32
    %c0_i32_1 = arith.constant 0 : i32
    return %c0_i32, %c0_i32_0 : i32, i32
  }
  func.func @transform_8(%arg0: i32, %arg1: i32, %arg2: memref<2xf32, #tpu.memory_space<smem>>) -> (i32, i32) {
    %c0_i32 = arith.constant 0 : i32
    %c0_i32_0 = arith.constant 0 : i32
    %c0_i32_1 = arith.constant 0 : i32
    return %c0_i32, %c0_i32_0 : i32, i32
  }
  func.func @transform_9(%arg0: i32, %arg1: i32, %arg2: memref<2xf32, #tpu.memory_space<smem>>) -> (i32, i32) {
    %c0_i32 = arith.constant 0 : i32
    %c0_i32_0 = arith.constant 0 : i32
    %c0_i32_1 = arith.constant 0 : i32
    return %c0_i32, %c0_i32_0 : i32, i32
  }
  func.func @transform_10(%arg0: i32, %arg1: i32, %arg2: memref<2xf32, #tpu.memory_space<smem>>) -> (i32, i32) {
    %c0_i32 = arith.constant 0 : i32
    %c0_i32_0 = arith.constant 0 : i32
    %c0_i32_1 = arith.constant 0 : i32
    return %c0_i32, %c0_i32_0 : i32, i32
  }
  func.func @transform_11(%arg0: i32, %arg1: i32, %arg2: memref<2xf32, #tpu.memory_space<smem>>) -> (i32, i32, i32) {
    %c0_i32 = arith.constant 0 : i32
    %c0_i32_0 = arith.constant 0 : i32
    return %arg0, %arg1, %c0_i32 : i32, i32, i32
  }
}

</mosaic_0001>

<llo_original>
// kernel: tpu_custom_call.1
$region0: #{tpu_custom_call.1}
  #allocation0 [shape = 'u32[]', space=smem, size = 0x4, offset = 0x4, fixed_abs, tag = 'smem constant byte address 0x4 - core index']
  #allocation1 [shape = 'u32[144,128]{1,0:T(1,128)}', space=vmem, size = 0x12000, scoped, tag = 'internal scratch']
  #allocation2 [shape = 'bf16[8,32]{1,0:T(8,128)(2,1)}', space=vmem, size = 0x800, scoped, tag = 'scratch operand']
  #allocation3 [shape = 'bf16[8,32]{1,0:T(8,128)(2,1)}', space=vmem, size = 0x800, scoped, tag = 'scratch operand']
  #allocation4 [shape = 'bf16[8,32]{1,0:T(8,128)(2,1)}', space=vmem, size = 0x800, scoped, tag = 'scratch operand']
  #allocation5 [shape = 's32[1]{0}', space=sflag, size = 0x4, scoped, tag = 'scoped memory for tpu_custom_call.1']
  #allocation6 [shape = 'u8[512]{0}', space=smem, size = 0x200, scoped, tag = 'prefetched SMEM operand 0']
  %s0 = inlined_call_operand.hbm [shape: f32[2], index: 0, kind: input, shape index: {}]
  %s1 = inlined_call_operand.hbm [shape: bf16[2,16,32], index: 1, kind: input, shape index: {}]
  %s2 = inlined_call_operand.hbm [shape: bf16[2,8,32], index: 2, kind: input, shape index: {}]
  %s3 = inlined_call_operand.hbm [shape: bf16[32,32], index: 3, kind: input, shape index: {}]
  %s4 = inlined_call_operand.vmem [shape: f32[1,32], index: 4, kind: input, shape index: {}]
  %s5 = inlined_call_operand.hbm [shape: bf16[32,32], index: 5, kind: input, shape index: {}]
  %s6 = inlined_call_operand.vmem [shape: f32[1,32], index: 6, kind: input, shape index: {}]
  %s7 = inlined_call_operand.hbm [shape: bf16[32,32], index: 7, kind: input, shape index: {}]
  %s8 = inlined_call_operand.hbm [shape: f32[1,32], index: 8, kind: input, shape index: {}]
  %s9 = inlined_call_operand.hbm [shape: f32[1,32], index: 9, kind: input, shape index: {}]
  %s10 = inlined_call_operand.vmem [shape: bf16[32,32], index: 10, kind: input, shape index: {}]
  %s11 = inlined_call_operand.vmem [shape: f32[1,32], index: 11, kind: input, shape index: {}]
  %s12 = inlined_call_operand.hbm [shape: f32[2,16,32], index: 12, kind: output, shape index: {}]
  %s13 = sld [smem:[#allocation0]]
  $region109: #{tpu_custom_call.1} parent=0
    _
  %s15 = ssub.s32 1, %s13
  %s16 = scalar_select 0, %s15, %s13
  %18 = dma.hbm_to_smem %s0, 16, [#allocation6], [#allocation5]
  %19 = dma.done [#allocation5], 16
  %20 = sfence
  $region1: #{tpu_custom_call.1} parent=0
    #allocation7 [shape = 'u8[4096]{0}', space=vmem, size = 0x1000, scoped, tag = 'input window, operand 1']
    #allocation8 [shape = 's32[2]{0}', space=sflag, size = 0x8, scoped, tag = 'scoped memory for tpu_custom_call.1']
    #allocation9 [shape = 's32[2]{0}', space=sflag, size = 0x8, scoped, tag = 'scoped memory for tpu_custom_call.1']
    #allocation10 [shape = 'u8[4096]{0}', space=vmem, size = 0x1000, scoped, tag = 'input window, operand 2']
    #allocation11 [shape = 's32[2]{0}', space=sflag, size = 0x8, scoped, tag = 'scoped memory for tpu_custom_call.1']
    #allocation12 [shape = 'u8[8192]{0}', space=vmem, size = 0x2000, scoped, tag = 'input window, operand 3, single buffered']
    #allocation13 [shape = 'u8[8192]{0}', space=vmem, size = 0x2000, scoped, tag = 'input window, operand 5, single buffered']
    #allocation14 [shape = 's32[1]{0}', space=sflag, size = 0x4, scoped, tag = 'scoped memory for tpu_custom_call.1']
    #allocation15 [shape = 'u8[8192]{0}', space=vmem, size = 0x2000, scoped, tag = 'input window, operand 7, single buffered']
    #allocation16 [shape = 'u8[512]{0}', space=vmem, size = 0x400, scoped, tag = 'input window, operand 8, single buffered']
    #allocation17 [shape = 's32[1]{0}', space=sflag, size = 0x4, scoped, tag = 'scoped memory for tpu_custom_call.1']
    #allocation18 [shape = 'u8[512]{0}', space=vmem, size = 0x400, scoped, tag = 'input window, operand 9, single buffered']
    #allocation19 [shape = 'u8[8192]{0}', space=vmem, size = 0x2000, scoped, tag = 'output window, operand 0']
    %21 = vsyncpa [#allocation8], 0
    %s22 = scalar_lea.sflag [#allocation8], 1
    %23 = vsyncpa %s22, 0
    %24 = vsyncpa [#allocation11], 0
    %s25 = scalar_lea.sflag [#allocation11], 1
    %26 = vsyncpa %s25, 0
    %27 = vsyncpa [#allocation14], 0
    %28 = vsyncpa [#allocation17], 0
    %29 = vsyncpa [#allocation9], 0
    %s30 = scalar_lea.sflag [#allocation9], 1
    %31 = vsyncpa %s30, 0
    loop: start=0, step=1, limit=6
    $region2: #{tpu_custom_call.1} parent=1 // loop_pre_header
      _
    $region3: #{tpu_custom_call.1} parent=1 // loop_header
      %s33 = sphi 0, %s37
      %p34 = scmp.ge.s32.totalorder %s33, 6
      %s40 = sphi 0, %s52
      %s41 = sphi 0, %s48
      %s42 = sphi 0, %s40
      %s43 = sphi 0, %s41
      %s44 = sphi 0, %s42
      %s45 = sphi 0, %s43
      %s57 = sphi 0, %s59
      %s60 = sphi 0, %s57
      %s61 = sphi 0, %s60
      %s77 = sphi 0, %s61
      %s83 = sphi 0, %s85
      %s86 = sphi 0, %s83
      %s87 = sphi 0, %s86
      %s103 = sphi 0, %s87
      %s107 = sphi 0, %s107
      %s109 = sphi 0, %s107
      %s110 = sphi 0, %s109
      %s124 = sphi 0, %s110
      %s128 = sphi 0, %s128
      %s130 = sphi 0, %s128
      %s131 = sphi 0, %s130
      %s145 = sphi 0, %s131
      %s149 = sphi 0, %s149
      %s151 = sphi 0, %s149
      %s152 = sphi 0, %s151
      %s166 = sphi 0, %s152
      %s170 = sphi 0, %s170
      %s172 = sphi 0, %s170
      %s173 = sphi 0, %s172
      %s187 = sphi 0, %s173
      %s191 = sphi 0, %s191
      %s193 = sphi 0, %s191
      %s194 = sphi 0, %s193
      %s208 = sphi 0, %s194
      %s212 = sphi 0, %s212
      %s214 = sphi 0, %s212
      %s215 = sphi 0, %s214
      %s229 = sphi 0, %s215
      %s233 = sphi 0, %s233
      %s235 = sphi 0, %s233
      %s236 = sphi 0, %s235
      %s250 = sphi 0, %s236
      %s254 = sphi 0, %s254
      %s256 = sphi 0, %s254
      %s257 = sphi 0, %s256
      %s271 = sphi 0, %s257
      %s275 = sphi 0, %s275
      %s277 = sphi 0, %s275
      %s278 = sphi 0, %s277
      %s292 = sphi 0, %s278
      %s300 = sphi 0, %s302
      %s303 = sphi 0, %s300
      %s304 = sphi 0, %s303
      %s320 = sphi 0, %s304
    $region4: #{tpu_custom_call.1} parent=1 // loop_header_branch
      %36 = sbr.rel (%p34) target = $region8
    $region5: #{tpu_custom_call.1} parent=1 // loop_body
      %s38 = ssub.s32 %s33, 1
      %s39 = ssub.s32 %s33, 2
      %s46 = sadd.s32 1, %s41
      %p47 = scmp.ge.s32.totalorder %s46, 2
      %s48 = scalar_select %p47, 0, %s46
      %s49 = sadd.s32 1, %s40
      %s50 = scalar_select %p47, %s49, %s40
      %p51 = scmp.ge.s32.totalorder %s50, 2
      %s52 = scalar_select %p51, 0, %s50
      %s53 = ssub.s32 %s40, %s52
      %s54 = ssub.s32 %s41, %s48
      %s55 = sor.u32 %s53, %s54
      %p56 = scmp.eq.s32.totalorder %s55, 0
      %s58 = sadd.s32 %s57, 1
      %s59 = scalar_select %p56, %s57, %s58
      %p62 = pneg %p56
      %p63 = scmp.eq.s32.totalorder %s33, 3
      %p64 = por %p62, %p63
      %p65 = scmp.ne.s32.totalorder %s57, %s60
      %p66 = scmp.eq.s32.totalorder %s33, 0
      %p67 = por %p65, %p66
      %p68 = scmp.ne.s32.totalorder %s57, %s60
      %p69 = scmp.eq.s32.totalorder %s38, 3
      %p70 = por %p68, %p69
      %p71 = scmp.ne.s32.totalorder %s60, %s61
      %p72 = scmp.eq.s32.totalorder %s38, 0
      %p73 = por %p71, %p72
      %p74 = scmp.ne.s32.totalorder %s60, %s61
      %p75 = scmp.eq.s32.totalorder %s39, 3
      %p76 = por %p74, %p75
      %p78 = scmp.ne.s32.totalorder %s61, %s77
      %p79 = scmp.eq.s32.totalorder %s39, 0
      %p80 = por %p78, %p79
      %s81 = ssub.s32 %s40, %s52
      %p82 = scmp.eq.s32.totalorder %s81, 0
      %s84 = sadd.s32 %s83, 1
      %s85 = scalar_select %p82, %s83, %s84
      %p88 = pneg %p82
      %p89 = scmp.eq.s32.totalorder %s33, 3
      %p90 = por %p88, %p89
      %p91 = scmp.ne.s32.totalorder %s83, %s86
      %p92 = scmp.eq.s32.totalorder %s33, 0
      %p93 = por %p91, %p92
      %p94 = scmp.ne.s32.totalorder %s83, %s86
      %p95 = scmp.eq.s32.totalorder %s38, 3
      %p96 = por %p94, %p95
      %p97 = scmp.ne.s32.totalorder %s86, %s87
      %p98 = scmp.eq.s32.totalorder %s38, 0
      %p99 = por %p97, %p98
      %p100 = scmp.ne.s32.totalorder %s86, %s87
      %p101 = scmp.eq.s32.totalorder %s39, 3
      %p102 = por %p100, %p101
      %p104 = scmp.ne.s32.totalorder %s87, %s103
      %p105 = scmp.eq.s32.totalorder %s39, 0
      %p106 = por %p104, %p105
      %s108 = sadd.s32 %s107, 1
      %p111 = scmp.eq.s32.totalorder %s33, 3
      %p112 = scmp.ne.s32.totalorder %s107, %s109
      %p113 = scmp.eq.s32.totalorder %s33, 0
      %p114 = por %p112, %p113
      %p115 = scmp.ne.s32.totalorder %s107, %s109
      %p116 = scmp.eq.s32.totalorder %s38, 3
      %p117 = por %p115, %p116
      %p118 = scmp.ne.s32.totalorder %s109, %s110
      %p119 = scmp.eq.s32.totalorder %s38, 0
      %p120 = por %p118, %p119
      %p121 = scmp.ne.s32.totalorder %s109, %s110
      %p122 = scmp.eq.s32.totalorder %s39, 3
      %p123 = por %p121, %p122
      %p125 = scmp.ne.s32.totalorder %s110, %s124
      %p126 = scmp.eq.s32.totalorder %s39, 0
      %p127 = por %p125, %p126
      %s129 = sadd.s32 %s128, 1
      %p132 = scmp.eq.s32.totalorder %s33, 3
      %p133 = scmp.ne.s32.totalorder %s128, %s130
      %p134 = scmp.eq.s32.totalorder %s33, 0
      %p135 = por %p133, %p134
      %p136 = scmp.ne.s32.totalorder %s128, %s130
      %p137 = scmp.eq.s32.totalorder %s38, 3
      %p138 = por %p136, %p137
      %p139 = scmp.ne.s32.totalorder %s130, %s131
      %p140 = scmp.eq.s32.totalorder %s38, 0
      %p141 = por %p139, %p140
      %p142 = scmp.ne.s32.totalorder %s130, %s131
      %p143 = scmp.eq.s32.totalorder %s39, 3
      %p144 = por %p142, %p143
      %p146 = scmp.ne.s32.totalorder %s131, %s145
      %p147 = scmp.eq.s32.totalorder %s39, 0
      %p148 = por %p146, %p147
      %s150 = sadd.s32 %s149, 1
      %p153 = scmp.eq.s32.totalorder %s33, 3
      %p154 = scmp.ne.s32.totalorder %s149, %s151
      %p155 = scmp.eq.s32.totalorder %s33, 0
      %p156 = por %p154, %p155
      %p157 = scmp.ne.s32.totalorder %s149, %s151
      %p158 = scmp.eq.s32.totalorder %s38, 3
      %p159 = por %p157, %p158
      %p160 = scmp.ne.s32.totalorder %s151, %s152
      %p161 = scmp.eq.s32.totalorder %s38, 0
      %p162 = por %p160, %p161
      %p163 = scmp.ne.s32.totalorder %s151, %s152
      %p164 = scmp.eq.s32.totalorder %s39, 3
      %p165 = por %p163, %p164
      %p167 = scmp.ne.s32.totalorder %s152, %s166
      %p168 = scmp.eq.s32.totalorder %s39, 0
      %p169 = por %p167, %p168
      %s171 = sadd.s32 %s170, 1
      %p174 = scmp.eq.s32.totalorder %s33, 3
      %p175 = scmp.ne.s32.totalorder %s170, %s172
      %p176 = scmp.eq.s32.totalorder %s33, 0
      %p177 = por %p175, %p176
      %p178 = scmp.ne.s32.totalorder %s170, %s172
      %p179 = scmp.eq.s32.totalorder %s38, 3
      %p180 = por %p178, %p179
      %p181 = scmp.ne.s32.totalorder %s172, %s173
      %p182 = scmp.eq.s32.totalorder %s38, 0
      %p183 = por %p181, %p182
      %p184 = scmp.ne.s32.totalorder %s172, %s173
      %p185 = scmp.eq.s32.totalorder %s39, 3
      %p186 = por %p184, %p185
      %p188 = scmp.ne.s32.totalorder %s173, %s187
      %p189 = scmp.eq.s32.totalorder %s39, 0
      %p190 = por %p188, %p189
      %s192 = sadd.s32 %s191, 1
      %p195 = scmp.eq.s32.totalorder %s33, 3
      %p196 = scmp.ne.s32.totalorder %s191, %s193
      %p197 = scmp.eq.s32.totalorder %s33, 0
      %p198 = por %p196, %p197
      %p199 = scmp.ne.s32.totalorder %s191, %s193
      %p200 = scmp.eq.s32.totalorder %s38, 3
      %p201 = por %p199, %p200
      %p202 = scmp.ne.s32.totalorder %s193, %s194
      %p203 = scmp.eq.s32.totalorder %s38, 0
      %p204 = por %p202, %p203
      %p205 = scmp.ne.s32.totalorder %s193, %s194
      %p206 = scmp.eq.s32.totalorder %s39, 3
      %p207 = por %p205, %p206
      %p209 = scmp.ne.s32.totalorder %s194, %s208
      %p210 = scmp.eq.s32.totalorder %s39, 0
      %p211 = por %p209, %p210
      %s213 = sadd.s32 %s212, 1
      %p216 = scmp.eq.s32.totalorder %s33, 3
      %p217 = scmp.ne.s32.totalorder %s212, %s214
      %p218 = scmp.eq.s32.totalorder %s33, 0
      %p219 = por %p217, %p218
      %p220 = scmp.ne.s32.totalorder %s212, %s214
      %p221 = scmp.eq.s32.totalorder %s38, 3
      %p222 = por %p220, %p221
      %p223 = scmp.ne.s32.totalorder %s214, %s215
      %p224 = scmp.eq.s32.totalorder %s38, 0
      %p225 = por %p223, %p224
      %p226 = scmp.ne.s32.totalorder %s214, %s215
      %p227 = scmp.eq.s32.totalorder %s39, 3
      %p228 = por %p226, %p227
      %p230 = scmp.ne.s32.totalorder %s215, %s229
      %p231 = scmp.eq.s32.totalorder %s39, 0
      %p232 = por %p230, %p231
      %s234 = sadd.s32 %s233, 1
      %p237 = scmp.eq.s32.totalorder %s33, 3
      %p238 = scmp.ne.s32.totalorder %s233, %s235
      %p239 = scmp.eq.s32.totalorder %s33, 0
      %p240 = por %p238, %p239
      %p241 = scmp.ne.s32.totalorder %s233, %s235
      %p242 = scmp.eq.s32.totalorder %s38, 3
      %p243 = por %p241, %p242
      %p244 = scmp.ne.s32.totalorder %s235, %s236
      %p245 = scmp.eq.s32.totalorder %s38, 0
      %p246 = por %p244, %p245
      %p247 = scmp.ne.s32.totalorder %s235, %s236
      %p248 = scmp.eq.s32.totalorder %s39, 3
      %p249 = por %p247, %p248
      %p251 = scmp.ne.s32.totalorder %s236, %s250
      %p252 = scmp.eq.s32.totalorder %s39, 0
      %p253 = por %p251, %p252
      %s255 = sadd.s32 %s254, 1
      %p258 = scmp.eq.s32.totalorder %s33, 3
      %p259 = scmp.ne.s32.totalorder %s254, %s256
      %p260 = scmp.eq.s32.totalorder %s33, 0
      %p261 = por %p259, %p260
      %p262 = scmp.ne.s32.totalorder %s254, %s256
      %p263 = scmp.eq.s32.totalorder %s38, 3
      %p264 = por %p262, %p263
      %p265 = scmp.ne.s32.totalorder %s256, %s257
      %p266 = scmp.eq.s32.totalorder %s38, 0
      %p267 = por %p265, %p266
      %p268 = scmp.ne.s32.totalorder %s256, %s257
      %p269 = scmp.eq.s32.totalorder %s39, 3
      %p270 = por %p268, %p269
      %p272 = scmp.ne.s32.totalorder %s257, %s271
      %p273 = scmp.eq.s32.totalorder %s39, 0
      %p274 = por %p272, %p273
      %s276 = sadd.s32 %s275, 1
      %p279 = scmp.eq.s32.totalorder %s33, 3
      %p280 = scmp.ne.s32.totalorder %s275, %s277
      %p281 = scmp.eq.s32.totalorder %s33, 0
      %p282 = por %p280, %p281
      %p283 = scmp.ne.s32.totalorder %s275, %s277
      %p284 = scmp.eq.s32.totalorder %s38, 3
      %p285 = por %p283, %p284
      %p286 = scmp.ne.s32.totalorder %s277, %s278
      %p287 = scmp.eq.s32.totalorder %s38, 0
      %p288 = por %p286, %p287
      %p289 = scmp.ne.s32.totalorder %s277, %s278
      %p290 = scmp.eq.s32.totalorder %s39, 3
      %p291 = por %p289, %p290
      %p293 = scmp.ne.s32.totalorder %s278, %s292
      %p294 = scmp.eq.s32.totalorder %s39, 0
      %p295 = por %p293, %p294
      %s296 = ssub.s32 %s40, %s52
      %s297 = ssub.s32 %s41, %s48
      %s298 = sor.u32 %s296, %s297
      %p299 = scmp.eq.s32.totalorder %s298, 0
      %s301 = sadd.s32 %s300, 1
      %s302 = scalar_select %p299, %s300, %s301
      %p305 = pneg %p299
      %p306 = scmp.eq.s32.totalorder %s33, 3
      %p307 = por %p305, %p306
      %p308 = scmp.ne.s32.totalorder %s300, %s303
      %p309 = scmp.eq.s32.totalorder %s33, 0
      %p310 = por %p308, %p309
      %p311 = scmp.ne.s32.totalorder %s300, %s303
      %p312 = scmp.eq.s32.totalorder %s38, 3
      %p313 = por %p311, %p312
      %p314 = scmp.ne.s32.totalorder %s303, %s304
      %p315 = scmp.eq.s32.totalorder %s38, 0
      %p316 = por %p314, %p315
      %p317 = scmp.ne.s32.totalorder %s303, %s304
      %p318 = scmp.eq.s32.totalorder %s39, 3
      %p319 = por %p317, %p318
      %p321 = scmp.ne.s32.totalorder %s304, %s320
      %p322 = scmp.eq.s32.totalorder %s39, 0
      %p323 = por %p321, %p322
      %p324 = scmp.le.s32.totalorder 1, %s33
      %p325 = scmp.lt.s32.totalorder %s33, 5
      %p326 = pnand %p324, %p325
      %p327 = pneg %p326
      // Predicated region
      $region9: #{tpu_custom_call.1} parent=5 // pred_check
        _
      $region10: #{tpu_custom_call.1} parent=5 // pred_check_branch
        %329 = sbr.rel (%p326) target = $region12
      $region11: #{tpu_custom_call.1} parent=5 // pred_region
        %s330 = ssub.s32 %s33, 1
        // Predicated region
        $region13: #{tpu_custom_call.1} parent=11 // pred_check
          %p331 = pneg %p120
        $region14: #{tpu_custom_call.1} parent=11 // pred_check_branch
          %333 = sbr.rel (%p331) target = $region16
        $region15: #{tpu_custom_call.1} parent=11 // pred_region
          %s335 = ssub.s32 256, 256
          %336 = vsyncadd [#allocation11], %s335
          %s337 = sshll.u32 [#allocation12], 4
          %s338 = int_to_ptr.vmem [resolvable:$true] %s337
          %343 = dma.hbm_to_vmem [thread:$0]  %s3, 256, %s338, [#allocation11], 64, 64, 4
        $region16: #{tpu_custom_call.1} parent=11 // pred_fallthru
          _
        // Predicated region
        $region17: #{tpu_custom_call.1} parent=11 // pred_check
          %p344 = pneg %p141
        $region18: #{tpu_custom_call.1} parent=11 // pred_check_branch
          %346 = sbr.rel (%p344) target = $region20
        $region19: #{tpu_custom_call.1} parent=11 // pred_region
          _
        $region20: #{tpu_custom_call.1} parent=11 // pred_fallthru
          _
        // Predicated region
        $region21: #{tpu_custom_call.1} parent=11 // pred_check
          %p347 = pneg %p162
        $region22: #{tpu_custom_call.1} parent=11 // pred_check_branch
          %349 = sbr.rel (%p347) target = $region24
        $region23: #{tpu_custom_call.1} parent=11 // pred_region
          %s351 = ssub.s32 256, 256
          %352 = vsyncadd [#allocation14], %s351
          %s353 = sshll.u32 [#allocation13], 4
          %s354 = int_to_ptr.vmem [resolvable:$true] %s353
          %359 = dma.hbm_to_vmem [thread:$0]  %s5, 256, %s354, [#allocation14], 64, 64, 4
        $region24: #{tpu_custom_call.1} parent=11 // pred_fallthru
          _
        // Predicated region
        $region25: #{tpu_custom_call.1} parent=11 // pred_check
          %p360 = pneg %p183
        $region26: #{tpu_custom_call.1} parent=11 // pred_check_branch
          %362 = sbr.rel (%p360) target = $region28
        $region27: #{tpu_custom_call.1} parent=11 // pred_region
          _
        $region28: #{tpu_custom_call.1} parent=11 // pred_fallthru
          _
        // Predicated region
        $region29: #{tpu_custom_call.1} parent=11 // pred_check
          %p363 = pneg %p204
        $region30: #{tpu_custom_call.1} parent=11 // pred_check_branch
          %365 = sbr.rel (%p363) target = $region32
        $region31: #{tpu_custom_call.1} parent=11 // pred_region
          %s367 = ssub.s32 256, 256
          %368 = vsyncadd [#allocation14], %s367
          %s369 = sshll.u32 [#allocation15], 4
          %s370 = int_to_ptr.vmem [resolvable:$true] %s369
          %375 = dma.hbm_to_vmem [thread:$0]  %s7, 256, %s370, [#allocation14], 64, 64, 4
        $region32: #{tpu_custom_call.1} parent=11 // pred_fallthru
          _
        // Predicated region
        $region33: #{tpu_custom_call.1} parent=11 // pred_check
          %p376 = pneg %p225
        $region34: #{tpu_custom_call.1} parent=11 // pred_check_branch
          %378 = sbr.rel (%p376) target = $region36
        $region35: #{tpu_custom_call.1} parent=11 // pred_region
          %s380 = ssub.s32 16, 16
          %381 = vsyncadd [#allocation17], %s380
          %s383 = sshll.u32 [#allocation16], 4
          %s384 = int_to_ptr.vmem [resolvable:$true] %s383
          %386 = dma.hbm_to_vmem [thread:$0]  %s8, 16, %s384, [#allocation17]
        $region36: #{tpu_custom_call.1} parent=11 // pred_fallthru
          _
        // Predicated region
        $region37: #{tpu_custom_call.1} parent=11 // pred_check
          %p387 = pneg %p246
        $region38: #{tpu_custom_call.1} parent=11 // pred_check_branch
          %389 = sbr.rel (%p387) target = $region40
        $region39: #{tpu_custom_call.1} parent=11 // pred_region
          %s391 = ssub.s32 16, 16
          %392 = vsyncadd [#allocation17], %s391
          %s394 = sshll.u32 [#allocation18], 4
          %s395 = int_to_ptr.vmem [resolvable:$true] %s394
          %397 = dma.hbm_to_vmem [thread:$0]  %s9, 16, %s395, [#allocation17]
        $region40: #{tpu_custom_call.1} parent=11 // pred_fallthru
          _
        // Predicated region
        $region41: #{tpu_custom_call.1} parent=11 // pred_check
          %p398 = pneg %p267
        $region42: #{tpu_custom_call.1} parent=11 // pred_check_branch
          %400 = sbr.rel (%p398) target = $region44
        $region43: #{tpu_custom_call.1} parent=11 // pred_region
          _
        $region44: #{tpu_custom_call.1} parent=11 // pred_fallthru
          _
        // Predicated region
        $region45: #{tpu_custom_call.1} parent=11 // pred_check
          %p401 = pneg %p288
        $region46: #{tpu_custom_call.1} parent=11 // pred_check_branch
          %403 = sbr.rel (%p401) target = $region48
        $region47: #{tpu_custom_call.1} parent=11 // pred_region
          _
        $region48: #{tpu_custom_call.1} parent=11 // pred_fallthru
          _
      $region12: #{tpu_custom_call.1} parent=5 // pred_fallthru
        _
      %p404 = scmp.lt.s32.totalorder %s33, 4
      // Predicated region
      $region49: #{tpu_custom_call.1} parent=5 // pred_check
        %p405 = pneg %p404
      $region50: #{tpu_custom_call.1} parent=5 // pred_check_branch
        %407 = sbr.rel (%p405) target = $region52
      $region51: #{tpu_custom_call.1} parent=5 // pred_region
        // Predicated region
        $region53: #{tpu_custom_call.1} parent=51 // pred_check
          %p408 = pneg %p67
        $region54: #{tpu_custom_call.1} parent=51 // pred_check_branch
          %410 = sbr.rel (%p408) target = $region56
        $region55: #{tpu_custom_call.1} parent=51 // pred_region
          %s411 = sand.u32 %s57, 1
          %s412 = scalar_lea.sflag [#allocation8], %s411
          %s413 = sand.u32 %s57, 1
          %s414 = smul.addr %s413, 4
          %s415 = scalar_lea.vmem [#allocation7], %s414
          %s417 = ssub.s32 64, 64
          %418 = vsyncadd %s412, %s417
          %s419 = smul.addr %s40, 2
          %s420 = sadd.s32 %s41, %s419
          %s421 = smul.addr %s420, 64
          %s422 = scalar_lea.hbm %s1, %s421
          %s424 = sshll.u32 %s415, 4
          %s425 = int_to_ptr.vmem [resolvable:$true] %s424
          %427 = dma.hbm_to_vmem [thread:$0]  %s422, 64, %s425, %s412
        $region56: #{tpu_custom_call.1} parent=51 // pred_fallthru
          _
        // Predicated region
        $region57: #{tpu_custom_call.1} parent=51 // pred_check
          %p428 = pneg %p93
        $region58: #{tpu_custom_call.1} parent=51 // pred_check_branch
          %430 = sbr.rel (%p428) target = $region60
        $region59: #{tpu_custom_call.1} parent=51 // pred_region
          %s431 = sand.u32 %s33, 1
          %s432 = scalar_lea.sflag [#allocation11], %s431
          %s433 = sand.u32 %s83, 1
          %s434 = smul.addr %s433, 4
          %s435 = scalar_lea.vmem [#allocation10], %s434
          %s437 = ssub.s32 64, 64
          %438 = vsyncadd %s432, %s437
          %s439 = smul.addr %s40, 64
          %s440 = scalar_lea.hbm %s2, %s439
          %s442 = sshll.u32 %s435, 4
          %s443 = int_to_ptr.vmem [resolvable:$true] %s442
          %445 = dma.hbm_to_vmem [thread:$0]  %s440, 64, %s443, %s432
        $region60: #{tpu_custom_call.1} parent=51 // pred_fallthru
          _
      $region52: #{tpu_custom_call.1} parent=5 // pred_fallthru
        _
      %p446 = scmp.le.s32.totalorder 1, %s33
      %p447 = scmp.lt.s32.totalorder %s33, 5
      %p448 = pnand %p446, %p447
      %p449 = pneg %p448
      // Predicated region
      $region61: #{tpu_custom_call.1} parent=5 // pred_check
        _
      $region62: #{tpu_custom_call.1} parent=5 // pred_check_branch
        %451 = sbr.rel (%p448) target = $region64
      $region63: #{tpu_custom_call.1} parent=5 // pred_region
        %s452 = ssub.s32 %s33, 1
        %s453 = sand.u32 %s60, 1
        %s454 = scalar_lea.sflag [#allocation8], %s453
        %s455 = sand.u32 %s60, 1
        %s456 = smul.addr %s455, 4
        %s457 = scalar_lea.vmem [#allocation7], %s456
        // Predicated region
        $region65: #{tpu_custom_call.1} parent=63 // pred_check
          %p458 = pneg %p73
        $region66: #{tpu_custom_call.1} parent=63 // pred_check_branch
          %460 = sbr.rel (%p458) target = $region68
        $region67: #{tpu_custom_call.1} parent=63 // pred_region
          %461 = dma.done %s454, 64
        $region68: #{tpu_custom_call.1} parent=63 // pred_fallthru
          _
        %s462 = sand.u32 %s38, 1
        %s463 = scalar_lea.sflag [#allocation11], %s462
        %s464 = sand.u32 %s86, 1
        %s465 = smul.addr %s464, 4
        %s466 = scalar_lea.vmem [#allocation10], %s465
        // Predicated region
        $region69: #{tpu_custom_call.1} parent=63 // pred_check
          %p467 = pneg %p99
        $region70: #{tpu_custom_call.1} parent=63 // pred_check_branch
          %469 = sbr.rel (%p467) target = $region72
        $region71: #{tpu_custom_call.1} parent=63 // pred_region
          %470 = dma.done %s463, 64
        $region72: #{tpu_custom_call.1} parent=63 // pred_fallthru
          _
        // Predicated region
        $region73: #{tpu_custom_call.1} parent=63 // pred_check
          %p471 = pneg %p120
        $region74: #{tpu_custom_call.1} parent=63 // pred_check_branch
          %473 = sbr.rel (%p471) target = $region76
        $region75: #{tpu_custom_call.1} parent=63 // pred_region
          %474 = dma.done [#allocation11], 256
        $region76: #{tpu_custom_call.1} parent=63 // pred_fallthru
          _
        // Predicated region
        $region77: #{tpu_custom_call.1} parent=63 // pred_check
          %p475 = pneg %p162
        $region78: #{tpu_custom_call.1} parent=63 // pred_check_branch
          %477 = sbr.rel (%p475) target = $region80
        $region79: #{tpu_custom_call.1} parent=63 // pred_region
          %478 = dma.done [#allocation14], 256
        $region80: #{tpu_custom_call.1} parent=63 // pred_fallthru
          _
        // Predicated region
        $region81: #{tpu_custom_call.1} parent=63 // pred_check
          %p479 = pneg %p204
        $region82: #{tpu_custom_call.1} parent=63 // pred_check_branch
          %481 = sbr.rel (%p479) target = $region84
        $region83: #{tpu_custom_call.1} parent=63 // pred_region
          %482 = dma.done [#allocation14], 256
        $region84: #{tpu_custom_call.1} parent=63 // pred_fallthru
          _
        // Predicated region
        $region85: #{tpu_custom_call.1} parent=63 // pred_check
          %p483 = pneg %p225
        $region86: #{tpu_custom_call.1} parent=63 // pred_check_branch
          %485 = sbr.rel (%p483) target = $region88
        $region87: #{tpu_custom_call.1} parent=63 // pred_region
          %486 = dma.done [#allocation17], 16
        $region88: #{tpu_custom_call.1} parent=63 // pred_fallthru
          _
        // Predicated region
        $region89: #{tpu_custom_call.1} parent=63 // pred_check
          %p487 = pneg %p246
        $region90: #{tpu_custom_call.1} parent=63 // pred_check_branch
          %489 = sbr.rel (%p487) target = $region92
        $region91: #{tpu_custom_call.1} parent=63 // pred_region
          %490 = dma.done [#allocation17], 16
        $region92: #{tpu_custom_call.1} parent=63 // pred_fallthru
          _
        %s491 = sand.u32 %s60, 1
        %s492 = scalar_lea.sflag [#allocation8], %s491
        %s493 = sand.u32 %s60, 1
        %s494 = smul.addr %s493, 4
        %s495 = scalar_lea.vmem [#allocation7], %s494
        %p496 = pneg %p73
        %p497 = pneg %p70
        %s498 = sand.u32 %s38, 1
        %s499 = scalar_lea.sflag [#allocation11], %s498
        %s500 = sand.u32 %s86, 1
        %s501 = smul.addr %s500, 4
        %s502 = scalar_lea.vmem [#allocation10], %s501
        %p503 = pneg %p99
        %p504 = pneg %p96
        %p505 = pneg %p120
        %p506 = pneg %p117
        %p507 = pneg %p141
        %p508 = pneg %p138
        %p509 = pneg %p162
        %p510 = pneg %p159
        %p511 = pneg %p183
        %p512 = pneg %p180
        %p513 = pneg %p204
        %p514 = pneg %p201
        %p515 = pneg %p225
        %p516 = pneg %p222
        %p517 = pneg %p246
        %p518 = pneg %p243
        %p519 = pneg %p267
        %p520 = pneg %p264
        %p521 = pneg %p288
        %p522 = pneg %p285
        %p523 = pneg %p316
        %p524 = pneg %p313
        %s525 = sand.u32 %s303, 1
        %s526 = scalar_lea.sflag [#allocation9], %s525
        %s527 = sand.u32 %s303, 1
        %s528 = smul.addr %s527, 8
        %s529 = scalar_lea.vmem [#allocation19], %s528
        %p531 = scmp.eq.s32.totalorder %s43, 0
        // Predicated region
        $region93: #{tpu_custom_call.1} parent=63 // pred_check
          %p532 = pneg %p531
        $region94: #{tpu_custom_call.1} parent=63 // pred_check_branch
          %534 = sbr.rel (%p532) target = $region96
        $region95: #{tpu_custom_call.1} parent=63 // pred_region
          %v535 = vld [vmem:[%s466] sm:$0xf]
          %v536 = vld [vmem:[#allocation13] sm:$0xf]
          %v537 = vld [vmem:[#allocation13 + $0x4] sm:$0xf]
          %v538 = vld [vmem:[#allocation13 + $0x8] sm:$0xf]
          %v539 = vld [vmem:[#allocation13 + $0xc] sm:$0xf]
          %v540 = vld [vmem:[%s6] sm:$0x1]
          %v542 = vlaneseq
          %v543 = vshrl.u32 %v542, 7
          %v544 = vsub.s32 0, %v543
          %v545 = vrot.slane %v540, %v544
          %v551 = vunpack.c.l.b16 %v536
          %v552 = vunpack.c.l.b16 %v537
          %v553 = vunpack.c.l.b16 %v538
          %v554 = vunpack.c.l.b16 %v539
          %v555 = vpack.c.b16 %v552, %v551
          %v556 = vpack.c.b16 %v554, %v553
          %vm559 = vcmask 261120
          %v561 = vsel %vm559, %v535, 0
          %563 = vmatprep.subr.bf16.mxu0 0
          %564 = vmatpush1.bf16.msra.mxu0 0
          %565 = vmatprep.subr.bf16.mxu0 0
          %566 = vmatpush1.bf16.msra.mxu0 0
          %567 = vmatprep.subr.bf16.mxu0 0
          %568 = vmatpush1.bf16.msra.mxu0 0
          %569 = vmatprep.subr.bf16.mxu0 0
          %570 = vmatpush1.bf16.msra.mxu0 0
          %571 = vmatprep.subr.bf16.mxu0 0
          %572 = vmatpush1.bf16.msra.mxu0 0
          %573 = vmatprep.subr.bf16.mxu0 0
          %574 = vmatpush1.bf16.msra.mxu0 0
          %575 = vmatprep.subr.bf16.mxu0 0
          %576 = vmatpush1.bf16.msra.mxu0 %v556
          %577 = vmatprep.subr.bf16.mxu0 0
          %578 = vmatpush1.bf16.msra.mxu0 %v555
          %579 = vmatprep.subr.bf16.mxu0 0
          %580 = vmatpush2.bf16.msra.mxu0 0
          %581 = vmatprep.subr.bf16.mxu0 0
          %582 = vmatpush2.bf16.msra.mxu0 0
          %583 = vmatprep.subr.bf16.mxu0 0
          %584 = vmatpush2.bf16.msra.mxu0 0
          %585 = vmatprep.subr.bf16.mxu0 0
          %586 = vmatpush2.bf16.msra.mxu0 0
          %587 = vmatprep.subr.bf16.mxu0 0
          %588 = vmatpush2.bf16.msra.mxu0 0
          %589 = vmatprep.subr.bf16.mxu0 0
          %590 = vmatpush2.bf16.msra.mxu0 0
          %591 = vmatprep.subr.bf16.mxu0 0
          %592 = vmatpush2.bf16.msra.mxu0 0
          %593 = vmatprep.subr.bf16.mxu0 0
          %594 = vmatpush2.bf16.msra.mxu0 0
          %595 = vmatprep.mubr.bf16.mxu0 0
          %596 = vmatmul.mubr.bf16.gmra.mxu0 %v561
          %v597 = vpop.f32.mrf.mxu0
          %v598 = vadd.f32 %v545, %v597
          %v599 = vpop.f32.mrf.mxu0
          %v600 = vpop.f32.mrf.mxu0
          %v601 = vpop.f32.mrf.mxu0
          %602 = vdwg.mxu0
          %v603 = vld [vmem:[#allocation15] sm:$0xf]
          %v604 = vld [vmem:[#allocation15 + $0x4] sm:$0xf]
          %v605 = vld [vmem:[#allocation15 + $0x8] sm:$0xf]
          %v606 = vld [vmem:[#allocation15 + $0xc] sm:$0xf]
          %v607 = vld [vmem:[#allocation16] sm:$0x1]
          %v609 = vlaneseq
          %v610 = vshrl.u32 %v609, 7
          %v611 = vsub.s32 0, %v610
          %v612 = vrot.slane %v607, %v611
          %v618 = vunpack.c.l.b16 %v603
          %v619 = vunpack.c.l.b16 %v604
          %v620 = vunpack.c.l.b16 %v605
          %v621 = vunpack.c.l.b16 %v606
          %v622 = vpack.c.b16 %v619, %v618
          %v623 = vpack.c.b16 %v621, %v620
          %626 = vmatprep.subr.bf16.mxu0 0
          %627 = vmatpush1.bf16.msra.mxu0 0
          %628 = vmatprep.subr.bf16.mxu0 0
          %629 = vmatpush1.bf16.msra.mxu0 0
          %630 = vmatprep.subr.bf16.mxu0 0
          %631 = vmatpush1.bf16.msra.mxu0 0
          %632 = vmatprep.subr.bf16.mxu0 0
          %633 = vmatpush1.bf16.msra.mxu0 0
          %634 = vmatprep.subr.bf16.mxu0 0
          %635 = vmatpush1.bf16.msra.mxu0 0
          %636 = vmatprep.subr.bf16.mxu0 0
          %637 = vmatpush1.bf16.msra.mxu0 0
          %638 = vmatprep.subr.bf16.mxu0 0
          %639 = vmatpush1.bf16.msra.mxu0 %v623
          %640 = vmatprep.subr.bf16.mxu0 0
          %641 = vmatpush1.bf16.msra.mxu0 %v622
          %642 = vmatprep.subr.bf16.mxu0 0
          %643 = vmatpush2.bf16.msra.mxu0 0
          %644 = vmatprep.subr.bf16.mxu0 0
          %645 = vmatpush2.bf16.msra.mxu0 0
          %646 = vmatprep.subr.bf16.mxu0 0
          %647 = vmatpush2.bf16.msra.mxu0 0
          %648 = vmatprep.subr.bf16.mxu0 0
          %649 = vmatpush2.bf16.msra.mxu0 0
          %650 = vmatprep.subr.bf16.mxu0 0
          %651 = vmatpush2.bf16.msra.mxu0 0
          %652 = vmatprep.subr.bf16.mxu0 0
          %653 = vmatpush2.bf16.msra.mxu0 0
          %654 = vmatprep.subr.bf16.mxu0 0
          %655 = vmatpush2.bf16.msra.mxu0 0
          %656 = vmatprep.subr.bf16.mxu0 0
          %657 = vmatpush2.bf16.msra.mxu0 0
          %658 = vmatprep.mubr.bf16.mxu0 0
          %659 = vmatmul.mubr.bf16.gmra.mxu0 %v561
          %v660 = vpop.f32.mrf.mxu0
          %v661 = vadd.f32 %v612, %v660
          %v662 = vpop.f32.mrf.mxu0
          %v663 = vpop.f32.mrf.mxu0
          %v664 = vpop.f32.mrf.mxu0
          %665 = vdwg.mxu0
          %v666 = vpack.c.bf16 %v598, %v598
          %vm667 = vcmask 257024
          %668 = vst.msk [vmem:[#allocation2] sm:$0xf] %vm667, %v666
          %v669 = vpack.c.bf16 %v661, %v661
          %670 = vst.msk [vmem:[#allocation3] sm:$0xf] %vm667, %v669
        $region96: #{tpu_custom_call.1} parent=63 // pred_fallthru
          _
        %v671 = vld [vmem:[%s457] sm:$0xf]
        %v672 = vld [vmem:[#allocation12] sm:$0xf]
        %v673 = vld [vmem:[#allocation12 + $0x4] sm:$0xf]
        %v674 = vld [vmem:[#allocation12 + $0x8] sm:$0xf]
        %v675 = vld [vmem:[#allocation12 + $0xc] sm:$0xf]
        %v676 = vld [vmem:[%s4] sm:$0x1]
        %v678 = vlaneseq
        %v679 = vshrl.u32 %v678, 7
        %v680 = vsub.s32 0, %v679
        %v681 = vrot.slane %v676, %v680
        %v687 = vunpack.c.l.b16 %v672
        %v688 = vunpack.c.l.b16 %v673
        %v689 = vunpack.c.l.b16 %v674
        %v690 = vunpack.c.l.b16 %v675
        %v691 = vpack.c.b16 %v688, %v687
        %v692 = vpack.c.b16 %v690, %v689
        %vm695 = vcmask 261120
        %v697 = vsel %vm695, %v671, 0
        %699 = vmatprep.subr.bf16.mxu0 0
        %700 = vmatpush1.bf16.msra.mxu0 0
        %701 = vmatprep.subr.bf16.mxu0 0
        %702 = vmatpush1.bf16.msra.mxu0 0
        %703 = vmatprep.subr.bf16.mxu0 0
        %704 = vmatpush1.bf16.msra.mxu0 0
        %705 = vmatprep.subr.bf16.mxu0 0
        %706 = vmatpush1.bf16.msra.mxu0 0
        %707 = vmatprep.subr.bf16.mxu0 0
        %708 = vmatpush1.bf16.msra.mxu0 0
        %709 = vmatprep.subr.bf16.mxu0 0
        %710 = vmatpush1.bf16.msra.mxu0 0
        %711 = vmatprep.subr.bf16.mxu0 0
        %712 = vmatpush1.bf16.msra.mxu0 %v692
        %713 = vmatprep.subr.bf16.mxu0 0
        %714 = vmatpush1.bf16.msra.mxu0 %v691
        %715 = vmatprep.subr.bf16.mxu0 0
        %716 = vmatpush2.bf16.msra.mxu0 0
        %717 = vmatprep.subr.bf16.mxu0 0
        %718 = vmatpush2.bf16.msra.mxu0 0
        %719 = vmatprep.subr.bf16.mxu0 0
        %720 = vmatpush2.bf16.msra.mxu0 0
        %721 = vmatprep.subr.bf16.mxu0 0
        %722 = vmatpush2.bf16.msra.mxu0 0
        %723 = vmatprep.subr.bf16.mxu0 0
        %724 = vmatpush2.bf16.msra.mxu0 0
        %725 = vmatprep.subr.bf16.mxu0 0
        %726 = vmatpush2.bf16.msra.mxu0 0
        %727 = vmatprep.subr.bf16.mxu0 0
        %728 = vmatpush2.bf16.msra.mxu0 0
        %729 = vmatprep.subr.bf16.mxu0 0
        %730 = vmatpush2.bf16.msra.mxu0 0
        %731 = vmatprep.mubr.bf16.mxu0 0
        %732 = vmatmul.mubr.bf16.gmra.mxu0 %v697
        %v733 = vpop.f32.mrf.mxu0
        %v734 = vadd.f32 %v681, %v733
        %v735 = vpop.f32.mrf.mxu0
        %v736 = vpop.f32.mrf.mxu0
        %v737 = vpop.f32.mrf.mxu0
        %738 = vdwg.mxu0
        %v739 = vpack.c.bf16 %v734, %v734
        %v740 = vld [vmem:[#allocation2] sm:$0xf]
        %v741 = vld [vmem:[#allocation3] sm:$0xf]
        %vm742 = vcmask 64512
        %v744 = vsel %vm742, %v739, 0
        %v747 = vsel %vm742, %v740, 0
        %749 = vmatprep.subr.bf16.mxu0 0
        %750 = vmatpush1.bf16.xpose.msra.mxu0 0
        %751 = vmatprep.subr.bf16.mxu0 0
        %752 = vmatpush1.bf16.xpose.msra.mxu0 0
        %753 = vmatprep.subr.bf16.mxu0 0
        %754 = vmatpush1.bf16.xpose.msra.mxu0 0
        %755 = vmatprep.subr.bf16.mxu0 0
        %756 = vmatpush1.bf16.xpose.msra.mxu0 0
        %757 = vmatprep.subr.bf16.mxu0 0
        %758 = vmatpush1.bf16.xpose.msra.mxu0 0
        %759 = vmatprep.subr.bf16.mxu0 0
        %760 = vmatpush1.bf16.xpose.msra.mxu0 0
        %761 = vmatprep.subr.bf16.mxu0 0
        %762 = vmatpush1.bf16.xpose.msra.mxu0 0
        %763 = vmatprep.subr.bf16.mxu0 0
        %764 = vmatpush1.bf16.xpose.msra.mxu0 %v747
        %765 = vmatprep.subr.bf16.mxu0 0
        %766 = vmatpush2.bf16.xpose.msra.mxu0 0
        %767 = vmatprep.subr.bf16.mxu0 0
        %768 = vmatpush2.bf16.xpose.msra.mxu0 0
        %769 = vmatprep.subr.bf16.mxu0 0
        %770 = vmatpush2.bf16.xpose.msra.mxu0 0
        %771 = vmatprep.subr.bf16.mxu0 0
        %772 = vmatpush2.bf16.xpose.msra.mxu0 0
        %773 = vmatprep.subr.bf16.mxu0 0
        %774 = vmatpush2.bf16.xpose.msra.mxu0 0
        %775 = vmatprep.subr.bf16.mxu0 0
        %776 = vmatpush2.bf16.xpose.msra.mxu0 0
        %777 = vmatprep.subr.bf16.mxu0 0
        %778 = vmatpush2.bf16.xpose.msra.mxu0 0
        %779 = vmatprep.subr.bf16.mxu0 0
        %780 = vmatpush2.bf16.xpose.msra.mxu0 0
        %781 = vmatprep.mubr.bf16.mxu0 0
        %782 = vmatmul.mubr.bf16.gmra.mxu0 %v744
        %v783 = vpop.f32.mrf.mxu0
        %v784 = vadd.f32 0.0, %v783
        %v785 = vpop.f32.mrf.mxu0
        %v786 = vpop.f32.mrf.mxu0
        %v787 = vpop.f32.mrf.mxu0
        %788 = vdwg.mxu0
        %790 = vrot.lane.b32.xlu0 %v739, 120
        %v791 = vpop.permute.xlu0 %790
        %v793 = vunpack.c.l.b16 %v740
        %v794 = vpack.c.b16 %v793, %v793
        %795 = vrot.lane.b32.xlu0 %v794, 120
        %v796 = vpop.permute.xlu0 %795
        %v798 = vsel %vm742, %v791, 0
        %v801 = vsel %vm742, %v796, 0
        %803 = vmatprep.subr.bf16.mxu0 0
        %804 = vmatpush1.bf16.xpose.msra.mxu0 0
        %805 = vmatprep.subr.bf16.mxu0 0
        %806 = vmatpush1.bf16.xpose.msra.mxu0 0
        %807 = vmatprep.subr.bf16.mxu0 0
        %808 = vmatpush1.bf16.xpose.msra.mxu0 0
        %809 = vmatprep.subr.bf16.mxu0 0
        %810 = vmatpush1.bf16.xpose.msra.mxu0 0
        %811 = vmatprep.subr.bf16.mxu0 0
        %812 = vmatpush1.bf16.xpose.msra.mxu0 0
        %813 = vmatprep.subr.bf16.mxu0 0
        %814 = vmatpush1.bf16.xpose.msra.mxu0 0
        %815 = vmatprep.subr.bf16.mxu0 0
        %816 = vmatpush1.bf16.xpose.msra.mxu0 0
        %817 = vmatprep.subr.bf16.mxu0 0
        %818 = vmatpush1.bf16.xpose.msra.mxu0 %v801
        %819 = vmatprep.subr.bf16.mxu0 0
        %820 = vmatpush2.bf16.xpose.msra.mxu0 0
        %821 = vmatprep.subr.bf16.mxu0 0
        %822 = vmatpush2.bf16.xpose.msra.mxu0 0
        %823 = vmatprep.subr.bf16.mxu0 0
        %824 = vmatpush2.bf16.xpose.msra.mxu0 0
        %825 = vmatprep.subr.bf16.mxu0 0
        %826 = vmatpush2.bf16.xpose.msra.mxu0 0
        %827 = vmatprep.subr.bf16.mxu0 0
        %828 = vmatpush2.bf16.xpose.msra.mxu0 0
        %829 = vmatprep.subr.bf16.mxu0 0
        %830 = vmatpush2.bf16.xpose.msra.mxu0 0
        %831 = vmatprep.subr.bf16.mxu0 0
        %832 = vmatpush2.bf16.xpose.msra.mxu0 0
        %833 = vmatprep.subr.bf16.mxu0 0
        %834 = vmatpush2.bf16.xpose.msra.mxu0 0
        %835 = vmatprep.mubr.bf16.mxu0 0
        %836 = vmatmul.mubr.bf16.gmra.mxu0 %v798
        %v837 = vpop.f32.mrf.mxu0
        %v838 = vadd.f32 0.0, %v837
        %v839 = vpop.f32.mrf.mxu0
        %v840 = vpop.f32.mrf.mxu0
        %v841 = vpop.f32.mrf.mxu0
        %842 = vdwg.mxu0
        %v843 = vsel %vm742, %v784, -inf
        %844 = vmax.xlane.f32.xlu0 %v843
        %v845 = vpop.xlane.xlu0 %844
        %v846 = vsub.f32 %v784, %v845
        %v847 = vmul.f32 %v846, 1.442695
        %v848 = vpow.pop %v847
        %v849 = vsel %vm742, %v848, 0.0
        %850 = vadd.xlane.f32.xlu0 %v849
        %v851 = vpop.xlane.xlu0 %850
        %v852 = vrcp.pop %v851
        %v853 = vmul.f32 %v848, %v852
        %v854 = vsel %vm742, %v838, -inf
        %855 = vmax.xlane.f32.xlu0 %v854
        %v856 = vpop.xlane.xlu0 %855
        %v857 = vsub.f32 %v838, %v856
        %v858 = vmul.f32 %v857, 1.442695
        %v859 = vpow.pop %v858
        %v860 = vsel %vm742, %v859, 0.0
        %861 = vadd.xlane.f32.xlu0 %v860
        %v862 = vpop.xlane.xlu0 %861
        %v863 = vrcp.pop %v862
        %v864 = vmul.f32 %v859, %v863
        %s865 = sld [smem:[#allocation6]]
        %v866 = vstv %s865
        %v867 = vmul.f32 %v866, %v864
        %v868 = vsub.f32 %v853, %v867
        %v869 = vpack.c.bf16 %v868, %v868
        %v871 = vsel %vm742, %v869, 0
        %vm873 = vcmask 1043456
        %v875 = vsel %vm873, %v741, 0
        %877 = vmatprep.subr.bf16.mxu0 0
        %878 = vmatpush1.bf16.msra.mxu0 0
        %879 = vmatprep.subr.bf16.mxu0 0
        %880 = vmatpush1.bf16.msra.mxu0 0
        %881 = vmatprep.subr.bf16.mxu0 0
        %882 = vmatpush1.bf16.msra.mxu0 0
        %883 = vmatprep.subr.bf16.mxu0 0
        %884 = vmatpush1.bf16.msra.mxu0 0
        %885 = vmatprep.subr.bf16.mxu0 0
        %886 = vmatpush1.bf16.msra.mxu0 0
        %887 = vmatprep.subr.bf16.mxu0 0
        %888 = vmatpush1.bf16.msra.mxu0 0
        %889 = vmatprep.subr.bf16.mxu0 0
        %890 = vmatpush1.bf16.msra.mxu0 0
        %891 = vmatprep.subr.bf16.mxu0 0
        %892 = vmatpush1.bf16.msra.mxu0 %v875
        %893 = vmatprep.subr.bf16.mxu0 0
        %894 = vmatpush2.bf16.msra.mxu0 0
        %895 = vmatprep.subr.bf16.mxu0 0
        %896 = vmatpush2.bf16.msra.mxu0 0
        %897 = vmatprep.subr.bf16.mxu0 0
        %898 = vmatpush2.bf16.msra.mxu0 0
        %899 = vmatprep.subr.bf16.mxu0 0
        %900 = vmatpush2.bf16.msra.mxu0 0
        %901 = vmatprep.subr.bf16.mxu0 0
        %902 = vmatpush2.bf16.msra.mxu0 0
        %903 = vmatprep.subr.bf16.mxu0 0
        %904 = vmatpush2.bf16.msra.mxu0 0
        %905 = vmatprep.subr.bf16.mxu0 0
        %906 = vmatpush2.bf16.msra.mxu0 0
        %907 = vmatprep.subr.bf16.mxu0 0
        %908 = vmatpush2.bf16.msra.mxu0 0
        %909 = vmatprep.mubr.bf16.mxu0 0
        %910 = vmatmul.mubr.bf16.gmra.mxu0 %v871
        %v911 = vpop.f32.mrf.mxu0
        %v912 = vadd.f32 0.0, %v911
        %v913 = vpop.f32.mrf.mxu0
        %v914 = vpop.f32.mrf.mxu0
        %v915 = vpop.f32.mrf.mxu0
        %916 = vdwg.mxu0
        %v917 = vmul.f32 %v912, %v912
        %vm918 = vcmask 130048
        %v919 = vsel %vm918, %v917, 0.0
        %920 = vadd.xlane.f32.xlu0 %v919
        %v921 = vpop.xlane.xlu0 %920
        %v922 = vrcp.pop 16.0
        %v923 = vmul.f32 %v921, %v922
        %v924 = vld [vmem:[#allocation18] sm:$0x1]
        %v925 = vadd.f32 %v923, 1.1920929e-07
        %v926 = vrsqrt.pop %v925
        %v927 = vmul.f32 %v912, %v926
        %v929 = vlaneseq
        %v930 = vshrl.u32 %v929, 7
        %v931 = vsub.s32 0, %v930
        %v932 = vrot.slane %v924, %v931
        %v934 = vmul.f32 %v927, %v932
        %v935 = vpack.c.bf16 %v934, %v934
        %vm936 = vcmask 125952
        %937 = vst.msk [vmem:[#allocation4] sm:$0xf] %vm936, %v935
        %938 = vrot.lane.b32.xlu0 %v739, 112
        %v939 = vpop.permute.xlu0 %938
        %940 = vrot.lane.b32.xlu0 %v794, 112
        %v941 = vpop.permute.xlu0 %940
        %v943 = vsel %vm742, %v939, 0
        %v946 = vsel %vm742, %v941, 0
        %948 = vmatprep.subr.bf16.mxu0 0
        %949 = vmatpush1.bf16.xpose.msra.mxu0 0
        %950 = vmatprep.subr.bf16.mxu0 0
        %951 = vmatpush1.bf16.xpose.msra.mxu0 0
        %952 = vmatprep.subr.bf16.mxu0 0
        %953 = vmatpush1.bf16.xpose.msra.mxu0 0
        %954 = vmatprep.subr.bf16.mxu0 0
        %955 = vmatpush1.bf16.xpose.msra.mxu0 0
        %956 = vmatprep.subr.bf16.mxu0 0
        %957 = vmatpush1.bf16.xpose.msra.mxu0 0
        %958 = vmatprep.subr.bf16.mxu0 0
        %959 = vmatpush1.bf16.xpose.msra.mxu0 0
        %960 = vmatprep.subr.bf16.mxu0 0
        %961 = vmatpush1.bf16.xpose.msra.mxu0 0
        %962 = vmatprep.subr.bf16.mxu0 0
        %963 = vmatpush1.bf16.xpose.msra.mxu0 %v946
        %964 = vmatprep.subr.bf16.mxu0 0
        %965 = vmatpush2.bf16.xpose.msra.mxu0 0
        %966 = vmatprep.subr.bf16.mxu0 0
        %967 = vmatpush2.bf16.xpose.msra.mxu0 0
        %968 = vmatprep.subr.bf16.mxu0 0
        %969 = vmatpush2.bf16.xpose.msra.mxu0 0
        %970 = vmatprep.subr.bf16.mxu0 0
        %971 = vmatpush2.bf16.xpose.msra.mxu0 0
        %972 = vmatprep.subr.bf16.mxu0 0
        %973 = vmatpush2.bf16.xpose.msra.mxu0 0
        %974 = vmatprep.subr.bf16.mxu0 0
        %975 = vmatpush2.bf16.xpose.msra.mxu0 0
        %976 = vmatprep.subr.bf16.mxu0 0
        %977 = vmatpush2.bf16.xpose.msra.mxu0 0
        %978 = vmatprep.subr.bf16.mxu0 0
        %979 = vmatpush2.bf16.xpose.msra.mxu0 0
        %980 = vmatprep.mubr.bf16.mxu0 0
        %981 = vmatmul.mubr.bf16.gmra.mxu0 %v943
        %v982 = vpop.f32.mrf.mxu0
        %v983 = vadd.f32 0.0, %v982
        %v984 = vpop.f32.mrf.mxu0
        %v985 = vpop.f32.mrf.mxu0
        %v986 = vpop.f32.mrf.mxu0
        %987 = vdwg.mxu0
        %988 = vrot.lane.b32.xlu0 %v739, 104
        %v989 = vpop.permute.xlu0 %988
        %990 = vrot.lane.b32.xlu0 %v794, 104
        %v991 = vpop.permute.xlu0 %990
        %v993 = vsel %vm742, %v989, 0
        %v996 = vsel %vm742, %v991, 0
        %998 = vmatprep.subr.bf16.mxu0 0
        %999 = vmatpush1.bf16.xpose.msra.mxu0 0
        %1000 = vmatprep.subr.bf16.mxu0 0
        %1001 = vmatpush1.bf16.xpose.msra.mxu0 0
        %1002 = vmatprep.subr.bf16.mxu0 0
        %1003 = vmatpush1.bf16.xpose.msra.mxu0 0
        %1004 = vmatprep.subr.bf16.mxu0 0
        %1005 = vmatpush1.bf16.xpose.msra.mxu0 0
        %1006 = vmatprep.subr.bf16.mxu0 0
        %1007 = vmatpush1.bf16.xpose.msra.mxu0 0
        %1008 = vmatprep.subr.bf16.mxu0 0
        %1009 = vmatpush1.bf16.xpose.msra.mxu0 0
        %1010 = vmatprep.subr.bf16.mxu0 0
        %1011 = vmatpush1.bf16.xpose.msra.mxu0 0
        %1012 = vmatprep.subr.bf16.mxu0 0
        %1013 = vmatpush1.bf16.xpose.msra.mxu0 %v996
        %1014 = vmatprep.subr.bf16.mxu0 0
        %1015 = vmatpush2.bf16.xpose.msra.mxu0 0
        %1016 = vmatprep.subr.bf16.mxu0 0
        %1017 = vmatpush2.bf16.xpose.msra.mxu0 0
        %1018 = vmatprep.subr.bf16.mxu0 0
        %1019 = vmatpush2.bf16.xpose.msra.mxu0 0
        %1020 = vmatprep.subr.bf16.mxu0 0
        %1021 = vmatpush2.bf16.xpose.msra.mxu0 0
        %1022 = vmatprep.subr.bf16.mxu0 0
        %1023 = vmatpush2.bf16.xpose.msra.mxu0 0
        %1024 = vmatprep.subr.bf16.mxu0 0
        %1025 = vmatpush2.bf16.xpose.msra.mxu0 0
        %1026 = vmatprep.subr.bf16.mxu0 0
        %1027 = vmatpush2.bf16.xpose.msra.mxu0 0
        %1028 = vmatprep.subr.bf16.mxu0 0
        %1029 = vmatpush2.bf16.xpose.msra.mxu0 0
        %1030 = vmatprep.mubr.bf16.mxu0 0
        %1031 = vmatmul.mubr.bf16.gmra.mxu0 %v993
        %v1032 = vpop.f32.mrf.mxu0
        %v1033 = vadd.f32 0.0, %v1032
        %v1034 = vpop.f32.mrf.mxu0
        %v1035 = vpop.f32.mrf.mxu0
        %v1036 = vpop.f32.mrf.mxu0
        %1037 = vdwg.mxu0
        %v1038 = vsel %vm742, %v983, -inf
        %1039 = vmax.xlane.f32.xlu0 %v1038
        %v1040 = vpop.xlane.xlu0 %1039
        %v1041 = vsub.f32 %v983, %v1040
        %v1042 = vmul.f32 %v1041, 1.442695
        %v1043 = vpow.pop %v1042
        %v1044 = vsel %vm742, %v1043, 0.0
        %1045 = vadd.xlane.f32.xlu0 %v1044
        %v1046 = vpop.xlane.xlu0 %1045
        %v1047 = vrcp.pop %v1046
        %v1048 = vmul.f32 %v1043, %v1047
        %v1049 = vsel %vm742, %v1033, -inf
        %1050 = vmax.xlane.f32.xlu0 %v1049
        %v1051 = vpop.xlane.xlu0 %1050
        %v1052 = vsub.f32 %v1033, %v1051
        %v1053 = vmul.f32 %v1052, 1.442695
        %v1054 = vpow.pop %v1053
        %v1055 = vsel %vm742, %v1054, 0.0
        %1056 = vadd.xlane.f32.xlu0 %v1055
        %v1057 = vpop.xlane.xlu0 %1056
        %v1058 = vrcp.pop %v1057
        %v1059 = vmul.f32 %v1054, %v1058
        %s1060 = sld [smem:[#allocation6 + $0x1]]
        %v1061 = vstv %s1060
        %v1062 = vmul.f32 %v1061, %v1059
        %v1063 = vsub.f32 %v1048, %v1062
        %v1064 = vpack.c.bf16 %v1063, %v1063
        %v1066 = vunpack.c.l.b16 %v741
        %v1067 = vpack.c.b16 %v1066, %v1066
        %1068 = vrot.lane.b32.xlu0 %v1067, 112
        %v1069 = vpop.permute.xlu0 %1068
        %v1071 = vsel %vm742, %v1064, 0
        %v1074 = vsel %vm873, %v1069, 0
        %1076 = vmatprep.subr.bf16.mxu0 0
        %1077 = vmatpush1.bf16.msra.mxu0 0
        %1078 = vmatprep.subr.bf16.mxu0 0
        %1079 = vmatpush1.bf16.msra.mxu0 0
        %1080 = vmatprep.subr.bf16.mxu0 0
        %1081 = vmatpush1.bf16.msra.mxu0 0
        %1082 = vmatprep.subr.bf16.mxu0 0
        %1083 = vmatpush1.bf16.msra.mxu0 0
        %1084 = vmatprep.subr.bf16.mxu0 0
        %1085 = vmatpush1.bf16.msra.mxu0 0
        %1086 = vmatprep.subr.bf16.mxu0 0
        %1087 = vmatpush1.bf16.msra.mxu0 0
        %1088 = vmatprep.subr.bf16.mxu0 0
        %1089 = vmatpush1.bf16.msra.mxu0 0
        %1090 = vmatprep.subr.bf16.mxu0 0
        %1091 = vmatpush1.bf16.msra.mxu0 %v1074
        %1092 = vmatprep.subr.bf16.mxu0 0
        %1093 = vmatpush2.bf16.msra.mxu0 0
        %1094 = vmatprep.subr.bf16.mxu0 0
        %1095 = vmatpush2.bf16.msra.mxu0 0
        %1096 = vmatprep.subr.bf16.mxu0 0
        %1097 = vmatpush2.bf16.msra.mxu0 0
        %1098 = vmatprep.subr.bf16.mxu0 0
        %1099 = vmatpush2.bf16.msra.mxu0 0
        %1100 = vmatprep.subr.bf16.mxu0 0
        %1101 = vmatpush2.bf16.msra.mxu0 0
        %1102 = vmatprep.subr.bf16.mxu0 0
        %1103 = vmatpush2.bf16.msra.mxu0 0
        %1104 = vmatprep.subr.bf16.mxu0 0
        %1105 = vmatpush2.bf16.msra.mxu0 0
        %1106 = vmatprep.subr.bf16.mxu0 0
        %1107 = vmatpush2.bf16.msra.mxu0 0
        %1108 = vmatprep.mubr.bf16.mxu0 0
        %1109 = vmatmul.mubr.bf16.gmra.mxu0 %v1071
        %v1110 = vpop.f32.mrf.mxu0
        %v1111 = vadd.f32 0.0, %v1110
        %v1112 = vpop.f32.mrf.mxu0
        %v1113 = vpop.f32.mrf.mxu0
        %v1114 = vpop.f32.mrf.mxu0
        %1115 = vdwg.mxu0
        %v1116 = vmul.f32 %v1111, %v1111
        %v1117 = vsel %vm918, %v1116, 0.0
        %1118 = vadd.xlane.f32.xlu0 %v1117
        %v1119 = vpop.xlane.xlu0 %1118
        %v1120 = vmul.f32 %v1119, %v922
        %v1121 = vld [vmem:[#allocation18] sm:$0x1]
        %v1122 = vadd.f32 %v1120, 1.1920929e-07
        %v1123 = vrsqrt.pop %v1122
        %v1124 = vmul.f32 %v1111, %v1123
        %v1126 = vlaneseq
        %v1127 = vshrl.u32 %v1126, 7
        %v1128 = vsub.s32 0, %v1127
        %v1129 = vrot.slane %v1121, %v1128
        %1130 = vrot.lane.b32.xlu0 %v1129, 112
        %v1131 = vpop.permute.xlu0 %1130
        %v1133 = vmul.f32 %v1124, %v1131
        %v1134 = vpack.c.bf16 %v1133, %v1133
        %v1136 = vunpack.c.l.b16 %v1134
        %v1137 = vpack.c.b16 %v1136, %v1136
        %1138 = vrot.lane.b32.xlu0 %v1137, 16
        %v1139 = vpop.permute.xlu0 %1138
        %vm1141 = vcmask 257152
        %1142 = vst.msk [vmem:[#allocation4] sm:$0xf] %vm1141, %v1139
        %v1143 = vld [vmem:[#allocation4] sm:$0xf]
        %v1144 = vld [vmem:[%s10] sm:$0xf]
        %v1145 = vld [vmem:[%s10 + $0x4] sm:$0xf]
        %v1146 = vld [vmem:[%s10 + $0x8] sm:$0xf]
        %v1147 = vld [vmem:[%s10 + $0xc] sm:$0xf]
        %v1148 = vld [vmem:[%s11] sm:$0x1]
        %v1150 = vlaneseq
        %v1151 = vshrl.u32 %v1150, 7
        %v1152 = vsub.s32 0, %v1151
        %v1153 = vrot.slane %v1148, %v1152
        %v1159 = vunpack.c.l.b16 %v1144
        %v1160 = vunpack.c.l.b16 %v1145
        %v1161 = vunpack.c.l.b16 %v1146
        %v1162 = vunpack.c.l.b16 %v1147
        %v1163 = vpack.c.b16 %v1160, %v1159
        %v1164 = vpack.c.b16 %v1162, %v1161
        %v1168 = vsel %vm695, %v1143, 0
        %1170 = vmatprep.subr.bf16.mxu0 0
        %1171 = vmatpush1.bf16.msra.mxu0 0
        %1172 = vmatprep.subr.bf16.mxu0 0
        %1173 = vmatpush1.bf16.msra.mxu0 0
        %1174 = vmatprep.subr.bf16.mxu0 0
        %1175 = vmatpush1.bf16.msra.mxu0 0
        %1176 = vmatprep.subr.bf16.mxu0 0
        %1177 = vmatpush1.bf16.msra.mxu0 0
        %1178 = vmatprep.subr.bf16.mxu0 0
        %1179 = vmatpush1.bf16.msra.mxu0 0
        %1180 = vmatprep.subr.bf16.mxu0 0
        %1181 = vmatpush1.bf16.msra.mxu0 0
        %1182 = vmatprep.subr.bf16.mxu0 0
        %1183 = vmatpush1.bf16.msra.mxu0 %v1164
        %1184 = vmatprep.subr.bf16.mxu0 0
        %1185 = vmatpush1.bf16.msra.mxu0 %v1163
        %1186 = vmatprep.subr.bf16.mxu0 0
        %1187 = vmatpush2.bf16.msra.mxu0 0
        %1188 = vmatprep.subr.bf16.mxu0 0
        %1189 = vmatpush2.bf16.msra.mxu0 0
        %1190 = vmatprep.subr.bf16.mxu0 0
        %1191 = vmatpush2.bf16.msra.mxu0 0
        %1192 = vmatprep.subr.bf16.mxu0 0
        %1193 = vmatpush2.bf16.msra.mxu0 0
        %1194 = vmatprep.subr.bf16.mxu0 0
        %1195 = vmatpush2.bf16.msra.mxu0 0
        %1196 = vmatprep.subr.bf16.mxu0 0
        %1197 = vmatpush2.bf16.msra.mxu0 0
        %1198 = vmatprep.subr.bf16.mxu0 0
        %1199 = vmatpush2.bf16.msra.mxu0 0
        %1200 = vmatprep.subr.bf16.mxu0 0
        %1201 = vmatpush2.bf16.msra.mxu0 0
        %1202 = vmatprep.mubr.bf16.mxu0 0
        %1203 = vmatmul.mubr.bf16.gmra.mxu0 %v1168
        %v1204 = vpop.f32.mrf.mxu0
        %v1205 = vadd.f32 %v1153, %v1204
        %v1206 = vpop.f32.mrf.mxu0
        %v1207 = vpop.f32.mrf.mxu0
        %v1208 = vpop.f32.mrf.mxu0
        %1209 = vdwg.mxu0
        %1210 = vst.msk [vmem:[%s529] sm:$0xff] %vm695, %v1205
        %s1211 = sand.u32 %s303, 1
        %s1212 = scalar_lea.sflag [#allocation9], %s1211
        %s1213 = sand.u32 %s303, 1
        %s1214 = smul.addr %s1213, 8
        %s1215 = scalar_lea.vmem [#allocation19], %s1214
        // Predicated region
        $region97: #{tpu_custom_call.1} parent=63 // pred_check
          %p1216 = pneg %p313
        $region98: #{tpu_custom_call.1} parent=63 // pred_check_branch
          %1218 = sbr.rel (%p1216) target = $region100
        $region99: #{tpu_custom_call.1} parent=63 // pred_region
          %s1220 = ssub.s32 128, 128
          %1221 = vsyncadd %s1212, %s1220
          %s1222 = smul.addr %s42, 2
          %s1223 = sadd.s32 %s43, %s1222
          %s1224 = smul.addr %s1223, 128
          %s1225 = scalar_lea.hbm %s12, %s1224
          %s1227 = sshll.u32 %s1215, 4
          %s1228 = int_to_ptr.vmem [resolvable:$true] %s1227
          %1230 = dma.vmem_to_hbm [thread:$0]  %s1228, 128, %s1225, %s1212
        $region100: #{tpu_custom_call.1} parent=63 // pred_fallthru
          _
      $region64: #{tpu_custom_call.1} parent=5 // pred_fallthru
        _
      %p1231 = scmp.le.s32.totalorder 2, %s33
      // Predicated region
      $region101: #{tpu_custom_call.1} parent=5 // pred_check
        %p1232 = pneg %p1231
      $region102: #{tpu_custom_call.1} parent=5 // pred_check_branch
        %1234 = sbr.rel (%p1232) target = $region104
      $region103: #{tpu_custom_call.1} parent=5 // pred_region
        %s1235 = ssub.s32 %s33, 2
        // Predicated region
        $region105: #{tpu_custom_call.1} parent=103 // pred_check
          %p1236 = pneg %p319
        $region106: #{tpu_custom_call.1} parent=103 // pred_check_branch
          %1238 = sbr.rel (%p1236) target = $region108
        $region107: #{tpu_custom_call.1} parent=103 // pred_region
          %s1239 = sand.u32 %s304, 1
          %s1240 = scalar_lea.sflag [#allocation9], %s1239
          %s1241 = sand.u32 %s304, 1
          %s1242 = smul.addr %s1241, 8
          %s1243 = scalar_lea.vmem [#allocation19], %s1242
          %1244 = dma.done %s1240, 128
        $region108: #{tpu_custom_call.1} parent=103 // pred_fallthru
          _
      $region104: #{tpu_custom_call.1} parent=5 // pred_fallthru
        _
    $region6: #{tpu_custom_call.1} parent=1 // loop_footer
      %s37 = sadd.s32 1, %s33
    $region7: #{tpu_custom_call.1} parent=1 // loop_footer_branch
      %32 = sbr.rel target = $region3
    $region8: #{tpu_custom_call.1} parent=1 // loop_exit
      _
    %1245 = vsyncpa [#allocation8], 1
    %s1246 = scalar_lea.sflag [#allocation8], 1
    %1247 = vsyncpa %s1246, 1
    %1248 = vsyncpa [#allocation11], 1
    %s1249 = scalar_lea.sflag [#allocation11], 1
    %1250 = vsyncpa %s1249, 1
    %1251 = vsyncpa [#allocation14], 1
    %1252 = vsyncpa [#allocation17], 1
    %1253 = vsyncpa [#allocation9], 1
    %s1254 = scalar_lea.sflag [#allocation9], 1
    %1255 = vsyncpa %s1254, 1

// kernel: tpu_custom_call.1
$region0: #{tpu_custom_call.1}
  #allocation0 [shape = 'u32[]', space=smem, size = 0x4, offset = 0x4, fixed_abs, tag = 'smem constant byte address 0x4 - core index']
  #allocation1 [shape = 'u32[144,128]{1,0:T(1,128)}', space=vmem, size = 0x12000, scoped, tag = 'internal scratch']
  #allocation2 [shape = 'bf16[8,32]{1,0:T(8,128)(2,1)}', space=vmem, size = 0x800, scoped, tag = 'scratch operand']
  #allocation3 [shape = 'bf16[8,32]{1,0:T(8,128)(2,1)}', space=vmem, size = 0x800, scoped, tag = 'scratch operand']
  #allocation4 [shape = 'bf16[8,32]{1,0:T(8,128)(2,1)}', space=vmem, size = 0x800, scoped, tag = 'scratch operand']
  #allocation5 [shape = 's32[1]{0}', space=sflag, size = 0x4, scoped, tag = 'scoped memory for tpu_custom_call.1']
  #allocation6 [shape = 'u8[512]{0}', space=smem, size = 0x200, scoped, tag = 'prefetched SMEM operand 0']
  %s0 = inlined_call_operand.hbm [shape: f32[2], index: 0, kind: input, shape index: {}]
  %s1 = inlined_call_operand.hbm [shape: bf16[2,16,32], index: 1, kind: input, shape index: {}]
  %s2 = inlined_call_operand.hbm [shape: bf16[2,8,32], index: 2, kind: input, shape index: {}]
  %s3 = inlined_call_operand.hbm [shape: bf16[32,32], index: 3, kind: input, shape index: {}]
  %s4 = inlined_call_operand.vmem [shape: f32[1,32], index: 4, kind: input, shape index: {}]
  %s5 = inlined_call_operand.hbm [shape: bf16[32,32], index: 5, kind: input, shape index: {}]
  %s6 = inlined_call_operand.vmem [shape: f32[1,32], index: 6, kind: input, shape index: {}]
  %s7 = inlined_call_operand.hbm [shape: bf16[32,32], index: 7, kind: input, shape index: {}]
  %s8 = inlined_call_operand.hbm [shape: f32[1,32], index: 8, kind: input, shape index: {}]
  %s9 = inlined_call_operand.hbm [shape: f32[1,32], index: 9, kind: input, shape index: {}]
  %s10 = inlined_call_operand.vmem [shape: bf16[32,32], index: 10, kind: input, shape index: {}]
  %s11 = inlined_call_operand.vmem [shape: f32[1,32], index: 11, kind: input, shape index: {}]
  %s12 = inlined_call_operand.hbm [shape: f32[2,16,32], index: 12, kind: output, shape index: {}]
  %s13 = sld [smem:[#allocation0]]
  $region109: #{tpu_custom_call.1} parent=0
    _
  %s15 = ssub.s32 1, %s13
  %s16 = scalar_select 0, %s15, %s13
  %18 = dma.hbm_to_smem %s0, 16, [#allocation6], [#allocation5]
  %19 = dma.done [#allocation5], 16
  %20 = sfence
  $region1: #{tpu_custom_call.1} parent=0
    #allocation7 [shape = 'u8[4096]{0}', space=vmem, size = 0x1000, scoped, tag = 'input window, operand 1']
    #allocation8 [shape = 's32[2]{0}', space=sflag, size = 0x8, scoped, tag = 'scoped memory for tpu_custom_call.1']
    #allocation9 [shape = 's32[2]{0}', space=sflag, size = 0x8, scoped, tag = 'scoped memory for tpu_custom_call.1']
    #allocation10 [shape = 'u8[4096]{0}', space=vmem, size = 0x1000, scoped, tag = 'input window, operand 2']
    #allocation11 [shape = 's32[2]{0}', space=sflag, size = 0x8, scoped, tag = 'scoped memory for tpu_custom_call.1']
    #allocation12 [shape = 'u8[8192]{0}', space=vmem, size = 0x2000, scoped, tag = 'input window, operand 3, single buffered']
    #allocation13 [shape = 'u8[8192]{0}', space=vmem, size = 0x2000, scoped, tag = 'input window, operand 5, single buffered']
    #allocation14 [shape = 's32[1]{0}', space=sflag, size = 0x4, scoped, tag = 'scoped memory for tpu_custom_call.1']
    #allocation15 [shape = 'u8[8192]{0}', space=vmem, size = 0x2000, scoped, tag = 'input window, operand 7, single buffered']
    #allocation16 [shape = 'u8[512]{0}', space=vmem, size = 0x400, scoped, tag = 'input window, operand 8, single buffered']
    #allocation17 [shape = 's32[1]{0}', space=sflag, size = 0x4, scoped, tag = 'scoped memory for tpu_custom_call.1']
    #allocation18 [shape = 'u8[512]{0}', space=vmem, size = 0x400, scoped, tag = 'input window, operand 9, single buffered']
    #allocation19 [shape = 'u8[8192]{0}', space=vmem, size = 0x2000, scoped, tag = 'output window, operand 0']
    %21 = vsyncpa [#allocation8], 0
    %s22 = scalar_lea.sflag [#allocation8], 1
    %23 = vsyncpa %s22, 0
    %24 = vsyncpa [#allocation11], 0
    %s25 = scalar_lea.sflag [#allocation11], 1
    %26 = vsyncpa %s25, 0
    %27 = vsyncpa [#allocation14], 0
    %28 = vsyncpa [#allocation17], 0
    %29 = vsyncpa [#allocation9], 0
    %s30 = scalar_lea.sflag [#allocation9], 1
    %31 = vsyncpa %s30, 0
    loop: start=0, step=1, limit=6
    $region2: #{tpu_custom_call.1} parent=1 // loop_pre_header
      _
    $region3: #{tpu_custom_call.1} parent=1 // loop_header
      %s33 = sphi 0, %s37
      %p34 = scmp.ge.s32.totalorder %s33, 6
      %s40 = sphi 0, %s52
      %s41 = sphi 0, %s48
      %s42 = sphi 0, %s40
      %s43 = sphi 0, %s41
      %s44 = sphi 0, %s42
      %s45 = sphi 0, %s43
      %s57 = sphi 0, %s59
      %s60 = sphi 0, %s57
      %s61 = sphi 0, %s60
      %s77 = sphi 0, %s61
      %s83 = sphi 0, %s85
      %s86 = sphi 0, %s83
      %s87 = sphi 0, %s86
      %s103 = sphi 0, %s87
      %s107 = sphi 0, %s107
      %s109 = sphi 0, %s107
      %s110 = sphi 0, %s109
      %s124 = sphi 0, %s110
      %s128 = sphi 0, %s128
      %s130 = sphi 0, %s128
      %s131 = sphi 0, %s130
      %s145 = sphi 0, %s131
      %s149 = sphi 0, %s149
      %s151 = sphi 0, %s149
      %s152 = sphi 0, %s151
      %s166 = sphi 0, %s152
      %s170 = sphi 0, %s170
      %s172 = sphi 0, %s170
      %s173 = sphi 0, %s172
      %s187 = sphi 0, %s173
      %s191 = sphi 0, %s191
      %s193 = sphi 0, %s191
      %s194 = sphi 0, %s193
      %s208 = sphi 0, %s194
      %s212 = sphi 0, %s212
      %s214 = sphi 0, %s212
      %s215 = sphi 0, %s214
      %s229 = sphi 0, %s215
      %s233 = sphi 0, %s233
      %s235 = sphi 0, %s233
      %s236 = sphi 0, %s235
      %s250 = sphi 0, %s236
      %s254 = sphi 0, %s254
      %s256 = sphi 0, %s254
      %s257 = sphi 0, %s256
      %s271 = sphi 0, %s257
      %s275 = sphi 0, %s275
      %s277 = sphi 0, %s275
      %s278 = sphi 0, %s277
      %s292 = sphi 0, %s278
      %s300 = sphi 0, %s302
      %s303 = sphi 0, %s300
      %s304 = sphi 0, %s303
      %s320 = sphi 0, %s304
    $region4: #{tpu_custom_call.1} parent=1 // loop_header_branch
      %36 = sbr.rel (%p34) target = $region8
    $region5: #{tpu_custom_call.1} parent=1 // loop_body
      %s38 = ssub.s32 %s33, 1
      %s39 = ssub.s32 %s33, 2
      %s46 = sadd.s32 1, %s41
      %p47 = scmp.ge.s32.totalorder %s46, 2
      %s48 = scalar_select %p47, 0, %s46
      %s49 = sadd.s32 1, %s40
      %s50 = scalar_select %p47, %s49, %s40
      %p51 = scmp.ge.s32.totalorder %s50, 2
      %s52 = scalar_select %p51, 0, %s50
      %s53 = ssub.s32 %s40, %s52
      %s54 = ssub.s32 %s41, %s48
      %s55 = sor.u32 %s53, %s54
      %p56 = scmp.eq.s32.totalorder %s55, 0
      %s58 = sadd.s32 %s57, 1
      %s59 = scalar_select %p56, %s57, %s58
      %p62 = pneg %p56
      %p63 = scmp.eq.s32.totalorder %s33, 3
      %p64 = por %p62, %p63
      %p65 = scmp.ne.s32.totalorder %s57, %s60
      %p66 = scmp.eq.s32.totalorder %s33, 0
      %p67 = por %p65, %p66
      %p68 = scmp.ne.s32.totalorder %s57, %s60
      %p69 = scmp.eq.s32.totalorder %s38, 3
      %p70 = por %p68, %p69
      %p71 = scmp.ne.s32.totalorder %s60, %s61
      %p72 = scmp.eq.s32.totalorder %s38, 0
      %p73 = por %p71, %p72
      %p74 = scmp.ne.s32.totalorder %s60, %s61
      %p75 = scmp.eq.s32.totalorder %s39, 3
      %p76 = por %p74, %p75
      %p78 = scmp.ne.s32.totalorder %s61, %s77
      %p79 = scmp.eq.s32.totalorder %s39, 0
      %p80 = por %p78, %p79
      %s81 = ssub.s32 %s40, %s52
      %p82 = scmp.eq.s32.totalorder %s81, 0
      %s84 = sadd.s32 %s83, 1
      %s85 = scalar_select %p82, %s83, %s84
      %p88 = pneg %p82
      %p89 = scmp.eq.s32.totalorder %s33, 3
      %p90 = por %p88, %p89
      %p91 = scmp.ne.s32.totalorder %s83, %s86
      %p92 = scmp.eq.s32.totalorder %s33, 0
      %p93 = por %p91, %p92
      %p94 = scmp.ne.s32.totalorder %s83, %s86
      %p95 = scmp.eq.s32.totalorder %s38, 3
      %p96 = por %p94, %p95
      %p97 = scmp.ne.s32.totalorder %s86, %s87
      %p98 = scmp.eq.s32.totalorder %s38, 0
      %p99 = por %p97, %p98
      %p100 = scmp.ne.s32.totalorder %s86, %s87
      %p101 = scmp.eq.s32.totalorder %s39, 3
      %p102 = por %p100, %p101
      %p104 = scmp.ne.s32.totalorder %s87, %s103
      %p105 = scmp.eq.s32.totalorder %s39, 0
      %p106 = por %p104, %p105
      %s108 = sadd.s32 %s107, 1
      %p111 = scmp.eq.s32.totalorder %s33, 3
      %p112 = scmp.ne.s32.totalorder %s107, %s109
      %p113 = scmp.eq.s32.totalorder %s33, 0
      %p114 = por %p112, %p113
      %p115 = scmp.ne.s32.totalorder %s107, %s109
      %p116 = scmp.eq.s32.totalorder %s38, 3
      %p117 = por %p115, %p116
      %p118 = scmp.ne.s32.totalorder %s109, %s110
      %p119 = scmp.eq.s32.totalorder %s38, 0
      %p120 = por %p118, %p119
      %p121 = scmp.ne.s32.totalorder %s109, %s110
      %p122 = scmp.eq.s32.totalorder %s39, 3
      %p123 = por %p121, %p122
      %p125 = scmp.ne.s32.totalorder %s110, %s124
      %p126 = scmp.eq.s32.totalorder %s39, 0
      %p127 = por %p125, %p126
      %s129 = sadd.s32 %s128, 1
      %p132 = scmp.eq.s32.totalorder %s33, 3
      %p133 = scmp.ne.s32.totalorder %s128, %s130
      %p134 = scmp.eq.s32.totalorder %s33, 0
      %p135 = por %p133, %p134
      %p136 = scmp.ne.s32.totalorder %s128, %s130
      %p137 = scmp.eq.s32.totalorder %s38, 3
      %p138 = por %p136, %p137
      %p139 = scmp.ne.s32.totalorder %s130, %s131
      %p140 = scmp.eq.s32.totalorder %s38, 0
      %p141 = por %p139, %p140
      %p142 = scmp.ne.s32.totalorder %s130, %s131
      %p143 = scmp.eq.s32.totalorder %s39, 3
      %p144 = por %p142, %p143
      %p146 = scmp.ne.s32.totalorder %s131, %s145
      %p147 = scmp.eq.s32.totalorder %s39, 0
      %p148 = por %p146, %p147
      %s150 = sadd.s32 %s149, 1
      %p153 = scmp.eq.s32.totalorder %s33, 3
      %p154 = scmp.ne.s32.totalorder %s149, %s151
      %p155 = scmp.eq.s32.totalorder %s33, 0
      %p156 = por %p154, %p155
      %p157 = scmp.ne.s32.totalorder %s149, %s151
      %p158 = scmp.eq.s32.totalorder %s38, 3
      %p159 = por %p157, %p158
      %p160 = scmp.ne.s32.totalorder %s151, %s152
      %p161 = scmp.eq.s32.totalorder %s38, 0
      %p162 = por %p160, %p161
      %p163 = scmp.ne.s32.totalorder %s151, %s152
      %p164 = scmp.eq.s32.totalorder %s39, 3
      %p165 = por %p163, %p164
      %p167 = scmp.ne.s32.totalorder %s152, %s166
      %p168 = scmp.eq.s32.totalorder %s39, 0
      %p169 = por %p167, %p168
      %s171 = sadd.s32 %s170, 1
      %p174 = scmp.eq.s32.totalorder %s33, 3
      %p175 = scmp.ne.s32.totalorder %s170, %s172
      %p176 = scmp.eq.s32.totalorder %s33, 0
      %p177 = por %p175, %p176
      %p178 = scmp.ne.s32.totalorder %s170, %s172
      %p179 = scmp.eq.s32.totalorder %s38, 3
      %p180 = por %p178, %p179
      %p181 = scmp.ne.s32.totalorder %s172, %s173
      %p182 = scmp.eq.s32.totalorder %s38, 0
      %p183 = por %p181, %p182
      %p184 = scmp.ne.s32.totalorder %s172, %s173
      %p185 = scmp.eq.s32.totalorder %s39, 3
      %p186 = por %p184, %p185
      %p188 = scmp.ne.s32.totalorder %s173, %s187
      %p189 = scmp.eq.s32.totalorder %s39, 0
      %p190 = por %p188, %p189
      %s192 = sadd.s32 %s191, 1
      %p195 = scmp.eq.s32.totalorder %s33, 3
      %p196 = scmp.ne.s32.totalorder %s191, %s193
      %p197 = scmp.eq.s32.totalorder %s33, 0
      %p198 = por %p196, %p197
      %p199 = scmp.ne.s32.totalorder %s191, %s193
      %p200 = scmp.eq.s32.totalorder %s38, 3
      %p201 = por %p199, %p200
      %p202 = scmp.ne.s32.totalorder %s193, %s194
      %p203 = scmp.eq.s32.totalorder %s38, 0
      %p204 = por %p202, %p203
      %p205 = scmp.ne.s32.totalorder %s193, %s194
      %p206 = scmp.eq.s32.totalorder %s39, 3
      %p207 = por %p205, %p206
      %p209 = scmp.ne.s32.totalorder %s194, %s208
      %p210 = scmp.eq.s32.totalorder %s39, 0
      %p211 = por %p209, %p210
      %s213 = sadd.s32 %s212, 1
      %p216 = scmp.eq.s32.totalorder %s33, 3
      %p217 = scmp.ne.s32.totalorder %s212, %s214
      %p218 = scmp.eq.s32.totalorder %s33, 0
      %p219 = por %p217, %p218
      %p220 = scmp.ne.s32.totalorder %s212, %s214
      %p221 = scmp.eq.s32.totalorder %s38, 3
      %p222 = por %p220, %p221
      %p223 = scmp.ne.s32.totalorder %s214, %s215
      %p224 = scmp.eq.s32.totalorder %s38, 0
      %p225 = por %p223, %p224
      %p226 = scmp.ne.s32.totalorder %s214, %s215
      %p227 = scmp.eq.s32.totalorder %s39, 3
      %p228 = por %p226, %p227
      %p230 = scmp.ne.s32.totalorder %s215, %s229
      %p231 = scmp.eq.s32.totalorder %s39, 0
      %p232 = por %p230, %p231
      %s234 = sadd.s32 %s233, 1
      %p237 = scmp.eq.s32.totalorder %s33, 3
      %p238 = scmp.ne.s32.totalorder %s233, %s235
      %p239 = scmp.eq.s32.totalorder %s33, 0
      %p240 = por %p238, %p239
      %p241 = scmp.ne.s32.totalorder %s233, %s235
      %p242 = scmp.eq.s32.totalorder %s38, 3
      %p243 = por %p241, %p242
      %p244 = scmp.ne.s32.totalorder %s235, %s236
      %p245 = scmp.eq.s32.totalorder %s38, 0
      %p246 = por %p244, %p245
      %p247 = scmp.ne.s32.totalorder %s235, %s236
      %p248 = scmp.eq.s32.totalorder %s39, 3
      %p249 = por %p247, %p248
      %p251 = scmp.ne.s32.totalorder %s236, %s250
      %p252 = scmp.eq.s32.totalorder %s39, 0
      %p253 = por %p251, %p252
      %s255 = sadd.s32 %s254, 1
      %p258 = scmp.eq.s32.totalorder %s33, 3
      %p259 = scmp.ne.s32.totalorder %s254, %s256
      %p260 = scmp.eq.s32.totalorder %s33, 0
      %p261 = por %p259, %p260
      %p262 = scmp.ne.s32.totalorder %s254, %s256
      %p263 = scmp.eq.s32.totalorder %s38, 3
      %p264 = por %p262, %p263
      %p265 = scmp.ne.s32.totalorder %s256, %s257
      %p266 = scmp.eq.s32.totalorder %s38, 0
      %p267 = por %p265, %p266
      %p268 = scmp.ne.s32.totalorder %s256, %s257
      %p269 = scmp.eq.s32.totalorder %s39, 3
      %p270 = por %p268, %p269
      %p272 = scmp.ne.s32.totalorder %s257, %s271
      %p273 = scmp.eq.s32.totalorder %s39, 0
      %p274 = por %p272, %p273
      %s276 = sadd.s32 %s275, 1
      %p279 = scmp.eq.s32.totalorder %s33, 3
      %p280 = scmp.ne.s32.totalorder %s275, %s277
      %p281 = scmp.eq.s32.totalorder %s33, 0
      %p282 = por %p280, %p281
      %p283 = scmp.ne.s32.totalorder %s275, %s277
      %p284 = scmp.eq.s32.totalorder %s38, 3
      %p285 = por %p283, %p284
      %p286 = scmp.ne.s32.totalorder %s277, %s278
      %p287 = scmp.eq.s32.totalorder %s38, 0
      %p288 = por %p286, %p287
      %p289 = scmp.ne.s32.totalorder %s277, %s278
      %p290 = scmp.eq.s32.totalorder %s39, 3
      %p291 = por %p289, %p290
      %p293 = scmp.ne.s32.totalorder %s278, %s292
      %p294 = scmp.eq.s32.totalorder %s39, 0
      %p295 = por %p293, %p294
      %s296 = ssub.s32 %s40, %s52
      %s297 = ssub.s32 %s41, %s48
      %s298 = sor.u32 %s296, %s297
      %p299 = scmp.eq.s32.totalorder %s298, 0
      %s301 = sadd.s32 %s300, 1
      %s302 = scalar_select %p299, %s300, %s301
      %p305 = pneg %p299
      %p306 = scmp.eq.s32.totalorder %s33, 3
      %p307 = por %p305, %p306
      %p308 = scmp.ne.s32.totalorder %s300, %s303
      %p309 = scmp.eq.s32.totalorder %s33, 0
      %p310 = por %p308, %p309
      %p311 = scmp.ne.s32.totalorder %s300, %s303
      %p312 = scmp.eq.s32.totalorder %s38, 3
      %p313 = por %p311, %p312
      %p314 = scmp.ne.s32.totalorder %s303, %s304
      %p315 = scmp.eq.s32.totalorder %s38, 0
      %p316 = por %p314, %p315
      %p317 = scmp.ne.s32.totalorder %s303, %s304
      %p318 = scmp.eq.s32.totalorder %s39, 3
      %p319 = por %p317, %p318
      %p321 = scmp.ne.s32.totalorder %s304, %s320
      %p322 = scmp.eq.s32.totalorder %s39, 0
      %p323 = por %p321, %p322
      %p324 = scmp.le.s32.totalorder 1, %s33
      %p325 = scmp.lt.s32.totalorder %s33, 5
      %p326 = pnand %p324, %p325
      %p327 = pneg %p326
      // Predicated region
      $region9: #{tpu_custom_call.1} parent=5 // pred_check
        _
      $region10: #{tpu_custom_call.1} parent=5 // pred_check_branch
        %329 = sbr.rel (%p326) target = $region12
      $region11: #{tpu_custom_call.1} parent=5 // pred_region
        %s330 = ssub.s32 %s33, 1
        // Predicated region
        $region13: #{tpu_custom_call.1} parent=11 // pred_check
          %p331 = pneg %p120
        $region14: #{tpu_custom_call.1} parent=11 // pred_check_branch
          %333 = sbr.rel (%p331) target = $region16
        $region15: #{tpu_custom_call.1} parent=11 // pred_region
          %s335 = ssub.s32 256, 256
          %336 = vsyncadd [#allocation11], %s335
          %s337 = sshll.u32 [#allocation12], 4
          %s338 = int_to_ptr.vmem [resolvable:$true] %s337
          %343 = dma.hbm_to_vmem [thread:$0]  %s3, 256, %s338, [#allocation11], 64, 64, 4
        $region16: #{tpu_custom_call.1} parent=11 // pred_fallthru
          _
        // Predicated region
        $region17: #{tpu_custom_call.1} parent=11 // pred_check
          %p344 = pneg %p141
        $region18: #{tpu_custom_call.1} parent=11 // pred_check_branch
          %346 = sbr.rel (%p344) target = $region20
        $region19: #{tpu_custom_call.1} parent=11 // pred_region
          _
        $region20: #{tpu_custom_call.1} parent=11 // pred_fallthru
          _
        // Predicated region
        $region21: #{tpu_custom_call.1} parent=11 // pred_check
          %p347 = pneg %p162
        $region22: #{tpu_custom_call.1} parent=11 // pred_check_branch
          %349 = sbr.rel (%p347) target = $region24
        $region23: #{tpu_custom_call.1} parent=11 // pred_region
          %s351 = ssub.s32 256, 256
          %352 = vsyncadd [#allocation14], %s351
          %s353 = sshll.u32 [#allocation13], 4
          %s354 = int_to_ptr.vmem [resolvable:$true] %s353
          %359 = dma.hbm_to_vmem [thread:$0]  %s5, 256, %s354, [#allocation14], 64, 64, 4
        $region24: #{tpu_custom_call.1} parent=11 // pred_fallthru
          _
        // Predicated region
        $region25: #{tpu_custom_call.1} parent=11 // pred_check
          %p360 = pneg %p183
        $region26: #{tpu_custom_call.1} parent=11 // pred_check_branch
          %362 = sbr.rel (%p360) target = $region28
        $region27: #{tpu_custom_call.1} parent=11 // pred_region
          _
        $region28: #{tpu_custom_call.1} parent=11 // pred_fallthru
          _
        // Predicated region
        $region29: #{tpu_custom_call.1} parent=11 // pred_check
          %p363 = pneg %p204
        $region30: #{tpu_custom_call.1} parent=11 // pred_check_branch
          %365 = sbr.rel (%p363) target = $region32
        $region31: #{tpu_custom_call.1} parent=11 // pred_region
          %s367 = ssub.s32 256, 256
          %368 = vsyncadd [#allocation14], %s367
          %s369 = sshll.u32 [#allocation15], 4
          %s370 = int_to_ptr.vmem [resolvable:$true] %s369
          %375 = dma.hbm_to_vmem [thread:$0]  %s7, 256, %s370, [#allocation14], 64, 64, 4
        $region32: #{tpu_custom_call.1} parent=11 // pred_fallthru
          _
        // Predicated region
        $region33: #{tpu_custom_call.1} parent=11 // pred_check
          %p376 = pneg %p225
        $region34: #{tpu_custom_call.1} parent=11 // pred_check_branch
          %378 = sbr.rel (%p376) target = $region36
        $region35: #{tpu_custom_call.1} parent=11 // pred_region
          %s380 = ssub.s32 16, 16
          %381 = vsyncadd [#allocation17], %s380
          %s383 = sshll.u32 [#allocation16], 4
          %s384 = int_to_ptr.vmem [resolvable:$true] %s383
          %386 = dma.hbm_to_vmem [thread:$0]  %s8, 16, %s384, [#allocation17]
        $region36: #{tpu_custom_call.1} parent=11 // pred_fallthru
          _
        // Predicated region
        $region37: #{tpu_custom_call.1} parent=11 // pred_check
          %p387 = pneg %p246
        $region38: #{tpu_custom_call.1} parent=11 // pred_check_branch
          %389 = sbr.rel (%p387) target = $region40
        $region39: #{tpu_custom_call.1} parent=11 // pred_region
          %s391 = ssub.s32 16, 16
          %392 = vsyncadd [#allocation17], %s391
          %s394 = sshll.u32 [#allocation18], 4
          %s395 = int_to_ptr.vmem [resolvable:$true] %s394
          %397 = dma.hbm_to_vmem [thread:$0]  %s9, 16, %s395, [#allocation17]
        $region40: #{tpu_custom_call.1} parent=11 // pred_fallthru
          _
        // Predicated region
        $region41: #{tpu_custom_call.1} parent=11 // pred_check
          %p398 = pneg %p267
        $region42: #{tpu_custom_call.1} parent=11 // pred_check_branch
          %400 = sbr.rel (%p398) target = $region44
        $region43: #{tpu_custom_call.1} parent=11 // pred_region
          _
        $region44: #{tpu_custom_call.1} parent=11 // pred_fallthru
          _
        // Predicated region
        $region45: #{tpu_custom_call.1} parent=11 // pred_check
          %p401 = pneg %p288
        $region46: #{tpu_custom_call.1} parent=11 // pred_check_branch
          %403 = sbr.rel (%p401) target = $region48
        $region47: #{tpu_custom_call.1} parent=11 // pred_region
          _
        $region48: #{tpu_custom_call.1} parent=11 // pred_fallthru
          _
      $region12: #{tpu_custom_call.1} parent=5 // pred_fallthru
        _
      %p404 = scmp.lt.s32.totalorder %s33, 4
      // Predicated region
      $region49: #{tpu_custom_call.1} parent=5 // pred_check
        %p405 = pneg %p404
      $region50: #{tpu_custom_call.1} parent=5 // pred_check_branch
        %407 = sbr.rel (%p405) target = $region52
      $region51: #{tpu_custom_call.1} parent=5 // pred_region
        // Predicated region
        $region53: #{tpu_custom_call.1} parent=51 // pred_check
          %p408 = pneg %p67
        $region54: #{tpu_custom_call.1} parent=51 // pred_check_branch
          %410 = sbr.rel (%p408) target = $region56
        $region55: #{tpu_custom_call.1} parent=51 // pred_region
          %s411 = sand.u32 %s57, 1
          %s412 = scalar_lea.sflag [#allocation8], %s411
          %s413 = sand.u32 %s57, 1
          %s414 = smul.addr %s413, 4
          %s415 = scalar_lea.vmem [#allocation7], %s414
          %s417 = ssub.s32 64, 64
          %418 = vsyncadd %s412, %s417
          %s419 = smul.addr %s40, 2
          %s420 = sadd.s32 %s41, %s419
          %s421 = smul.addr %s420, 64
          %s422 = scalar_lea.hbm %s1, %s421
          %s424 = sshll.u32 %s415, 4
          %s425 = int_to_ptr.vmem [resolvable:$true] %s424
          %427 = dma.hbm_to_vmem [thread:$0]  %s422, 64, %s425, %s412
        $region56: #{tpu_custom_call.1} parent=51 // pred_fallthru
          _
        // Predicated region
        $region57: #{tpu_custom_call.1} parent=51 // pred_check
          %p428 = pneg %p93
        $region58: #{tpu_custom_call.1} parent=51 // pred_check_branch
          %430 = sbr.rel (%p428) target = $region60
        $region59: #{tpu_custom_call.1} parent=51 // pred_region
          %s431 = sand.u32 %s33, 1
          %s432 = scalar_lea.sflag [#allocation11], %s431
          %s433 = sand.u32 %s83, 1
          %s434 = smul.addr %s433, 4
          %s435 = scalar_lea.vmem [#allocation10], %s434
          %s437 = ssub.s32 64, 64
          %438 = vsyncadd %s432, %s437
          %s439 = smul.addr %s40, 64
          %s440 = scalar_lea.hbm %s2, %s439
          %s442 = sshll.u32 %s435, 4
          %s443 = int_to_ptr.vmem [resolvable:$true] %s442
          %445 = dma.hbm_to_vmem [thread:$0]  %s440, 64, %s443, %s432
        $region60: #{tpu_custom_call.1} parent=51 // pred_fallthru
          _
      $region52: #{tpu_custom_call.1} parent=5 // pred_fallthru
        _
      %p446 = scmp.le.s32.totalorder 1, %s33
      %p447 = scmp.lt.s32.totalorder %s33, 5
      %p448 = pnand %p446, %p447
      %p449 = pneg %p448
      // Predicated region
      $region61: #{tpu_custom_call.1} parent=5 // pred_check
        _
      $region62: #{tpu_custom_call.1} parent=5 // pred_check_branch
        %451 = sbr.rel (%p448) target = $region64
      $region63: #{tpu_custom_call.1} parent=5 // pred_region
        %s452 = ssub.s32 %s33, 1
        %s453 = sand.u32 %s60, 1
        %s454 = scalar_lea.sflag [#allocation8], %s453
        %s455 = sand.u32 %s60, 1
        %s456 = smul.addr %s455, 4
        %s457 = scalar_lea.vmem [#allocation7], %s456
        // Predicated region
        $region65: #{tpu_custom_call.1} parent=63 // pred_check
          %p458 = pneg %p73
        $region66: #{tpu_custom_call.1} parent=63 // pred_check_branch
          %460 = sbr.rel (%p458) target = $region68
        $region67: #{tpu_custom_call.1} parent=63 // pred_region
          %461 = dma.done %s454, 64
        $region68: #{tpu_custom_call.1} parent=63 // pred_fallthru
          _
        %s462 = sand.u32 %s38, 1
        %s463 = scalar_lea.sflag [#allocation11], %s462
        %s464 = sand.u32 %s86, 1
        %s465 = smul.addr %s464, 4
        %s466 = scalar_lea.vmem [#allocation10], %s465
        // Predicated region
        $region69: #{tpu_custom_call.1} parent=63 // pred_check
          %p467 = pneg %p99
        $region70: #{tpu_custom_call.1} parent=63 // pred_check_branch
          %469 = sbr.rel (%p467) target = $region72
        $region71: #{tpu_custom_call.1} parent=63 // pred_region
          %470 = dma.done %s463, 64
        $region72: #{tpu_custom_call.1} parent=63 // pred_fallthru
          _
        // Predicated region
        $region73: #{tpu_custom_call.1} parent=63 // pred_check
          %p471 = pneg %p120
        $region74: #{tpu_custom_call.1} parent=63 // pred_check_branch
          %473 = sbr.rel (%p471) target = $region76
        $region75: #{tpu_custom_call.1} parent=63 // pred_region
          %474 = dma.done [#allocation11], 256
        $region76: #{tpu_custom_call.1} parent=63 // pred_fallthru
          _
        // Predicated region
        $region77: #{tpu_custom_call.1} parent=63 // pred_check
          %p475 = pneg %p162
        $region78: #{tpu_custom_call.1} parent=63 // pred_check_branch
          %477 = sbr.rel (%p475) target = $region80
        $region79: #{tpu_custom_call.1} parent=63 // pred_region
          %478 = dma.done [#allocation14], 256
        $region80: #{tpu_custom_call.1} parent=63 // pred_fallthru
          _
        // Predicated region
        $region81: #{tpu_custom_call.1} parent=63 // pred_check
          %p479 = pneg %p204
        $region82: #{tpu_custom_call.1} parent=63 // pred_check_branch
          %481 = sbr.rel (%p479) target = $region84
        $region83: #{tpu_custom_call.1} parent=63 // pred_region
          %482 = dma.done [#allocation14], 256
        $region84: #{tpu_custom_call.1} parent=63 // pred_fallthru
          _
        // Predicated region
        $region85: #{tpu_custom_call.1} parent=63 // pred_check
          %p483 = pneg %p225
        $region86: #{tpu_custom_call.1} parent=63 // pred_check_branch
          %485 = sbr.rel (%p483) target = $region88
        $region87: #{tpu_custom_call.1} parent=63 // pred_region
          %486 = dma.done [#allocation17], 16
        $region88: #{tpu_custom_call.1} parent=63 // pred_fallthru
          _
        // Predicated region
        $region89: #{tpu_custom_call.1} parent=63 // pred_check
          %p487 = pneg %p246
        $region90: #{tpu_custom_call.1} parent=63 // pred_check_branch
          %489 = sbr.rel (%p487) target = $region92
        $region91: #{tpu_custom_call.1} parent=63 // pred_region
          %490 = dma.done [#allocation17], 16
        $region92: #{tpu_custom_call.1} parent=63 // pred_fallthru
          _
        %s491 = sand.u32 %s60, 1
        %s492 = scalar_lea.sflag [#allocation8], %s491
        %s493 = sand.u32 %s60, 1
        %s494 = smul.addr %s493, 4
        %s495 = scalar_lea.vmem [#allocation7], %s494
        %p496 = pneg %p73
        %p497 = pneg %p70
        %s498 = sand.u32 %s38, 1
        %s499 = scalar_lea.sflag [#allocation11], %s498
        %s500 = sand.u32 %s86, 1
        %s501 = smul.addr %s500, 4
        %s502 = scalar_lea.vmem [#allocation10], %s501
        %p503 = pneg %p99
        %p504 = pneg %p96
        %p505 = pneg %p120
        %p506 = pneg %p117
        %p507 = pneg %p141
        %p508 = pneg %p138
        %p509 = pneg %p162
        %p510 = pneg %p159
        %p511 = pneg %p183
        %p512 = pneg %p180
        %p513 = pneg %p204
        %p514 = pneg %p201
        %p515 = pneg %p225
        %p516 = pneg %p222
        %p517 = pneg %p246
        %p518 = pneg %p243
        %p519 = pneg %p267
        %p520 = pneg %p264
        %p521 = pneg %p288
        %p522 = pneg %p285
        %p523 = pneg %p316
        %p524 = pneg %p313
        %s525 = sand.u32 %s303, 1
        %s526 = scalar_lea.sflag [#allocation9], %s525
        %s527 = sand.u32 %s303, 1
        %s528 = smul.addr %s527, 8
        %s529 = scalar_lea.vmem [#allocation19], %s528
        %p531 = scmp.eq.s32.totalorder %s43, 0
        // Predicated region
        $region93: #{tpu_custom_call.1} parent=63 // pred_check
          %p532 = pneg %p531
        $region94: #{tpu_custom_call.1} parent=63 // pred_check_branch
          %534 = sbr.rel (%p532) target = $region96
        $region95: #{tpu_custom_call.1} parent=63 // pred_region
          %v535 = vld [vmem:[%s466] sm:$0xf]
          %v536 = vld [vmem:[#allocation13] sm:$0xf]
          %v537 = vld [vmem:[#allocation13 + $0x4] sm:$0xf]
          %v538 = vld [vmem:[#allocation13 + $0x8] sm:$0xf]
          %v539 = vld [vmem:[#allocation13 + $0xc] sm:$0xf]
          %v540 = vld [vmem:[%s6] sm:$0x1]
          %v542 = vlaneseq
          %v543 = vshrl.u32 %v542, 7
          %v544 = vsub.s32 0, %v543
          %v545 = vrot.slane %v540, %v544
          %v551 = vunpack.c.l.b16 %v536
          %v552 = vunpack.c.l.b16 %v537
          %v553 = vunpack.c.l.b16 %v538
          %v554 = vunpack.c.l.b16 %v539
          %v555 = vpack.c.b16 %v552, %v551
          %v556 = vpack.c.b16 %v554, %v553
          %vm559 = vcmask 261120
          %v561 = vsel %vm559, %v535, 0
          %563 = vmatprep.subr.bf16.mxu0 0
          %564 = vmatpush1.bf16.msra.mxu0 0
          %565 = vmatprep.subr.bf16.mxu0 0
          %566 = vmatpush1.bf16.msra.mxu0 0
          %567 = vmatprep.subr.bf16.mxu0 0
          %568 = vmatpush1.bf16.msra.mxu0 0
          %569 = vmatprep.subr.bf16.mxu0 0
          %570 = vmatpush1.bf16.msra.mxu0 0
          %571 = vmatprep.subr.bf16.mxu0 0
          %572 = vmatpush1.bf16.msra.mxu0 0
          %573 = vmatprep.subr.bf16.mxu0 0
          %574 = vmatpush1.bf16.msra.mxu0 0
          %575 = vmatprep.subr.bf16.mxu0 0
          %576 = vmatpush1.bf16.msra.mxu0 %v556
          %577 = vmatprep.subr.bf16.mxu0 0
          %578 = vmatpush1.bf16.msra.mxu0 %v555
          %579 = vmatprep.subr.bf16.mxu0 0
          %580 = vmatpush2.bf16.msra.mxu0 0
          %581 = vmatprep.subr.bf16.mxu0 0
          %582 = vmatpush2.bf16.msra.mxu0 0
          %583 = vmatprep.subr.bf16.mxu0 0
          %584 = vmatpush2.bf16.msra.mxu0 0
          %585 = vmatprep.subr.bf16.mxu0 0
          %586 = vmatpush2.bf16.msra.mxu0 0
          %587 = vmatprep.subr.bf16.mxu0 0
          %588 = vmatpush2.bf16.msra.mxu0 0
          %589 = vmatprep.subr.bf16.mxu0 0
          %590 = vmatpush2.bf16.msra.mxu0 0
          %591 = vmatprep.subr.bf16.mxu0 0
          %592 = vmatpush2.bf16.msra.mxu0 0
          %593 = vmatprep.subr.bf16.mxu0 0
          %594 = vmatpush2.bf16.msra.mxu0 0
          %595 = vmatprep.mubr.bf16.mxu0 0
          %596 = vmatmul.mubr.bf16.gmra.mxu0 %v561
          %v597 = vpop.f32.mrf.mxu0
          %v598 = vadd.f32 %v545, %v597
          %v599 = vpop.f32.mrf.mxu0
          %v600 = vpop.f32.mrf.mxu0
          %v601 = vpop.f32.mrf.mxu0
          %602 = vdwg.mxu0
          %v603 = vld [vmem:[#allocation15] sm:$0xf]
          %v604 = vld [vmem:[#allocation15 + $0x4] sm:$0xf]
          %v605 = vld [vmem:[#allocation15 + $0x8] sm:$0xf]
          %v606 = vld [vmem:[#allocation15 + $0xc] sm:$0xf]
          %v607 = vld [vmem:[#allocation16] sm:$0x1]
          %v609 = vlaneseq
          %v610 = vshrl.u32 %v609, 7
          %v611 = vsub.s32 0, %v610
          %v612 = vrot.slane %v607, %v611
          %v618 = vunpack.c.l.b16 %v603
          %v619 = vunpack.c.l.b16 %v604
          %v620 = vunpack.c.l.b16 %v605
          %v621 = vunpack.c.l.b16 %v606
          %v622 = vpack.c.b16 %v619, %v618
          %v623 = vpack.c.b16 %v621, %v620
          %626 = vmatprep.subr.bf16.mxu0 0
          %627 = vmatpush1.bf16.msra.mxu0 0
          %628 = vmatprep.subr.bf16.mxu0 0
          %629 = vmatpush1.bf16.msra.mxu0 0
          %630 = vmatprep.subr.bf16.mxu0 0
          %631 = vmatpush1.bf16.msra.mxu0 0
          %632 = vmatprep.subr.bf16.mxu0 0
          %633 = vmatpush1.bf16.msra.mxu0 0
          %634 = vmatprep.subr.bf16.mxu0 0
          %635 = vmatpush1.bf16.msra.mxu0 0
          %636 = vmatprep.subr.bf16.mxu0 0
          %637 = vmatpush1.bf16.msra.mxu0 0
          %638 = vmatprep.subr.bf16.mxu0 0
          %639 = vmatpush1.bf16.msra.mxu0 %v623
          %640 = vmatprep.subr.bf16.mxu0 0
          %641 = vmatpush1.bf16.msra.mxu0 %v622
          %642 = vmatprep.subr.bf16.mxu0 0
          %643 = vmatpush2.bf16.msra.mxu0 0
          %644 = vmatprep.subr.bf16.mxu0 0
          %645 = vmatpush2.bf16.msra.mxu0 0
          %646 = vmatprep.subr.bf16.mxu0 0
          %647 = vmatpush2.bf16.msra.mxu0 0
          %648 = vmatprep.subr.bf16.mxu0 0
          %649 = vmatpush2.bf16.msra.mxu0 0
          %650 = vmatprep.subr.bf16.mxu0 0
          %651 = vmatpush2.bf16.msra.mxu0 0
          %652 = vmatprep.subr.bf16.mxu0 0
          %653 = vmatpush2.bf16.msra.mxu0 0
          %654 = vmatprep.subr.bf16.mxu0 0
          %655 = vmatpush2.bf16.msra.mxu0 0
          %656 = vmatprep.subr.bf16.mxu0 0
          %657 = vmatpush2.bf16.msra.mxu0 0
          %658 = vmatprep.mubr.bf16.mxu0 0
          %659 = vmatmul.mubr.bf16.gmra.mxu0 %v561
          %v660 = vpop.f32.mrf.mxu0
          %v661 = vadd.f32 %v612, %v660
          %v662 = vpop.f32.mrf.mxu0
          %v663 = vpop.f32.mrf.mxu0
          %v664 = vpop.f32.mrf.mxu0
          %665 = vdwg.mxu0
          %v666 = vpack.c.bf16 %v598, %v598
          %vm667 = vcmask 257024
          %668 = vst.msk [vmem:[#allocation2] sm:$0xf] %vm667, %v666
          %v669 = vpack.c.bf16 %v661, %v661
          %670 = vst.msk [vmem:[#allocation3] sm:$0xf] %vm667, %v669
        $region96: #{tpu_custom_call.1} parent=63 // pred_fallthru
          _
        %v671 = vld [vmem:[%s457] sm:$0xf]
        %v672 = vld [vmem:[#allocation12] sm:$0xf]
        %v673 = vld [vmem:[#allocation12 + $0x4] sm:$0xf]
        %v674 = vld [vmem:[#allocation12 + $0x8] sm:$0xf]
        %v675 = vld [vmem:[#allocation12 + $0xc] sm:$0xf]
        %v676 = vld [vmem:[%s4] sm:$0x1]
        %v678 = vlaneseq
        %v679 = vshrl.u32 %v678, 7
        %v680 = vsub.s32 0, %v679
        %v681 = vrot.slane %v676, %v680
        %v687 = vunpack.c.l.b16 %v672
        %v688 = vunpack.c.l.b16 %v673
        %v689 = vunpack.c.l.b16 %v674
        %v690 = vunpack.c.l.b16 %v675
        %v691 = vpack.c.b16 %v688, %v687
        %v692 = vpack.c.b16 %v690, %v689
        %vm695 = vcmask 261120
        %v697 = vsel %vm695, %v671, 0
        %699 = vmatprep.subr.bf16.mxu0 0
        %700 = vmatpush1.bf16.msra.mxu0 0
        %701 = vmatprep.subr.bf16.mxu0 0
        %702 = vmatpush1.bf16.msra.mxu0 0
        %703 = vmatprep.subr.bf16.mxu0 0
        %704 = vmatpush1.bf16.msra.mxu0 0
        %705 = vmatprep.subr.bf16.mxu0 0
        %706 = vmatpush1.bf16.msra.mxu0 0
        %707 = vmatprep.subr.bf16.mxu0 0
        %708 = vmatpush1.bf16.msra.mxu0 0
        %709 = vmatprep.subr.bf16.mxu0 0
        %710 = vmatpush1.bf16.msra.mxu0 0
        %711 = vmatprep.subr.bf16.mxu0 0
        %712 = vmatpush1.bf16.msra.mxu0 %v692
        %713 = vmatprep.subr.bf16.mxu0 0
        %714 = vmatpush1.bf16.msra.mxu0 %v691
        %715 = vmatprep.subr.bf16.mxu0 0
        %716 = vmatpush2.bf16.msra.mxu0 0
        %717 = vmatprep.subr.bf16.mxu0 0
        %718 = vmatpush2.bf16.msra.mxu0 0
        %719 = vmatprep.subr.bf16.mxu0 0
        %720 = vmatpush2.bf16.msra.mxu0 0
        %721 = vmatprep.subr.bf16.mxu0 0
        %722 = vmatpush2.bf16.msra.mxu0 0
        %723 = vmatprep.subr.bf16.mxu0 0
        %724 = vmatpush2.bf16.msra.mxu0 0
        %725 = vmatprep.subr.bf16.mxu0 0
        %726 = vmatpush2.bf16.msra.mxu0 0
        %727 = vmatprep.subr.bf16.mxu0 0
        %728 = vmatpush2.bf16.msra.mxu0 0
        %729 = vmatprep.subr.bf16.mxu0 0
        %730 = vmatpush2.bf16.msra.mxu0 0
        %731 = vmatprep.mubr.bf16.mxu0 0
        %732 = vmatmul.mubr.bf16.gmra.mxu0 %v697
        %v733 = vpop.f32.mrf.mxu0
        %v734 = vadd.f32 %v681, %v733
        %v735 = vpop.f32.mrf.mxu0
        %v736 = vpop.f32.mrf.mxu0
        %v737 = vpop.f32.mrf.mxu0
        %738 = vdwg.mxu0
        %v739 = vpack.c.bf16 %v734, %v734
        %v740 = vld [vmem:[#allocation2] sm:$0xf]
        %v741 = vld [vmem:[#allocation3] sm:$0xf]
        %vm742 = vcmask 64512
        %v744 = vsel %vm742, %v739, 0
        %v747 = vsel %vm742, %v740, 0
        %749 = vmatprep.subr.bf16.mxu0 0
        %750 = vmatpush1.bf16.xpose.msra.mxu0 0
        %751 = vmatprep.subr.bf16.mxu0 0
        %752 = vmatpush1.bf16.xpose.msra.mxu0 0
        %753 = vmatprep.subr.bf16.mxu0 0
        %754 = vmatpush1.bf16.xpose.msra.mxu0 0
        %755 = vmatprep.subr.bf16.mxu0 0
        %756 = vmatpush1.bf16.xpose.msra.mxu0 0
        %757 = vmatprep.subr.bf16.mxu0 0
        %758 = vmatpush1.bf16.xpose.msra.mxu0 0
        %759 = vmatprep.subr.bf16.mxu0 0
        %760 = vmatpush1.bf16.xpose.msra.mxu0 0
        %761 = vmatprep.subr.bf16.mxu0 0
        %762 = vmatpush1.bf16.xpose.msra.mxu0 0
        %763 = vmatprep.subr.bf16.mxu0 0
        %764 = vmatpush1.bf16.xpose.msra.mxu0 %v747
        %765 = vmatprep.subr.bf16.mxu0 0
        %766 = vmatpush2.bf16.xpose.msra.mxu0 0
        %767 = vmatprep.subr.bf16.mxu0 0
        %768 = vmatpush2.bf16.xpose.msra.mxu0 0
        %769 = vmatprep.subr.bf16.mxu0 0
        %770 = vmatpush2.bf16.xpose.msra.mxu0 0
        %771 = vmatprep.subr.bf16.mxu0 0
        %772 = vmatpush2.bf16.xpose.msra.mxu0 0
        %773 = vmatprep.subr.bf16.mxu0 0
        %774 = vmatpush2.bf16.xpose.msra.mxu0 0
        %775 = vmatprep.subr.bf16.mxu0 0
        %776 = vmatpush2.bf16.xpose.msra.mxu0 0
        %777 = vmatprep.subr.bf16.mxu0 0
        %778 = vmatpush2.bf16.xpose.msra.mxu0 0
        %779 = vmatprep.subr.bf16.mxu0 0
        %780 = vmatpush2.bf16.xpose.msra.mxu0 0
        %781 = vmatprep.mubr.bf16.mxu0 0
        %782 = vmatmul.mubr.bf16.gmra.mxu0 %v744
        %v783 = vpop.f32.mrf.mxu0
        %v784 = vadd.f32 0.0, %v783
        %v785 = vpop.f32.mrf.mxu0
        %v786 = vpop.f32.mrf.mxu0
        %v787 = vpop.f32.mrf.mxu0
        %788 = vdwg.mxu0
        %790 = vrot.lane.b32.xlu0 %v739, 120
        %v791 = vpop.permute.xlu0 %790
        %v793 = vunpack.c.l.b16 %v740
        %v794 = vpack.c.b16 %v793, %v793
        %795 = vrot.lane.b32.xlu0 %v794, 120
        %v796 = vpop.permute.xlu0 %795
        %v798 = vsel %vm742, %v791, 0
        %v801 = vsel %vm742, %v796, 0
        %803 = vmatprep.subr.bf16.mxu0 0
        %804 = vmatpush1.bf16.xpose.msra.mxu0 0
        %805 = vmatprep.subr.bf16.mxu0 0
        %806 = vmatpush1.bf16.xpose.msra.mxu0 0
        %807 = vmatprep.subr.bf16.mxu0 0
        %808 = vmatpush1.bf16.xpose.msra.mxu0 0
        %809 = vmatprep.subr.bf16.mxu0 0
        %810 = vmatpush1.bf16.xpose.msra.mxu0 0
        %811 = vmatprep.subr.bf16.mxu0 0
        %812 = vmatpush1.bf16.xpose.msra.mxu0 0
        %813 = vmatprep.subr.bf16.mxu0 0
        %814 = vmatpush1.bf16.xpose.msra.mxu0 0
        %815 = vmatprep.subr.bf16.mxu0 0
        %816 = vmatpush1.bf16.xpose.msra.mxu0 0
        %817 = vmatprep.subr.bf16.mxu0 0
        %818 = vmatpush1.bf16.xpose.msra.mxu0 %v801
        %819 = vmatprep.subr.bf16.mxu0 0
        %820 = vmatpush2.bf16.xpose.msra.mxu0 0
        %821 = vmatprep.subr.bf16.mxu0 0
        %822 = vmatpush2.bf16.xpose.msra.mxu0 0
        %823 = vmatprep.subr.bf16.mxu0 0
        %824 = vmatpush2.bf16.xpose.msra.mxu0 0
        %825 = vmatprep.subr.bf16.mxu0 0
        %826 = vmatpush2.bf16.xpose.msra.mxu0 0
        %827 = vmatprep.subr.bf16.mxu0 0
        %828 = vmatpush2.bf16.xpose.msra.mxu0 0
        %829 = vmatprep.subr.bf16.mxu0 0
        %830 = vmatpush2.bf16.xpose.msra.mxu0 0
        %831 = vmatprep.subr.bf16.mxu0 0
        %832 = vmatpush2.bf16.xpose.msra.mxu0 0
        %833 = vmatprep.subr.bf16.mxu0 0
        %834 = vmatpush2.bf16.xpose.msra.mxu0 0
        %835 = vmatprep.mubr.bf16.mxu0 0
        %836 = vmatmul.mubr.bf16.gmra.mxu0 %v798
        %v837 = vpop.f32.mrf.mxu0
        %v838 = vadd.f32 0.0, %v837
        %v839 = vpop.f32.mrf.mxu0
        %v840 = vpop.f32.mrf.mxu0
        %v841 = vpop.f32.mrf.mxu0
        %842 = vdwg.mxu0
        %v843 = vsel %vm742, %v784, -inf
        %844 = vmax.xlane.f32.xlu0 %v843
        %v845 = vpop.xlane.xlu0 %844
        %v846 = vsub.f32 %v784, %v845
        %v847 = vmul.f32 %v846, 1.442695
        %v848 = vpow.pop %v847
        %v849 = vsel %vm742, %v848, 0.0
        %850 = vadd.xlane.f32.xlu0 %v849
        %v851 = vpop.xlane.xlu0 %850
        %v852 = vrcp.pop %v851
        %v853 = vmul.f32 %v848, %v852
        %v854 = vsel %vm742, %v838, -inf
        %855 = vmax.xlane.f32.xlu0 %v854
        %v856 = vpop.xlane.xlu0 %855
        %v857 = vsub.f32 %v838, %v856
        %v858 = vmul.f32 %v857, 1.442695
        %v859 = vpow.pop %v858
        %v860 = vsel %vm742, %v859, 0.0
        %861 = vadd.xlane.f32.xlu0 %v860
        %v862 = vpop.xlane.xlu0 %861
        %v863 = vrcp.pop %v862
        %v864 = vmul.f32 %v859, %v863
        %s865 = sld [smem:[#allocation6]]
        %v866 = vstv %s865
        %v867 = vmul.f32 %v866, %v864
        %v868 = vsub.f32 %v853, %v867
        %v869 = vpack.c.bf16 %v868, %v868
        %v871 = vsel %vm742, %v869, 0
        %vm873 = vcmask 1043456
        %v875 = vsel %vm873, %v741, 0
        %877 = vmatprep.subr.bf16.mxu0 0
        %878 = vmatpush1.bf16.msra.mxu0 0
        %879 = vmatprep.subr.bf16.mxu0 0
        %880 = vmatpush1.bf16.msra.mxu0 0
        %881 = vmatprep.subr.bf16.mxu0 0
        %882 = vmatpush1.bf16.msra.mxu0 0
        %883 = vmatprep.subr.bf16.mxu0 0
        %884 = vmatpush1.bf16.msra.mxu0 0
        %885 = vmatprep.subr.bf16.mxu0 0
        %886 = vmatpush1.bf16.msra.mxu0 0
        %887 = vmatprep.subr.bf16.mxu0 0
        %888 = vmatpush1.bf16.msra.mxu0 0
        %889 = vmatprep.subr.bf16.mxu0 0
        %890 = vmatpush1.bf16.msra.mxu0 0
        %891 = vmatprep.subr.bf16.mxu0 0
        %892 = vmatpush1.bf16.msra.mxu0 %v875
        %893 = vmatprep.subr.bf16.mxu0 0
        %894 = vmatpush2.bf16.msra.mxu0 0
        %895 = vmatprep.subr.bf16.mxu0 0
        %896 = vmatpush2.bf16.msra.mxu0 0
        %897 = vmatprep.subr.bf16.mxu0 0
        %898 = vmatpush2.bf16.msra.mxu0 0
        %899 = vmatprep.subr.bf16.mxu0 0
        %900 = vmatpush2.bf16.msra.mxu0 0
        %901 = vmatprep.subr.bf16.mxu0 0
        %902 = vmatpush2.bf16.msra.mxu0 0
        %903 = vmatprep.subr.bf16.mxu0 0
        %904 = vmatpush2.bf16.msra.mxu0 0
        %905 = vmatprep.subr.bf16.mxu0 0
        %906 = vmatpush2.bf16.msra.mxu0 0
        %907 = vmatprep.subr.bf16.mxu0 0
        %908 = vmatpush2.bf16.msra.mxu0 0
        %909 = vmatprep.mubr.bf16.mxu0 0
        %910 = vmatmul.mubr.bf16.gmra.mxu0 %v871
        %v911 = vpop.f32.mrf.mxu0
        %v912 = vadd.f32 0.0, %v911
        %v913 = vpop.f32.mrf.mxu0
        %v914 = vpop.f32.mrf.mxu0
        %v915 = vpop.f32.mrf.mxu0
        %916 = vdwg.mxu0
        %v917 = vmul.f32 %v912, %v912
        %vm918 = vcmask 130048
        %v919 = vsel %vm918, %v917, 0.0
        %920 = vadd.xlane.f32.xlu0 %v919
        %v921 = vpop.xlane.xlu0 %920
        %v922 = vrcp.pop 16.0
        %v923 = vmul.f32 %v921, %v922
        %v924 = vld [vmem:[#allocation18] sm:$0x1]
        %v925 = vadd.f32 %v923, 1.1920929e-07
        %v926 = vrsqrt.pop %v925
        %v927 = vmul.f32 %v912, %v926
        %v929 = vlaneseq
        %v930 = vshrl.u32 %v929, 7
        %v931 = vsub.s32 0, %v930
        %v932 = vrot.slane %v924, %v931
        %v934 = vmul.f32 %v927, %v932
        %v935 = vpack.c.bf16 %v934, %v934
        %vm936 = vcmask 125952
        %937 = vst.msk [vmem:[#allocation4] sm:$0xf] %vm936, %v935
        %938 = vrot.lane.b32.xlu0 %v739, 112
        %v939 = vpop.permute.xlu0 %938
        %940 = vrot.lane.b32.xlu0 %v794, 112
        %v941 = vpop.permute.xlu0 %940
        %v943 = vsel %vm742, %v939, 0
        %v946 = vsel %vm742, %v941, 0
        %948 = vmatprep.subr.bf16.mxu0 0
        %949 = vmatpush1.bf16.xpose.msra.mxu0 0
        %950 = vmatprep.subr.bf16.mxu0 0
        %951 = vmatpush1.bf16.xpose.msra.mxu0 0
        %952 = vmatprep.subr.bf16.mxu0 0
        %953 = vmatpush1.bf16.xpose.msra.mxu0 0
        %954 = vmatprep.subr.bf16.mxu0 0
        %955 = vmatpush1.bf16.xpose.msra.mxu0 0
        %956 = vmatprep.subr.bf16.mxu0 0
        %957 = vmatpush1.bf16.xpose.msra.mxu0 0
        %958 = vmatprep.subr.bf16.mxu0 0
        %959 = vmatpush1.bf16.xpose.msra.mxu0 0
        %960 = vmatprep.subr.bf16.mxu0 0
        %961 = vmatpush1.bf16.xpose.msra.mxu0 0
        %962 = vmatprep.subr.bf16.mxu0 0
        %963 = vmatpush1.bf16.xpose.msra.mxu0 %v946
        %964 = vmatprep.subr.bf16.mxu0 0
        %965 = vmatpush2.bf16.xpose.msra.mxu0 0
        %966 = vmatprep.subr.bf16.mxu0 0
        %967 = vmatpush2.bf16.xpose.msra.mxu0 0
        %968 = vmatprep.subr.bf16.mxu0 0
        %969 = vmatpush2.bf16.xpose.msra.mxu0 0
        %970 = vmatprep.subr.bf16.mxu0 0
        %971 = vmatpush2.bf16.xpose.msra.mxu0 0
        %972 = vmatprep.subr.bf16.mxu0 0
        %973 = vmatpush2.bf16.xpose.msra.mxu0 0
        %974 = vmatprep.subr.bf16.mxu0 0
        %975 = vmatpush2.bf16.xpose.msra.mxu0 0
        %976 = vmatprep.subr.bf16.mxu0 0
        %977 = vmatpush2.bf16.xpose.msra.mxu0 0
        %978 = vmatprep.subr.bf16.mxu0 0
        %979 = vmatpush2.bf16.xpose.msra.mxu0 0
        %980 = vmatprep.mubr.bf16.mxu0 0
        %981 = vmatmul.mubr.bf16.gmra.mxu0 %v943
        %v982 = vpop.f32.mrf.mxu0
        %v983 = vadd.f32 0.0, %v982
        %v984 = vpop.f32.mrf.mxu0
        %v985 = vpop.f32.mrf.mxu0
        %v986 = vpop.f32.mrf.mxu0
        %987 = vdwg.mxu0
        %988 = vrot.lane.b32.xlu0 %v739, 104
        %v989 = vpop.permute.xlu0 %988
        %990 = vrot.lane.b32.xlu0 %v794, 104
        %v991 = vpop.permute.xlu0 %990
        %v993 = vsel %vm742, %v989, 0
        %v996 = vsel %vm742, %v991, 0
        %998 = vmatprep.subr.bf16.mxu0 0
        %999 = vmatpush1.bf16.xpose.msra.mxu0 0
        %1000 = vmatprep.subr.bf16.mxu0 0
        %1001 = vmatpush1.bf16.xpose.msra.mxu0 0
        %1002 = vmatprep.subr.bf16.mxu0 0
        %1003 = vmatpush1.bf16.xpose.msra.mxu0 0
        %1004 = vmatprep.subr.bf16.mxu0 0
        %1005 = vmatpush1.bf16.xpose.msra.mxu0 0
        %1006 = vmatprep.subr.bf16.mxu0 0
        %1007 = vmatpush1.bf16.xpose.msra.mxu0 0
        %1008 = vmatprep.subr.bf16.mxu0 0
        %1009 = vmatpush1.bf16.xpose.msra.mxu0 0
        %1010 = vmatprep.subr.bf16.mxu0 0
        %1011 = vmatpush1.bf16.xpose.msra.mxu0 0
        %1012 = vmatprep.subr.bf16.mxu0 0
        %1013 = vmatpush1.bf16.xpose.msra.mxu0 %v996
        %1014 = vmatprep.subr.bf16.mxu0 0
        %1015 = vmatpush2.bf16.xpose.msra.mxu0 0
        %1016 = vmatprep.subr.bf16.mxu0 0
        %1017 = vmatpush2.bf16.xpose.msra.mxu0 0
        %1018 = vmatprep.subr.bf16.mxu0 0
        %1019 = vmatpush2.bf16.xpose.msra.mxu0 0
        %1020 = vmatprep.subr.bf16.mxu0 0
        %1021 = vmatpush2.bf16.xpose.msra.mxu0 0
        %1022 = vmatprep.subr.bf16.mxu0 0
        %1023 = vmatpush2.bf16.xpose.msra.mxu0 0
        %1024 = vmatprep.subr.bf16.mxu0 0
        %1025 = vmatpush2.bf16.xpose.msra.mxu0 0
        %1026 = vmatprep.subr.bf16.mxu0 0
        %1027 = vmatpush2.bf16.xpose.msra.mxu0 0
        %1028 = vmatprep.subr.bf16.mxu0 0
        %1029 = vmatpush2.bf16.xpose.msra.mxu0 0
        %1030 = vmatprep.mubr.bf16.mxu0 0
        %1031 = vmatmul.mubr.bf16.gmra.mxu0 %v993
        %v1032 = vpop.f32.mrf.mxu0
        %v1033 = vadd.f32 0.0, %v1032
        %v1034 = vpop.f32.mrf.mxu0
        %v1035 = vpop.f32.mrf.mxu0
        %v1036 = vpop.f32.mrf.mxu0
        %1037 = vdwg.mxu0
        %v1038 = vsel %vm742, %v983, -inf
        %1039 = vmax.xlane.f32.xlu0 %v1038
        %v1040 = vpop.xlane.xlu0 %1039
        %v1041 = vsub.f32 %v983, %v1040
        %v1042 = vmul.f32 %v1041, 1.442695
        %v1043 = vpow.pop %v1042
        %v1044 = vsel %vm742, %v1043, 0.0
        %1045 = vadd.xlane.f32.xlu0 %v1044
        %v1046 = vpop.xlane.xlu0 %1045
        %v1047 = vrcp.pop %v1046
        %v1048 = vmul.f32 %v1043, %v1047
        %v1049 = vsel %vm742, %v1033, -inf
        %1050 = vmax.xlane.f32.xlu0 %v1049
        %v1051 = vpop.xlane.xlu0 %1050
        %v1052 = vsub.f32 %v1033, %v1051
        %v1053 = vmul.f32 %v1052, 1.442695
        %v1054 = vpow.pop %v1053
        %v1055 = vsel %vm742, %v1054, 0.0
        %1056 = vadd.xlane.f32.xlu0 %v1055
        %v1057 = vpop.xlane.xlu0 %1056
        %v1058 = vrcp.pop %v1057
        %v1059 = vmul.f32 %v1054, %v1058
        %s1060 = sld [smem:[#allocation6 + $0x1]]
        %v1061 = vstv %s1060
        %v1062 = vmul.f32 %v1061, %v1059
        %v1063 = vsub.f32 %v1048, %v1062
        %v1064 = vpack.c.bf16 %v1063, %v1063
        %v1066 = vunpack.c.l.b16 %v741
        %v1067 = vpack.c.b16 %v1066, %v1066
        %1068 = vrot.lane.b32.xlu0 %v1067, 112
        %v1069 = vpop.permute.xlu0 %1068
        %v1071 = vsel %vm742, %v1064, 0
        %v1074 = vsel %vm873, %v1069, 0
        %1076 = vmatprep.subr.bf16.mxu0 0
        %1077 = vmatpush1.bf16.msra.mxu0 0
        %1078 = vmatprep.subr.bf16.mxu0 0
        %1079 = vmatpush1.bf16.msra.mxu0 0
        %1080 = vmatprep.subr.bf16.mxu0 0
        %1081 = vmatpush1.bf16.msra.mxu0 0
        %1082 = vmatprep.subr.bf16.mxu0 0
        %1083 = vmatpush1.bf16.msra.mxu0 0
        %1084 = vmatprep.subr.bf16.mxu0 0
        %1085 = vmatpush1.bf16.msra.mxu0 0
        %1086 = vmatprep.subr.bf16.mxu0 0
        %1087 = vmatpush1.bf16.msra.mxu0 0
        %1088 = vmatprep.subr.bf16.mxu0 0
        %1089 = vmatpush1.bf16.msra.mxu0 0
        %1090 = vmatprep.subr.bf16.mxu0 0
        %1091 = vmatpush1.bf16.msra.mxu0 %v1074
        %1092 = vmatprep.subr.bf16.mxu0 0
        %1093 = vmatpush2.bf16.msra.mxu0 0
        %1094 = vmatprep.subr.bf16.mxu0 0
        %1095 = vmatpush2.bf16.msra.mxu0 0
        %1096 = vmatprep.subr.bf16.mxu0 0
        %1097 = vmatpush2.bf16.msra.mxu0 0
        %1098 = vmatprep.subr.bf16.mxu0 0
        %1099 = vmatpush2.bf16.msra.mxu0 0
        %1100 = vmatprep.subr.bf16.mxu0 0
        %1101 = vmatpush2.bf16.msra.mxu0 0
        %1102 = vmatprep.subr.bf16.mxu0 0
        %1103 = vmatpush2.bf16.msra.mxu0 0
        %1104 = vmatprep.subr.bf16.mxu0 0
        %1105 = vmatpush2.bf16.msra.mxu0 0
        %1106 = vmatprep.subr.bf16.mxu0 0
        %1107 = vmatpush2.bf16.msra.mxu0 0
        %1108 = vmatprep.mubr.bf16.mxu0 0
        %1109 = vmatmul.mubr.bf16.gmra.mxu0 %v1071
        %v1110 = vpop.f32.mrf.mxu0
        %v1111 = vadd.f32 0.0, %v1110
        %v1112 = vpop.f32.mrf.mxu0
        %v1113 = vpop.f32.mrf.mxu0
        %v1114 = vpop.f32.mrf.mxu0
        %1115 = vdwg.mxu0
        %v1116 = vmul.f32 %v1111, %v1111
        %v1117 = vsel %vm918, %v1116, 0.0
        %1118 = vadd.xlane.f32.xlu0 %v1117
        %v1119 = vpop.xlane.xlu0 %1118
        %v1120 = vmul.f32 %v1119, %v922
        %v1121 = vld [vmem:[#allocation18] sm:$0x1]
        %v1122 = vadd.f32 %v1120, 1.1920929e-07
        %v1123 = vrsqrt.pop %v1122
        %v1124 = vmul.f32 %v1111, %v1123
        %v1126 = vlaneseq
        %v1127 = vshrl.u32 %v1126, 7
        %v1128 = vsub.s32 0, %v1127
        %v1129 = vrot.slane %v1121, %v1128
        %1130 = vrot.lane.b32.xlu0 %v1129, 112
        %v1131 = vpop.permute.xlu0 %1130
        %v1133 = vmul.f32 %v1124, %v1131
        %v1134 = vpack.c.bf16 %v1133, %v1133
        %v1136 = vunpack.c.l.b16 %v1134
        %v1137 = vpack.c.b16 %v1136, %v1136
        %1138 = vrot.lane.b32.xlu0 %v1137, 16
        %v1139 = vpop.permute.xlu0 %1138
        %vm1141 = vcmask 257152
        %1142 = vst.msk [vmem:[#allocation4] sm:$0xf] %vm1141, %v1139
        %v1143 = vld [vmem:[#allocation4] sm:$0xf]
        %v1144 = vld [vmem:[%s10] sm:$0xf]
        %v1145 = vld [vmem:[%s10 + $0x4] sm:$0xf]
        %v1146 = vld [vmem:[%s10 + $0x8] sm:$0xf]
        %v1147 = vld [vmem:[%s10 + $0xc] sm:$0xf]
        %v1148 = vld [vmem:[%s11] sm:$0x1]
        %v1150 = vlaneseq
        %v1151 = vshrl.u32 %v1150, 7
        %v1152 = vsub.s32 0, %v1151
        %v1153 = vrot.slane %v1148, %v1152
        %v1159 = vunpack.c.l.b16 %v1144
        %v1160 = vunpack.c.l.b16 %v1145
        %v1161 = vunpack.c.l.b16 %v1146
        %v1162 = vunpack.c.l.b16 %v1147
        %v1163 = vpack.c.b16 %v1160, %v1159
        %v1164 = vpack.c.b16 %v1162, %v1161
        %v1168 = vsel %vm695, %v1143, 0
        %1170 = vmatprep.subr.bf16.mxu0 0
        %1171 = vmatpush1.bf16.msra.mxu0 0
        %1172 = vmatprep.subr.bf16.mxu0 0
        %1173 = vmatpush1.bf16.msra.mxu0 0
        %1174 = vmatprep.subr.bf16.mxu0 0
        %1175 = vmatpush1.bf16.msra.mxu0 0
        %1176 = vmatprep.subr.bf16.mxu0 0
        %1177 = vmatpush1.bf16.msra.mxu0 0
        %1178 = vmatprep.subr.bf16.mxu0 0
        %1179 = vmatpush1.bf16.msra.mxu0 0
        %1180 = vmatprep.subr.bf16.mxu0 0
        %1181 = vmatpush1.bf16.msra.mxu0 0
        %1182 = vmatprep.subr.bf16.mxu0 0
        %1183 = vmatpush1.bf16.msra.mxu0 %v1164
        %1184 = vmatprep.subr.bf16.mxu0 0
        %1185 = vmatpush1.bf16.msra.mxu0 %v1163
        %1186 = vmatprep.subr.bf16.mxu0 0
        %1187 = vmatpush2.bf16.msra.mxu0 0
        %1188 = vmatprep.subr.bf16.mxu0 0
        %1189 = vmatpush2.bf16.msra.mxu0 0
        %1190 = vmatprep.subr.bf16.mxu0 0
        %1191 = vmatpush2.bf16.msra.mxu0 0
        %1192 = vmatprep.subr.bf16.mxu0 0
        %1193 = vmatpush2.bf16.msra.mxu0 0
        %1194 = vmatprep.subr.bf16.mxu0 0
        %1195 = vmatpush2.bf16.msra.mxu0 0
        %1196 = vmatprep.subr.bf16.mxu0 0
        %1197 = vmatpush2.bf16.msra.mxu0 0
        %1198 = vmatprep.subr.bf16.mxu0 0
        %1199 = vmatpush2.bf16.msra.mxu0 0
        %1200 = vmatprep.subr.bf16.mxu0 0
        %1201 = vmatpush2.bf16.msra.mxu0 0
        %1202 = vmatprep.mubr.bf16.mxu0 0
        %1203 = vmatmul.mubr.bf16.gmra.mxu0 %v1168
        %v1204 = vpop.f32.mrf.mxu0
        %v1205 = vadd.f32 %v1153, %v1204
        %v1206 = vpop.f32.mrf.mxu0
        %v1207 = vpop.f32.mrf.mxu0
        %v1208 = vpop.f32.mrf.mxu0
        %1209 = vdwg.mxu0
        %1210 = vst.msk [vmem:[%s529] sm:$0xff] %vm695, %v1205
        %s1211 = sand.u32 %s303, 1
        %s1212 = scalar_lea.sflag [#allocation9], %s1211
        %s1213 = sand.u32 %s303, 1
        %s1214 = smul.addr %s1213, 8
        %s1215 = scalar_lea.vmem [#allocation19], %s1214
        // Predicated region
        $region97: #{tpu_custom_call.1} parent=63 // pred_check
          %p1216 = pneg %p313
        $region98: #{tpu_custom_call.1} parent=63 // pred_check_branch
          %1218 = sbr.rel (%p1216) target = $region100
        $region99: #{tpu_custom_call.1} parent=63 // pred_region
          %s1220 = ssub.s32 128, 128
          %1221 = vsyncadd %s1212, %s1220
          %s1222 = smul.addr %s42, 2
          %s1223 = sadd.s32 %s43, %s1222
          %s1224 = smul.addr %s1223, 128
          %s1225 = scalar_lea.hbm %s12, %s1224
          %s1227 = sshll.u32 %s1215, 4
          %s1228 = int_to_ptr.vmem [resolvable:$true] %s1227
          %1230 = dma.vmem_to_hbm [thread:$0]  %s1228, 128, %s1225, %s1212
        $region100: #{tpu_custom_call.1} parent=63 // pred_fallthru
          _
      $region64: #{tpu_custom_call.1} parent=5 // pred_fallthru
        _
      %p1231 = scmp.le.s32.totalorder 2, %s33
      // Predicated region
      $region101: #{tpu_custom_call.1} parent=5 // pred_check
        %p1232 = pneg %p1231
      $region102: #{tpu_custom_call.1} parent=5 // pred_check_branch
        %1234 = sbr.rel (%p1232) target = $region104
      $region103: #{tpu_custom_call.1} parent=5 // pred_region
        %s1235 = ssub.s32 %s33, 2
        // Predicated region
        $region105: #{tpu_custom_call.1} parent=103 // pred_check
          %p1236 = pneg %p319
        $region106: #{tpu_custom_call.1} parent=103 // pred_check_branch
          %1238 = sbr.rel (%p1236) target = $region108
        $region107: #{tpu_custom_call.1} parent=103 // pred_region
          %s1239 = sand.u32 %s304, 1
          %s1240 = scalar_lea.sflag [#allocation9], %s1239
          %s1241 = sand.u32 %s304, 1
          %s1242 = smul.addr %s1241, 8
          %s1243 = scalar_lea.vmem [#allocation19], %s1242
          %1244 = dma.done %s1240, 128
        $region108: #{tpu_custom_call.1} parent=103 // pred_fallthru
          _
      $region104: #{tpu_custom_call.1} parent=5 // pred_fallthru
        _
    $region6: #{tpu_custom_call.1} parent=1 // loop_footer
      %s37 = sadd.s32 1, %s33
    $region7: #{tpu_custom_call.1} parent=1 // loop_footer_branch
      %32 = sbr.rel target = $region3
    $region8: #{tpu_custom_call.1} parent=1 // loop_exit
      _
    %1245 = vsyncpa [#allocation8], 1
    %s1246 = scalar_lea.sflag [#allocation8], 1
    %1247 = vsyncpa %s1246, 1
    %1248 = vsyncpa [#allocation11], 1
    %s1249 = scalar_lea.sflag [#allocation11], 1
    %1250 = vsyncpa %s1249, 1
    %1251 = vsyncpa [#allocation14], 1
    %1252 = vsyncpa [#allocation17], 1
    %1253 = vsyncpa [#allocation9], 1
    %s1254 = scalar_lea.sflag [#allocation9], 1
    %1255 = vsyncpa %s1254, 1

</llo_original>
